<compile_context>
chip_gen: v7x
topology: tpu7x:2x2x1
jax: 0.10.0
libtpu: 0.0.40
codegen_flags: <defaults>
</compile_context>

<pallas_src>
import functools
import math

import jax
import jax.numpy as jnp
from jax.experimental import pallas as pl
from jax.experimental.pallas import tpu as pltpu

LN_EPS = 1e-5

# Row layout of the packed (8, Wpad) f32 vector slab.
(_ROW_BQKV, _ROW_BO, _ROW_G1, _ROW_BE1,
 _ROW_G2, _ROW_BE2, _ROW_BF1, _ROW_BF2) = range(8)


def _layernorm(v, gamma, beta):
    mu = jnp.mean(v, axis=-1, keepdims=True)
    var = jnp.mean((v - mu) ** 2, axis=-1, keepdims=True)
    return (v - mu) * jax.lax.rsqrt(var + LN_EPS) * gamma + beta


def sab_kernel(x_ref, mask_ref, wqkv_ref, wo_ref, w1_ref, w2_ref, vecs_ref,
               out_ref, attnw_ref, *, num_heads):
    Bt, N, E = x_ref.shape
    F = w1_ref.shape[1]
    H = num_heads
    d = E // H
    R = Bt * N
    scale = 1.0 / math.sqrt(d)
    cdt = wqkv_ref.dtype          # matmul-input dtype (bf16 by default; f32 also works)

    x2d = x_ref[...].astype(jnp.float32).reshape(R, E)        # (R, E)

    # Packed bias / LayerNorm vectors: one DMA, sliced here (all static slices).
    vecs = vecs_ref[...]
    bqkv = vecs[_ROW_BQKV:_ROW_BQKV + 1, :3 * E]
    bo = vecs[_ROW_BO:_ROW_BO + 1, :E]
    g1 = vecs[_ROW_G1:_ROW_G1 + 1, :E]
    be1 = vecs[_ROW_BE1:_ROW_BE1 + 1, :E]
    g2 = vecs[_ROW_G2:_ROW_G2 + 1, :E]
    be2 = vecs[_ROW_BE2:_ROW_BE2 + 1, :E]
    bf1 = vecs[_ROW_BF1:_ROW_BF1 + 1, :F]
    bf2 = vecs[_ROW_BF2:_ROW_BF2 + 1, :E]

    # --- fused QKV in-projection: one (R, E) @ (E, 3E) matmul ---
    qkv = jnp.dot(x2d.astype(cdt), wqkv_ref[...],
                  preferred_element_type=jnp.float32) + bqkv

    # --- per-head score matmuls (MXU batch dims are serial, so merging heads would not
    #     reduce MXU pushes); scores stacked along the LEADING axis so the mask add and
    #     the softmax run exactly once over all (head, batch) blocks. ---
    v_heads = []
    s_list = []
    for h in range(H):
        qh = (qkv[:, h * d:(h + 1) * d] * scale).reshape(Bt, N, d).astype(cdt)
        kh = qkv[:, E + h * d:E + (h + 1) * d].reshape(Bt, N, d).astype(cdt)
        vh = qkv[:, 2 * E + h * d:2 * E + (h + 1) * d].reshape(Bt, N, d).astype(cdt)
        v_heads.append(vh)
        s_list.append(jnp.einsum('bnd,bmd->bnm', qh, kh,
                                 preferred_element_type=jnp.float32))
    s_all = jnp.concatenate(s_list, axis=0)                   # (H*Bt, N, N)

    mask = mask_ref[...].astype(jnp.float32)                  # additive mask
    if mask.ndim == 2:
        s_all = s_all + mask                                  # broadcast over (head, batch)
    else:
        s_all = s_all + jnp.concatenate([mask] * H, axis=0)   # per-batch mask, repeated per head

    # single, exact softmax over every (head, batch) row block
    s_all = s_all - jnp.max(s_all, axis=-1, keepdims=True)
    p_all = jnp.exp(s_all)
    p_all = p_all * pl.reciprocal(jnp.sum(p_all, axis=-1, keepdims=True), approx=False)

    # head-averaged attention weights (PyTorch default average_attn_weights=True)
    w_sum = p_all[:Bt]
    for h in range(1, H):
        w_sum = w_sum + p_all[h * Bt:(h + 1) * Bt]
    attn_w = jnp.nan_to_num(w_sum * (1.0 / H))                # (Bt, N, N)

    # --- P@V and out-projection accumulated per head, all on the bf16 MXU path;
    #     wo is stored (H, d, E) so the per-head weight is a leading-dim index. ---
    attn_out = jnp.zeros((R, E), jnp.float32)
    for h in range(H):
        ph = p_all[h * Bt:(h + 1) * Bt].astype(cdt)
        oh = jnp.einsum('bnm,bmd->bnd', ph, v_heads[h],
                        preferred_element_type=jnp.float32)   # (Bt, N, d)
        attn_out = attn_out + jnp.dot(oh.reshape(R, d).astype(cdt), wo_ref[h],
                                      preferred_element_type=jnp.float32)
    attn_out = jnp.nan_to_num(attn_out + bo)

    # --- residual + norm1 + feed-forward + residual ---
    x1 = x2d + attn_out
    n1 = _layernorm(x1, g1, be1)
    h1 = jnp.maximum(
        jnp.dot(n1.astype(cdt), w1_ref[...], preferred_element_type=jnp.float32) + bf1,
        0.0)
    ff = jnp.dot(h1.astype(cdt), w2_ref[...], preferred_element_type=jnp.float32) + bf2
    xr = x1 + ff

    # --- norm2 applied twice (faithful to the PyTorch forward) ---
    out = _layernorm(_layernorm(xr, g2, be2), g2, be2)

    out_ref[...] = out.reshape(Bt, N, E).astype(out_ref.dtype)
    attnw_ref[...] = attn_w.astype(attnw_ref.dtype)


def init_params(key, embed_dim, num_heads, hidden_dim=None, output_dim=None,
                matmul_dtype=jnp.bfloat16):
    E = embed_dim
    H = num_heads
    d = E // H
    if hidden_dim is None:
        hidden_dim = embed_dim * num_heads
    if output_dim is None:
        output_dim = embed_dim
    assert output_dim == embed_dim, "residual add requires output_dim == embed_dim"
    F = hidden_dim
    ks = jax.random.split(key, 6)
    s = 0.02
    wq = jax.random.normal(ks[0], (E, E), jnp.float32) * s
    wk = jax.random.normal(ks[1], (E, E), jnp.float32) * s
    wv = jax.random.normal(ks[2], (E, E), jnp.float32) * s
    wo = jax.random.normal(ks[3], (E, E), jnp.float32) * s
    w1 = jax.random.normal(ks[4], (E, F), jnp.float32) * s
    w2 = jax.random.normal(ks[5], (F, E), jnp.float32) * s

    # One packed f32 slab for every bias / LayerNorm vector (single DMA in the kernel).
    W = max(3 * E, F, E)
    Wpad = ((W + 127) // 128) * 128
    vecs = jnp.zeros((8, Wpad), jnp.float32)
    vecs = vecs.at[_ROW_G1, :E].set(1.0)   # norm1 gamma
    vecs = vecs.at[_ROW_G2, :E].set(1.0)   # norm2 gamma
    # biases (bqkv / bo / beta1 / beta2 / bf1 / bf2) initialized to zero

    return dict(
        num_heads=num_heads,
        wqkv=jnp.concatenate([wq, wk, wv], axis=1).astype(matmul_dtype),  # (E, 3E)
        wo=wo.reshape(H, d, E).astype(matmul_dtype),                      # (H, d, E) bf16
        w1=w1.astype(matmul_dtype),                                       # (E, F)
        w2=w2.astype(matmul_dtype),                                       # (F, E)
        vecs=vecs,                                                        # (8, Wpad) f32
    )


def _num_tensorcores():
    """Best-effort TensorCore-per-chip count (v7x has 2); fall back to 1 (v5e/v6e)."""
    try:
        return max(1, int(getattr(jax.devices()[0], "num_cores", 1)))
    except Exception:
        return 1


def self_attention_block(x, attention_mask, params, b_tile=None):
    """x: (B, N, E) f32; attention_mask: (N, N) or (B, N, N) additive f32 mask."""
    B, N, E = x.shape
    wqkv, wo = params["wqkv"], params["wo"]
    w1, w2, vecs = params["w1"], params["w2"], params["vecs"]
    H = params["num_heads"]
    mask3d = attention_mask.ndim == 3

    if b_tile is None:
        # Single grid step on 1-TC chips (v5e/v6e): splitting the batch only adds per-step
        # overhead and halves MXU M fill.  On a 2-TC chip (v7x) use 2 "parallel" steps.
        # The per-step working set here is a few tens of KiB, far under any VMEM limit.
        if _num_tensorcores() >= 2 and B >= 2 and B % 2 == 0:
            b_tile = B // 2
        else:
            b_tile = B
    assert B % b_tile == 0
    grid = (B // b_tile,)

    if mask3d:
        mask_spec = pl.BlockSpec((b_tile, N, N), lambda b: (b, 0, 0))
    else:
        mask_spec = pl.BlockSpec((N, N), lambda b: (0, 0))     # fetched once, never re-DMA'd

    const2 = lambda shape: pl.BlockSpec(shape, lambda b: (0,) * len(shape))
    in_specs = [
        pl.BlockSpec((b_tile, N, E), lambda b: (b, 0, 0)),     # x
        mask_spec,                                             # additive mask
        const2(wqkv.shape),                                    # fused QKV weight (E, 3E)
        const2(wo.shape),                                      # out-proj weight (H, d, E)
        const2(w1.shape),                                      # FFN weight 1
        const2(w2.shape),                                      # FFN weight 2
        const2(vecs.shape),                                    # packed bias/LN slab
    ]
    out_specs = [
        pl.BlockSpec((b_tile, N, E), lambda b: (b, 0, 0)),
        pl.BlockSpec((b_tile, N, N), lambda b: (b, 0, 0)),
    ]
    out_shape = [
        jax.ShapeDtypeStruct((B, N, E), x.dtype),
        jax.ShapeDtypeStruct((B, N, N), x.dtype),
    ]

    kernel = functools.partial(sab_kernel, num_heads=H)
    return pl.pallas_call(
        kernel,
        grid=grid,
        in_specs=in_specs,
        out_specs=out_specs,
        out_shape=out_shape,
        compiler_params=pltpu.CompilerParams(dimension_semantics=("parallel",)),
    )(x, attention_mask, wqkv, wo, w1, w2, vecs)


if __name__ == "__main__":
    # Small shapes implied by the module: embed_dim=32, num_heads=4, seq=8,
    # hidden_dim = embed_dim * num_heads = 128; batch=4.
    B, N, E, H = 4, 8, 32, 4

    key = jax.random.PRNGKey(0)
    kx, kp = jax.random.split(key)
    x = jax.random.normal(kx, (B, N, E), jnp.float32)

    # Additive causal mask (same role as the float attn_mask in PyTorch MHA).
    # Passed as 2-D: no (B, N, N) materialization in HBM.
    attention_mask = jnp.triu(jnp.full((N, N), -1e9, jnp.float32), k=1)

    params = init_params(kp, embed_dim=E, num_heads=H)

    out, attn_w = self_attention_block(x, attention_mask, params)
    jax.block_until_ready((out, attn_w))

    assert out.shape == (B, N, E) and attn_w.shape == (B, N, N)
    assert bool(jnp.all(jnp.isfinite(out))) and bool(jnp.all(jnp.isfinite(attn_w)))
    print("KERNEL_OK")
</pallas_src>

<mosaic_0001>
module attributes {stable_mosaic.version = 11 : i64} {
  func.func @sab_kernel(%arg0: i32, %arg1: memref<4x8x32xf32, #tpu.memory_space<vmem>>, %arg2: memref<8x8xf32, #tpu.memory_space<vmem>>, %arg3: memref<32x96xbf16, #tpu.memory_space<vmem>>, %arg4: memref<4x8x32xbf16, #tpu.memory_space<vmem>>, %arg5: memref<32x128xbf16, #tpu.memory_space<vmem>>, %arg6: memref<128x32xbf16, #tpu.memory_space<vmem>>, %arg7: memref<8x128xf32, #tpu.memory_space<vmem>>, %arg8: memref<4x8x32xf32, #tpu.memory_space<vmem>>, %arg9: memref<4x8x8xf32, #tpu.memory_space<vmem>>) attributes {dimension_semantics = [#tpu.dimension_semantics<parallel>], iteration_bounds = array<i64: 1>, scalar_prefetch = 0 : i64, scratch_operands = 0 : i64, tpu.core_type = #tpu.core_type<tc>, window_params = [{transform_indices = @transform_0, window_bounds = array<i64: 4, 8, 32>}, {pipeline_mode = #tpu.pipeline_mode<synchronous>, transform_indices = @transform_1, window_bounds = array<i64: 8, 8>}, {pipeline_mode = #tpu.pipeline_mode<synchronous>, transform_indices = @transform_2, window_bounds = array<i64: 32, 96>}, {pipeline_mode = #tpu.pipeline_mode<synchronous>, transform_indices = @transform_3, window_bounds = array<i64: 4, 8, 32>}, {pipeline_mode = #tpu.pipeline_mode<synchronous>, transform_indices = @transform_4, window_bounds = array<i64: 32, 128>}, {pipeline_mode = #tpu.pipeline_mode<synchronous>, transform_indices = @transform_5, window_bounds = array<i64: 128, 32>}, {pipeline_mode = #tpu.pipeline_mode<synchronous>, transform_indices = @transform_6, window_bounds = array<i64: 8, 128>}, {transform_indices = @transform_7, window_bounds = array<i64: 4, 8, 32>}, {transform_indices = @transform_8, window_bounds = array<i64: 4, 8, 8>}]} {
    %c0 = arith.constant 0 : index
    %c0_0 = arith.constant 0 : index
    %c0_1 = arith.constant 0 : index
    %0 = vector.load %arg1[%c0, %c0_0, %c0_1] : memref<4x8x32xf32, #tpu.memory_space<vmem>>, vector<4x8x32xf32>
    %1 = vector.shape_cast %0 : vector<4x8x32xf32> to vector<32x32xf32>
    %c0_2 = arith.constant 0 : index
    %c0_3 = arith.constant 0 : index
    %2 = vector.load %arg7[%c0_2, %c0_3] : memref<8x128xf32, #tpu.memory_space<vmem>>, vector<8x128xf32>
    %3 = vector.extract_strided_slice %2 {offsets = [0, 0], sizes = [1, 96], strides = [1, 1]} : vector<8x128xf32> to vector<1x96xf32>
    %4 = vector.extract_strided_slice %2 {offsets = [1, 0], sizes = [1, 32], strides = [1, 1]} : vector<8x128xf32> to vector<1x32xf32>
    %5 = vector.extract_strided_slice %2 {offsets = [2, 0], sizes = [1, 32], strides = [1, 1]} : vector<8x128xf32> to vector<1x32xf32>
    %6 = vector.extract_strided_slice %2 {offsets = [3, 0], sizes = [1, 32], strides = [1, 1]} : vector<8x128xf32> to vector<1x32xf32>
    %7 = vector.extract_strided_slice %2 {offsets = [4, 0], sizes = [1, 32], strides = [1, 1]} : vector<8x128xf32> to vector<1x32xf32>
    %8 = vector.extract_strided_slice %2 {offsets = [5, 0], sizes = [1, 32], strides = [1, 1]} : vector<8x128xf32> to vector<1x32xf32>
    %9 = vector.extract_strided_slice %2 {offsets = [6, 0], sizes = [1, 128], strides = [1, 1]} : vector<8x128xf32> to vector<1x128xf32>
    %10 = vector.extract_strided_slice %2 {offsets = [7, 0], sizes = [1, 32], strides = [1, 1]} : vector<8x128xf32> to vector<1x32xf32>
    %11 = arith.truncf %1 : vector<32x32xf32> to vector<32x32xbf16>
    %c0_4 = arith.constant 0 : index
    %c0_5 = arith.constant 0 : index
    %12 = vector.load %arg3[%c0_4, %c0_5] : memref<32x96xbf16, #tpu.memory_space<vmem>>, vector<32x96xbf16>
    %cst = arith.constant dense<0.000000e+00> : vector<32x96xf32>
    %13 = tpu.matmul %11, %12, %cst {dimension_numbers = #tpu.dot_dimension_numbers<[1], [0], [0], [1], [0, 0, 1, 1], [], []>} : vector<32x32xbf16>, vector<32x96xbf16>, vector<32x96xf32> -> vector<32x96xf32>
    %14 = vector.broadcast %3 : vector<1x96xf32> to vector<32x96xf32>
    %15 = arith.addf %13, %14 : vector<32x96xf32>
    %16 = vector.extract_strided_slice %15 {offsets = [0, 0], sizes = [32, 8], strides = [1, 1]} : vector<32x96xf32> to vector<32x8xf32>
    %cst_6 = arith.constant 0.353553385 : f32
    %17 = vector.broadcast %cst_6 : f32 to vector<32x8xf32>
    %18 = arith.mulf %16, %17 : vector<32x8xf32>
    %19 = vector.shape_cast %18 : vector<32x8xf32> to vector<4x8x8xf32>
    %20 = arith.truncf %19 : vector<4x8x8xf32> to vector<4x8x8xbf16>
    %21 = vector.extract_strided_slice %15 {offsets = [0, 32], sizes = [32, 8], strides = [1, 1]} : vector<32x96xf32> to vector<32x8xf32>
    %22 = vector.shape_cast %21 : vector<32x8xf32> to vector<4x8x8xf32>
    %23 = arith.truncf %22 : vector<4x8x8xf32> to vector<4x8x8xbf16>
    %24 = vector.extract_strided_slice %15 {offsets = [0, 64], sizes = [32, 8], strides = [1, 1]} : vector<32x96xf32> to vector<32x8xf32>
    %25 = vector.shape_cast %24 : vector<32x8xf32> to vector<4x8x8xf32>
    %26 = arith.truncf %25 : vector<4x8x8xf32> to vector<4x8x8xbf16>
    "tpu.trace_start"() <{level = 10 : i32, message = "bnd,bmd->bnm"}> : () -> ()
    %cst_7 = arith.constant dense<0.000000e+00> : vector<4x8x8xf32>
    %27 = tpu.matmul %20, %23, %cst_7 {dimension_numbers = #tpu.dot_dimension_numbers<[2], [2], [1], [1], [0, 0, 0, 1, 1, 1], [0], [0]>} : vector<4x8x8xbf16>, vector<4x8x8xbf16>, vector<4x8x8xf32> -> vector<4x8x8xf32>
    "tpu.trace_stop"() : () -> ()
    %28 = vector.extract_strided_slice %15 {offsets = [0, 8], sizes = [32, 8], strides = [1, 1]} : vector<32x96xf32> to vector<32x8xf32>
    %cst_8 = arith.constant 0.353553385 : f32
    %29 = vector.broadcast %cst_8 : f32 to vector<32x8xf32>
    %30 = arith.mulf %28, %29 : vector<32x8xf32>
    %31 = vector.shape_cast %30 : vector<32x8xf32> to vector<4x8x8xf32>
    %32 = arith.truncf %31 : vector<4x8x8xf32> to vector<4x8x8xbf16>
    %33 = vector.extract_strided_slice %15 {offsets = [0, 40], sizes = [32, 8], strides = [1, 1]} : vector<32x96xf32> to vector<32x8xf32>
    %34 = vector.shape_cast %33 : vector<32x8xf32> to vector<4x8x8xf32>
    %35 = arith.truncf %34 : vector<4x8x8xf32> to vector<4x8x8xbf16>
    %36 = vector.extract_strided_slice %15 {offsets = [0, 72], sizes = [32, 8], strides = [1, 1]} : vector<32x96xf32> to vector<32x8xf32>
    %37 = vector.shape_cast %36 : vector<32x8xf32> to vector<4x8x8xf32>
    %38 = arith.truncf %37 : vector<4x8x8xf32> to vector<4x8x8xbf16>
    "tpu.trace_start"() <{level = 10 : i32, message = "bnd,bmd->bnm"}> : () -> ()
    %cst_9 = arith.constant dense<0.000000e+00> : vector<4x8x8xf32>
    %39 = tpu.matmul %32, %35, %cst_9 {dimension_numbers = #tpu.dot_dimension_numbers<[2], [2], [1], [1], [0, 0, 0, 1, 1, 1], [0], [0]>} : vector<4x8x8xbf16>, vector<4x8x8xbf16>, vector<4x8x8xf32> -> vector<4x8x8xf32>
    "tpu.trace_stop"() : () -> ()
    %40 = vector.extract_strided_slice %15 {offsets = [0, 16], sizes = [32, 8], strides = [1, 1]} : vector<32x96xf32> to vector<32x8xf32>
    %cst_10 = arith.constant 0.353553385 : f32
    %41 = vector.broadcast %cst_10 : f32 to vector<32x8xf32>
    %42 = arith.mulf %40, %41 : vector<32x8xf32>
    %43 = vector.shape_cast %42 : vector<32x8xf32> to vector<4x8x8xf32>
    %44 = arith.truncf %43 : vector<4x8x8xf32> to vector<4x8x8xbf16>
    %45 = vector.extract_strided_slice %15 {offsets = [0, 48], sizes = [32, 8], strides = [1, 1]} : vector<32x96xf32> to vector<32x8xf32>
    %46 = vector.shape_cast %45 : vector<32x8xf32> to vector<4x8x8xf32>
    %47 = arith.truncf %46 : vector<4x8x8xf32> to vector<4x8x8xbf16>
    %48 = vector.extract_strided_slice %15 {offsets = [0, 80], sizes = [32, 8], strides = [1, 1]} : vector<32x96xf32> to vector<32x8xf32>
    %49 = vector.shape_cast %48 : vector<32x8xf32> to vector<4x8x8xf32>
    %50 = arith.truncf %49 : vector<4x8x8xf32> to vector<4x8x8xbf16>
    "tpu.trace_start"() <{level = 10 : i32, message = "bnd,bmd->bnm"}> : () -> ()
    %cst_11 = arith.constant dense<0.000000e+00> : vector<4x8x8xf32>
    %51 = tpu.matmul %44, %47, %cst_11 {dimension_numbers = #tpu.dot_dimension_numbers<[2], [2], [1], [1], [0, 0, 0, 1, 1, 1], [0], [0]>} : vector<4x8x8xbf16>, vector<4x8x8xbf16>, vector<4x8x8xf32> -> vector<4x8x8xf32>
    "tpu.trace_stop"() : () -> ()
    %52 = vector.extract_strided_slice %15 {offsets = [0, 24], sizes = [32, 8], strides = [1, 1]} : vector<32x96xf32> to vector<32x8xf32>
    %cst_12 = arith.constant 0.353553385 : f32
    %53 = vector.broadcast %cst_12 : f32 to vector<32x8xf32>
    %54 = arith.mulf %52, %53 : vector<32x8xf32>
    %55 = vector.shape_cast %54 : vector<32x8xf32> to vector<4x8x8xf32>
    %56 = arith.truncf %55 : vector<4x8x8xf32> to vector<4x8x8xbf16>
    %57 = vector.extract_strided_slice %15 {offsets = [0, 56], sizes = [32, 8], strides = [1, 1]} : vector<32x96xf32> to vector<32x8xf32>
    %58 = vector.shape_cast %57 : vector<32x8xf32> to vector<4x8x8xf32>
    %59 = arith.truncf %58 : vector<4x8x8xf32> to vector<4x8x8xbf16>
    %60 = vector.extract_strided_slice %15 {offsets = [0, 88], sizes = [32, 8], strides = [1, 1]} : vector<32x96xf32> to vector<32x8xf32>
    %61 = vector.shape_cast %60 : vector<32x8xf32> to vector<4x8x8xf32>
    %62 = arith.truncf %61 : vector<4x8x8xf32> to vector<4x8x8xbf16>
    "tpu.trace_start"() <{level = 10 : i32, message = "bnd,bmd->bnm"}> : () -> ()
    %cst_13 = arith.constant dense<0.000000e+00> : vector<4x8x8xf32>
    %63 = tpu.matmul %56, %59, %cst_13 {dimension_numbers = #tpu.dot_dimension_numbers<[2], [2], [1], [1], [0, 0, 0, 1, 1, 1], [0], [0]>} : vector<4x8x8xbf16>, vector<4x8x8xbf16>, vector<4x8x8xf32> -> vector<4x8x8xf32>
    "tpu.trace_stop"() : () -> ()
    %64 = tpu.concatenate %27, %39, %51, %63 in 0 : vector<4x8x8xf32>, vector<4x8x8xf32>, vector<4x8x8xf32>, vector<4x8x8xf32> -> vector<16x8x8xf32>
    %c0_14 = arith.constant 0 : index
    %c0_15 = arith.constant 0 : index
    %65 = vector.load %arg2[%c0_14, %c0_15] : memref<8x8xf32, #tpu.memory_space<vmem>>, vector<8x8xf32>
    %66 = vector.shape_cast %65 : vector<8x8xf32> to vector<1x8x8xf32>
    %67 = vector.broadcast %66 : vector<1x8x8xf32> to vector<16x8x8xf32>
    %68 = arith.addf %64, %67 : vector<16x8x8xf32>
    %cst_16 = arith.constant dense<0xFF800000> : vector<16x8xf32>
    %69 = vector.multi_reduction <maximumf>, %68, %cst_16 [2] : vector<16x8x8xf32> to vector<16x8xf32>
    %70 = vector.shape_cast %69 : vector<16x8xf32> to vector<16x8x1xf32>
    %71 = vector.broadcast %70 : vector<16x8x1xf32> to vector<16x8x8xf32>
    %72 = arith.subf %68, %71 : vector<16x8x8xf32>
    %73 = math.exp %72 : vector<16x8x8xf32>
    %cst_17 = arith.constant dense<0.000000e+00> : vector<16x8xf32>
    %74 = vector.multi_reduction <add>, %73, %cst_17 [2] : vector<16x8x8xf32> to vector<16x8xf32>
    %75 = vector.shape_cast %74 : vector<16x8xf32> to vector<16x8x1xf32>
    %76 = tpu.reciprocal %75 : vector<16x8x1xf32> -> vector<16x8x1xf32>
    %77 = vector.broadcast %76 : vector<16x8x1xf32> to vector<16x8x8xf32>
    %78 = arith.mulf %73, %77 : vector<16x8x8xf32>
    %79 = vector.extract_strided_slice %78 {offsets = [0, 0, 0], sizes = [4, 8, 8], strides = [1, 1, 1]} : vector<16x8x8xf32> to vector<4x8x8xf32>
    %80 = vector.extract_strided_slice %78 {offsets = [4, 0, 0], sizes = [4, 8, 8], strides = [1, 1, 1]} : vector<16x8x8xf32> to vector<4x8x8xf32>
    %81 = arith.addf %79, %80 : vector<4x8x8xf32>
    %82 = vector.extract_strided_slice %78 {offsets = [8, 0, 0], sizes = [4, 8, 8], strides = [1, 1, 1]} : vector<16x8x8xf32> to vector<4x8x8xf32>
    %83 = arith.addf %81, %82 : vector<4x8x8xf32>
    %84 = vector.extract_strided_slice %78 {offsets = [12, 0, 0], sizes = [4, 8, 8], strides = [1, 1, 1]} : vector<16x8x8xf32> to vector<4x8x8xf32>
    %85 = arith.addf %83, %84 : vector<4x8x8xf32>
    %cst_18 = arith.constant 2.500000e-01 : f32
    %86 = vector.broadcast %cst_18 : f32 to vector<4x8x8xf32>
    %87 = arith.mulf %85, %86 : vector<4x8x8xf32>
    %88 = arith.cmpf one, %87, %87 : vector<4x8x8xf32>
    %cst_19 = arith.constant 0.000000e+00 : f32
    %89 = vector.broadcast %cst_19 : f32 to vector<4x8x8xf32>
    %90 = arith.select %88, %89, %87 : vector<4x8x8xi1>, vector<4x8x8xf32>
    %cst_20 = arith.constant 0x7F800000 : f32
    %91 = vector.broadcast %cst_20 : f32 to vector<4x8x8xf32>
    %92 = arith.cmpf oeq, %90, %91 : vector<4x8x8xf32>
    %cst_21 = arith.constant 3.40282347E+38 : f32
    %93 = vector.broadcast %cst_21 : f32 to vector<4x8x8xf32>
    %94 = arith.select %92, %93, %90 : vector<4x8x8xi1>, vector<4x8x8xf32>
    %cst_22 = arith.constant 0xFF800000 : f32
    %95 = vector.broadcast %cst_22 : f32 to vector<4x8x8xf32>
    %96 = arith.cmpf oeq, %94, %95 : vector<4x8x8xf32>
    %cst_23 = arith.constant -3.40282347E+38 : f32
    %97 = vector.broadcast %cst_23 : f32 to vector<4x8x8xf32>
    %98 = arith.select %96, %97, %94 : vector<4x8x8xi1>, vector<4x8x8xf32>
    %cst_24 = arith.constant 0.000000e+00 : f32
    %99 = vector.broadcast %cst_24 : f32 to vector<32x32xf32>
    %100 = vector.extract_strided_slice %78 {offsets = [0, 0, 0], sizes = [4, 8, 8], strides = [1, 1, 1]} : vector<16x8x8xf32> to vector<4x8x8xf32>
    %101 = arith.truncf %100 : vector<4x8x8xf32> to vector<4x8x8xbf16>
    "tpu.trace_start"() <{level = 10 : i32, message = "bnm,bmd->bnd"}> : () -> ()
    %cst_25 = arith.constant dense<0.000000e+00> : vector<4x8x8xf32>
    %102 = tpu.matmul %101, %26, %cst_25 {dimension_numbers = #tpu.dot_dimension_numbers<[2], [1], [1], [2], [0, 0, 0, 1, 1, 2], [0], [0]>} : vector<4x8x8xbf16>, vector<4x8x8xbf16>, vector<4x8x8xf32> -> vector<4x8x8xf32>
    "tpu.trace_stop"() : () -> ()
    %103 = vector.shape_cast %102 : vector<4x8x8xf32> to vector<32x8xf32>
    %104 = arith.truncf %103 : vector<32x8xf32> to vector<32x8xbf16>
    %c0_26 = arith.constant 0 : index
    %c0_27 = arith.constant 0 : index
    %c0_28 = arith.constant 0 : index
    %105 = vector.load %arg4[%c0_26, %c0_27, %c0_28] : memref<4x8x32xbf16, #tpu.memory_space<vmem>>, vector<1x8x32xbf16>
    %106 = vector.shape_cast %105 : vector<1x8x32xbf16> to vector<8x32xbf16>
    %cst_29 = arith.constant dense<0.000000e+00> : vector<32x32xf32>
    %107 = tpu.matmul %104, %106, %cst_29 {dimension_numbers = #tpu.dot_dimension_numbers<[1], [0], [0], [1], [0, 0, 1, 1], [], []>} : vector<32x8xbf16>, vector<8x32xbf16>, vector<32x32xf32> -> vector<32x32xf32>
    %108 = arith.addf %99, %107 : vector<32x32xf32>
    %109 = vector.extract_strided_slice %78 {offsets = [4, 0, 0], sizes = [4, 8, 8], strides = [1, 1, 1]} : vector<16x8x8xf32> to vector<4x8x8xf32>
    %110 = arith.truncf %109 : vector<4x8x8xf32> to vector<4x8x8xbf16>
    "tpu.trace_start"() <{level = 10 : i32, message = "bnm,bmd->bnd"}> : () -> ()
    %cst_30 = arith.constant dense<0.000000e+00> : vector<4x8x8xf32>
    %111 = tpu.matmul %110, %38, %cst_30 {dimension_numbers = #tpu.dot_dimension_numbers<[2], [1], [1], [2], [0, 0, 0, 1, 1, 2], [0], [0]>} : vector<4x8x8xbf16>, vector<4x8x8xbf16>, vector<4x8x8xf32> -> vector<4x8x8xf32>
    "tpu.trace_stop"() : () -> ()
    %112 = vector.shape_cast %111 : vector<4x8x8xf32> to vector<32x8xf32>
    %113 = arith.truncf %112 : vector<32x8xf32> to vector<32x8xbf16>
    %c1 = arith.constant 1 : index
    %c0_31 = arith.constant 0 : index
    %c0_32 = arith.constant 0 : index
    %114 = vector.load %arg4[%c1, %c0_31, %c0_32] : memref<4x8x32xbf16, #tpu.memory_space<vmem>>, vector<1x8x32xbf16>
    %115 = vector.shape_cast %114 : vector<1x8x32xbf16> to vector<8x32xbf16>
    %cst_33 = arith.constant dense<0.000000e+00> : vector<32x32xf32>
    %116 = tpu.matmul %113, %115, %cst_33 {dimension_numbers = #tpu.dot_dimension_numbers<[1], [0], [0], [1], [0, 0, 1, 1], [], []>} : vector<32x8xbf16>, vector<8x32xbf16>, vector<32x32xf32> -> vector<32x32xf32>
    %117 = arith.addf %108, %116 : vector<32x32xf32>
    %118 = vector.extract_strided_slice %78 {offsets = [8, 0, 0], sizes = [4, 8, 8], strides = [1, 1, 1]} : vector<16x8x8xf32> to vector<4x8x8xf32>
    %119 = arith.truncf %118 : vector<4x8x8xf32> to vector<4x8x8xbf16>
    "tpu.trace_start"() <{level = 10 : i32, message = "bnm,bmd->bnd"}> : () -> ()
    %cst_34 = arith.constant dense<0.000000e+00> : vector<4x8x8xf32>
    %120 = tpu.matmul %119, %50, %cst_34 {dimension_numbers = #tpu.dot_dimension_numbers<[2], [1], [1], [2], [0, 0, 0, 1, 1, 2], [0], [0]>} : vector<4x8x8xbf16>, vector<4x8x8xbf16>, vector<4x8x8xf32> -> vector<4x8x8xf32>
    "tpu.trace_stop"() : () -> ()
    %121 = vector.shape_cast %120 : vector<4x8x8xf32> to vector<32x8xf32>
    %122 = arith.truncf %121 : vector<32x8xf32> to vector<32x8xbf16>
    %c2 = arith.constant 2 : index
    %c0_35 = arith.constant 0 : index
    %c0_36 = arith.constant 0 : index
    %123 = vector.load %arg4[%c2, %c0_35, %c0_36] : memref<4x8x32xbf16, #tpu.memory_space<vmem>>, vector<1x8x32xbf16>
    %124 = vector.shape_cast %123 : vector<1x8x32xbf16> to vector<8x32xbf16>
    %cst_37 = arith.constant dense<0.000000e+00> : vector<32x32xf32>
    %125 = tpu.matmul %122, %124, %cst_37 {dimension_numbers = #tpu.dot_dimension_numbers<[1], [0], [0], [1], [0, 0, 1, 1], [], []>} : vector<32x8xbf16>, vector<8x32xbf16>, vector<32x32xf32> -> vector<32x32xf32>
    %126 = arith.addf %117, %125 : vector<32x32xf32>
    %127 = vector.extract_strided_slice %78 {offsets = [12, 0, 0], sizes = [4, 8, 8], strides = [1, 1, 1]} : vector<16x8x8xf32> to vector<4x8x8xf32>
    %128 = arith.truncf %127 : vector<4x8x8xf32> to vector<4x8x8xbf16>
    "tpu.trace_start"() <{level = 10 : i32, message = "bnm,bmd->bnd"}> : () -> ()
    %cst_38 = arith.constant dense<0.000000e+00> : vector<4x8x8xf32>
    %129 = tpu.matmul %128, %62, %cst_38 {dimension_numbers = #tpu.dot_dimension_numbers<[2], [1], [1], [2], [0, 0, 0, 1, 1, 2], [0], [0]>} : vector<4x8x8xbf16>, vector<4x8x8xbf16>, vector<4x8x8xf32> -> vector<4x8x8xf32>
    "tpu.trace_stop"() : () -> ()
    %130 = vector.shape_cast %129 : vector<4x8x8xf32> to vector<32x8xf32>
    %131 = arith.truncf %130 : vector<32x8xf32> to vector<32x8xbf16>
    %c3 = arith.constant 3 : index
    %c0_39 = arith.constant 0 : index
    %c0_40 = arith.constant 0 : index
    %132 = vector.load %arg4[%c3, %c0_39, %c0_40] : memref<4x8x32xbf16, #tpu.memory_space<vmem>>, vector<1x8x32xbf16>
    %133 = vector.shape_cast %132 : vector<1x8x32xbf16> to vector<8x32xbf16>
    %cst_41 = arith.constant dense<0.000000e+00> : vector<32x32xf32>
    %134 = tpu.matmul %131, %133, %cst_41 {dimension_numbers = #tpu.dot_dimension_numbers<[1], [0], [0], [1], [0, 0, 1, 1], [], []>} : vector<32x8xbf16>, vector<8x32xbf16>, vector<32x32xf32> -> vector<32x32xf32>
    %135 = arith.addf %126, %134 : vector<32x32xf32>
    %136 = vector.broadcast %4 : vector<1x32xf32> to vector<32x32xf32>
    %137 = arith.addf %135, %136 : vector<32x32xf32>
    %138 = arith.cmpf one, %137, %137 : vector<32x32xf32>
    %cst_42 = arith.constant 0.000000e+00 : f32
    %139 = vector.broadcast %cst_42 : f32 to vector<32x32xf32>
    %140 = arith.select %138, %139, %137 : vector<32x32xi1>, vector<32x32xf32>
    %cst_43 = arith.constant 0x7F800000 : f32
    %141 = vector.broadcast %cst_43 : f32 to vector<32x32xf32>
    %142 = arith.cmpf oeq, %140, %141 : vector<32x32xf32>
    %cst_44 = arith.constant 3.40282347E+38 : f32
    %143 = vector.broadcast %cst_44 : f32 to vector<32x32xf32>
    %144 = arith.select %142, %143, %140 : vector<32x32xi1>, vector<32x32xf32>
    %cst_45 = arith.constant 0xFF800000 : f32
    %145 = vector.broadcast %cst_45 : f32 to vector<32x32xf32>
    %146 = arith.cmpf oeq, %144, %145 : vector<32x32xf32>
    %cst_46 = arith.constant -3.40282347E+38 : f32
    %147 = vector.broadcast %cst_46 : f32 to vector<32x32xf32>
    %148 = arith.select %146, %147, %144 : vector<32x32xi1>, vector<32x32xf32>
    %149 = arith.addf %1, %148 : vector<32x32xf32>
    %cst_47 = arith.constant dense<0.000000e+00> : vector<32xf32>
    %150 = vector.multi_reduction <add>, %149, %cst_47 [1] : vector<32x32xf32> to vector<32xf32>
    %151 = vector.shape_cast %150 : vector<32xf32> to vector<32x1xf32>
    %cst_48 = arith.constant 3.200000e+01 : f32
    %152 = vector.broadcast %cst_48 : f32 to vector<32x1xf32>
    %153 = arith.divf %151, %152 : vector<32x1xf32>
    %154 = vector.broadcast %153 : vector<32x1xf32> to vector<32x32xf32>
    %155 = arith.subf %149, %154 : vector<32x32xf32>
    %156 = arith.mulf %155, %155 : vector<32x32xf32>
    %cst_49 = arith.constant dense<0.000000e+00> : vector<32xf32>
    %157 = vector.multi_reduction <add>, %156, %cst_49 [1] : vector<32x32xf32> to vector<32xf32>
    %158 = vector.shape_cast %157 : vector<32xf32> to vector<32x1xf32>
    %cst_50 = arith.constant 3.200000e+01 : f32
    %159 = vector.broadcast %cst_50 : f32 to vector<32x1xf32>
    %160 = arith.divf %158, %159 : vector<32x1xf32>
    %161 = vector.broadcast %153 : vector<32x1xf32> to vector<32x32xf32>
    %162 = arith.subf %149, %161 : vector<32x32xf32>
    %cst_51 = arith.constant 9.99999974E-6 : f32
    %163 = vector.broadcast %cst_51 : f32 to vector<32x1xf32>
    %164 = arith.addf %160, %163 : vector<32x1xf32>
    %165 = math.rsqrt %164 : vector<32x1xf32>
    %166 = vector.broadcast %165 : vector<32x1xf32> to vector<32x32xf32>
    %167 = arith.mulf %162, %166 : vector<32x32xf32>
    %168 = vector.broadcast %5 : vector<1x32xf32> to vector<32x32xf32>
    %169 = arith.mulf %167, %168 : vector<32x32xf32>
    %170 = vector.broadcast %6 : vector<1x32xf32> to vector<32x32xf32>
    %171 = arith.addf %169, %170 : vector<32x32xf32>
    %172 = arith.truncf %171 : vector<32x32xf32> to vector<32x32xbf16>
    %c0_52 = arith.constant 0 : index
    %c0_53 = arith.constant 0 : index
    %173 = vector.load %arg5[%c0_52, %c0_53] : memref<32x128xbf16, #tpu.memory_space<vmem>>, vector<32x128xbf16>
    %cst_54 = arith.constant dense<0.000000e+00> : vector<32x128xf32>
    %174 = tpu.matmul %172, %173, %cst_54 {dimension_numbers = #tpu.dot_dimension_numbers<[1], [0], [0], [1], [0, 0, 1, 1], [], []>} : vector<32x32xbf16>, vector<32x128xbf16>, vector<32x128xf32> -> vector<32x128xf32>
    %175 = vector.broadcast %9 : vector<1x128xf32> to vector<32x128xf32>
    %176 = arith.addf %174, %175 : vector<32x128xf32>
    %cst_55 = arith.constant 0.000000e+00 : f32
    %177 = vector.broadcast %cst_55 : f32 to vector<32x128xf32>
    %178 = arith.maximumf %176, %177 : vector<32x128xf32>
    %179 = arith.truncf %178 : vector<32x128xf32> to vector<32x128xbf16>
    %c0_56 = arith.constant 0 : index
    %c0_57 = arith.constant 0 : index
    %180 = vector.load %arg6[%c0_56, %c0_57] : memref<128x32xbf16, #tpu.memory_space<vmem>>, vector<128x32xbf16>
    %cst_58 = arith.constant dense<0.000000e+00> : vector<32x32xf32>
    %181 = tpu.matmul %179, %180, %cst_58 {dimension_numbers = #tpu.dot_dimension_numbers<[1], [0], [0], [1], [0, 0, 1, 1], [], []>} : vector<32x128xbf16>, vector<128x32xbf16>, vector<32x32xf32> -> vector<32x32xf32>
    %182 = vector.broadcast %10 : vector<1x32xf32> to vector<32x32xf32>
    %183 = arith.addf %181, %182 : vector<32x32xf32>
    %184 = arith.addf %149, %183 : vector<32x32xf32>
    %cst_59 = arith.constant dense<0.000000e+00> : vector<32xf32>
    %185 = vector.multi_reduction <add>, %184, %cst_59 [1] : vector<32x32xf32> to vector<32xf32>
    %186 = vector.shape_cast %185 : vector<32xf32> to vector<32x1xf32>
    %cst_60 = arith.constant 3.200000e+01 : f32
    %187 = vector.broadcast %cst_60 : f32 to vector<32x1xf32>
    %188 = arith.divf %186, %187 : vector<32x1xf32>
    %189 = vector.broadcast %188 : vector<32x1xf32> to vector<32x32xf32>
    %190 = arith.subf %184, %189 : vector<32x32xf32>
    %191 = arith.mulf %190, %190 : vector<32x32xf32>
    %cst_61 = arith.constant dense<0.000000e+00> : vector<32xf32>
    %192 = vector.multi_reduction <add>, %191, %cst_61 [1] : vector<32x32xf32> to vector<32xf32>
    %193 = vector.shape_cast %192 : vector<32xf32> to vector<32x1xf32>
    %cst_62 = arith.constant 3.200000e+01 : f32
    %194 = vector.broadcast %cst_62 : f32 to vector<32x1xf32>
    %195 = arith.divf %193, %194 : vector<32x1xf32>
    %196 = vector.broadcast %188 : vector<32x1xf32> to vector<32x32xf32>
    %197 = arith.subf %184, %196 : vector<32x32xf32>
    %cst_63 = arith.constant 9.99999974E-6 : f32
    %198 = vector.broadcast %cst_63 : f32 to vector<32x1xf32>
    %199 = arith.addf %195, %198 : vector<32x1xf32>
    %200 = math.rsqrt %199 : vector<32x1xf32>
    %201 = vector.broadcast %200 : vector<32x1xf32> to vector<32x32xf32>
    %202 = arith.mulf %197, %201 : vector<32x32xf32>
    %203 = vector.broadcast %7 : vector<1x32xf32> to vector<32x32xf32>
    %204 = arith.mulf %202, %203 : vector<32x32xf32>
    %205 = vector.broadcast %8 : vector<1x32xf32> to vector<32x32xf32>
    %206 = arith.addf %204, %205 : vector<32x32xf32>
    %cst_64 = arith.constant dense<0.000000e+00> : vector<32xf32>
    %207 = vector.multi_reduction <add>, %206, %cst_64 [1] : vector<32x32xf32> to vector<32xf32>
    %208 = vector.shape_cast %207 : vector<32xf32> to vector<32x1xf32>
    %cst_65 = arith.constant 3.200000e+01 : f32
    %209 = vector.broadcast %cst_65 : f32 to vector<32x1xf32>
    %210 = arith.divf %208, %209 : vector<32x1xf32>
    %211 = vector.broadcast %210 : vector<32x1xf32> to vector<32x32xf32>
    %212 = arith.subf %206, %211 : vector<32x32xf32>
    %213 = arith.mulf %212, %212 : vector<32x32xf32>
    %cst_66 = arith.constant dense<0.000000e+00> : vector<32xf32>
    %214 = vector.multi_reduction <add>, %213, %cst_66 [1] : vector<32x32xf32> to vector<32xf32>
    %215 = vector.shape_cast %214 : vector<32xf32> to vector<32x1xf32>
    %cst_67 = arith.constant 3.200000e+01 : f32
    %216 = vector.broadcast %cst_67 : f32 to vector<32x1xf32>
    %217 = arith.divf %215, %216 : vector<32x1xf32>
    %218 = vector.broadcast %210 : vector<32x1xf32> to vector<32x32xf32>
    %219 = arith.subf %206, %218 : vector<32x32xf32>
    %cst_68 = arith.constant 9.99999974E-6 : f32
    %220 = vector.broadcast %cst_68 : f32 to vector<32x1xf32>
    %221 = arith.addf %217, %220 : vector<32x1xf32>
    %222 = math.rsqrt %221 : vector<32x1xf32>
    %223 = vector.broadcast %222 : vector<32x1xf32> to vector<32x32xf32>
    %224 = arith.mulf %219, %223 : vector<32x32xf32>
    %225 = vector.broadcast %7 : vector<1x32xf32> to vector<32x32xf32>
    %226 = arith.mulf %224, %225 : vector<32x32xf32>
    %227 = vector.broadcast %8 : vector<1x32xf32> to vector<32x32xf32>
    %228 = arith.addf %226, %227 : vector<32x32xf32>
    %229 = vector.shape_cast %228 : vector<32x32xf32> to vector<4x8x32xf32>
    %c0_69 = arith.constant 0 : index
    %c0_70 = arith.constant 0 : index
    %c0_71 = arith.constant 0 : index
    %230 = vector.load %arg8[%c0_69, %c0_70, %c0_71] : memref<4x8x32xf32, #tpu.memory_space<vmem>>, vector<4x8x32xf32>
    tpu.vector_store %arg8[%c0_69, %c0_70, %c0_71], %229 {strides = array<i32>} : memref<4x8x32xf32, #tpu.memory_space<vmem>>, vector<4x8x32xf32>,
    %c0_72 = arith.constant 0 : index
    %c0_73 = arith.constant 0 : index
    %c0_74 = arith.constant 0 : index
    %231 = vector.load %arg9[%c0_72, %c0_73, %c0_74] : memref<4x8x8xf32, #tpu.memory_space<vmem>>, vector<4x8x8xf32>
    tpu.vector_store %arg9[%c0_72, %c0_73, %c0_74], %98 {strides = array<i32>} : memref<4x8x8xf32, #tpu.memory_space<vmem>>, vector<4x8x8xf32>,
    return
  }
  func.func @transform_0(%arg0: i32) -> (i32, i32, i32) {
    %c0_i32 = arith.constant 0 : i32
    %c0_i32_0 = arith.constant 0 : i32
    %c0_i32_1 = arith.constant 0 : i32
    return %arg0, %c0_i32, %c0_i32_0 : i32, i32, i32
  }
  func.func @transform_1(%arg0: i32) -> (i32, i32) {
    %c0_i32 = arith.constant 0 : i32
    %c0_i32_0 = arith.constant 0 : i32
    %c0_i32_1 = arith.constant 0 : i32
    return %c0_i32, %c0_i32_0 : i32, i32
  }
  func.func @transform_2(%arg0: i32) -> (i32, i32) {
    %c0_i32 = arith.constant 0 : i32
    %c0_i32_0 = arith.constant 0 : i32
    %c0_i32_1 = arith.constant 0 : i32
    return %c0_i32, %c0_i32_0 : i32, i32
  }
  func.func @transform_3(%arg0: i32) -> (i32, i32, i32) {
    %c0_i32 = arith.constant 0 : i32
    %c0_i32_0 = arith.constant 0 : i32
    %c0_i32_1 = arith.constant 0 : i32
    %c0_i32_2 = arith.constant 0 : i32
    return %c0_i32, %c0_i32_0, %c0_i32_1 : i32, i32, i32
  }
  func.func @transform_4(%arg0: i32) -> (i32, i32) {
    %c0_i32 = arith.constant 0 : i32
    %c0_i32_0 = arith.constant 0 : i32
    %c0_i32_1 = arith.constant 0 : i32
    return %c0_i32, %c0_i32_0 : i32, i32
  }
  func.func @transform_5(%arg0: i32) -> (i32, i32) {
    %c0_i32 = arith.constant 0 : i32
    %c0_i32_0 = arith.constant 0 : i32
    %c0_i32_1 = arith.constant 0 : i32
    return %c0_i32, %c0_i32_0 : i32, i32
  }
  func.func @transform_6(%arg0: i32) -> (i32, i32) {
    %c0_i32 = arith.constant 0 : i32
    %c0_i32_0 = arith.constant 0 : i32
    %c0_i32_1 = arith.constant 0 : i32
    return %c0_i32, %c0_i32_0 : i32, i32
  }
  func.func @transform_7(%arg0: i32) -> (i32, i32, i32) {
    %c0_i32 = arith.constant 0 : i32
    %c0_i32_0 = arith.constant 0 : i32
    %c0_i32_1 = arith.constant 0 : i32
    return %arg0, %c0_i32, %c0_i32_0 : i32, i32, i32
  }
  func.func @transform_8(%arg0: i32) -> (i32, i32, i32) {
    %c0_i32 = arith.constant 0 : i32
    %c0_i32_0 = arith.constant 0 : i32
    %c0_i32_1 = arith.constant 0 : i32
    return %arg0, %c0_i32, %c0_i32_0 : i32, i32, i32
  }
}

</mosaic_0001>

<llo_original>
// kernel: tpu_custom_call.1
$region0: #{tpu_custom_call.1}
  #allocation0 [shape = 'u32[]', space=smem, size = 0x4, offset = 0x4, fixed_abs, tag = 'smem constant byte address 0x4 - core index']
  #allocation1 [shape = 'u32[144,128]{1,0:T(1,128)}', space=vmem, size = 0x12000, scoped, tag = 'internal scratch']
  %s0 = inlined_call_operand.vmem [shape: f32[4,8,32], index: 0, kind: input, shape index: {}]
  %s1 = inlined_call_operand.hbm [shape: f32[8,8], index: 1, kind: input, shape index: {}]
  %s2 = inlined_call_operand.vmem [shape: bf16[32,96], index: 2, kind: input, shape index: {}]
  %s3 = inlined_call_operand.vmem [shape: bf16[4,8,32], index: 3, kind: input, shape index: {}]
  %s4 = inlined_call_operand.vmem [shape: bf16[32,128], index: 4, kind: input, shape index: {}]
  %s5 = inlined_call_operand.vmem [shape: bf16[128,32], index: 5, kind: input, shape index: {}]
  %s6 = inlined_call_operand.hbm [shape: f32[8,128], index: 6, kind: input, shape index: {}]
  %s7 = inlined_call_operand.hbm [shape: f32[4,8,32], index: 7, kind: output, shape index: {0}]
  %s8 = inlined_call_operand.hbm [shape: f32[4,8,8], index: 8, kind: output, shape index: {1}]
  %9 = xla_tuple %s7, %s8
  %s10 = sld [smem:[#allocation0]]
  $region54: #{tpu_custom_call.1} parent=0
    _
  %s12 = ssub.s32 1, %s10
  %s13 = scalar_select 0, %s12, %s10
  $region1: #{tpu_custom_call.1} parent=0
    #allocation2 [shape = 'u8[4096]{0}', space=vmem, size = 0x1000, scoped, tag = 'input window, operand 1, single buffered']
    #allocation3 [shape = 's32[1]{0}', space=sflag, size = 0x4, scoped, tag = 'scoped memory for tpu_custom_call.1']
    #allocation4 [shape = 's32[1]{0}', space=sflag, size = 0x4, scoped, tag = 'scoped memory for tpu_custom_call.1']
    #allocation5 [shape = 'u8[4096]{0}', space=vmem, size = 0x1000, scoped, tag = 'input window, operand 6, single buffered']
    #allocation6 [shape = 's32[1]{0}', space=sflag, size = 0x4, scoped, tag = 'scoped memory for tpu_custom_call.1']
    #allocation7 [shape = 'u8[16384]{0}', space=vmem, size = 0x4000, scoped, tag = 'output window, operand 0, single buffered']
    #allocation8 [shape = 'u8[16384]{0}', space=vmem, size = 0x4000, scoped, tag = 'output window, operand 1, single buffered']
    #allocation9 [shape = 's32[1]{0}', space=sflag, size = 0x4, scoped, tag = 'scoped memory for tpu_custom_call.1']
    %14 = vsyncpa [#allocation3], 0
    %15 = vsyncpa [#allocation6], 0
    %16 = vsyncpa [#allocation4], 0
    %17 = vsyncpa [#allocation9], 0
    // Predicated region
    $region2: #{tpu_custom_call.1} parent=1 // pred_check
      _
    $region3: #{tpu_custom_call.1} parent=1 // pred_check_branch
      %19 = sbr.rel (0) target = $region5
    $region4: #{tpu_custom_call.1} parent=1 // pred_region
      _
    $region5: #{tpu_custom_call.1} parent=1 // pred_fallthru
      _
    // Predicated region
    $region6: #{tpu_custom_call.1} parent=1 // pred_check
      _
    $region7: #{tpu_custom_call.1} parent=1 // pred_check_branch
      %21 = sbr.rel (0) target = $region9
    $region8: #{tpu_custom_call.1} parent=1 // pred_region
      %s23 = ssub.s32 128, 128
      %24 = vsyncadd [#allocation3], %s23
      %s26 = sshll.u32 [#allocation2], 4
      %s27 = int_to_ptr.vmem [resolvable:$true] %s26
      %29 = dma.hbm_to_vmem [thread:$0]  %s1, 128, %s27, [#allocation3]
    $region9: #{tpu_custom_call.1} parent=1 // pred_fallthru
      _
    // Predicated region
    $region10: #{tpu_custom_call.1} parent=1 // pred_check
      _
    $region11: #{tpu_custom_call.1} parent=1 // pred_check_branch
      %31 = sbr.rel (0) target = $region13
    $region12: #{tpu_custom_call.1} parent=1 // pred_region
      _
    $region13: #{tpu_custom_call.1} parent=1 // pred_fallthru
      _
    // Predicated region
    $region14: #{tpu_custom_call.1} parent=1 // pred_check
      _
    $region15: #{tpu_custom_call.1} parent=1 // pred_check_branch
      %33 = sbr.rel (0) target = $region17
    $region16: #{tpu_custom_call.1} parent=1 // pred_region
      _
    $region17: #{tpu_custom_call.1} parent=1 // pred_fallthru
      _
    // Predicated region
    $region18: #{tpu_custom_call.1} parent=1 // pred_check
      _
    $region19: #{tpu_custom_call.1} parent=1 // pred_check_branch
      %35 = sbr.rel (0) target = $region21
    $region20: #{tpu_custom_call.1} parent=1 // pred_region
      _
    $region21: #{tpu_custom_call.1} parent=1 // pred_fallthru
      _
    // Predicated region
    $region22: #{tpu_custom_call.1} parent=1 // pred_check
      _
    $region23: #{tpu_custom_call.1} parent=1 // pred_check_branch
      %37 = sbr.rel (0) target = $region25
    $region24: #{tpu_custom_call.1} parent=1 // pred_region
      _
    $region25: #{tpu_custom_call.1} parent=1 // pred_fallthru
      _
    // Predicated region
    $region26: #{tpu_custom_call.1} parent=1 // pred_check
      _
    $region27: #{tpu_custom_call.1} parent=1 // pred_check_branch
      %39 = sbr.rel (0) target = $region29
    $region28: #{tpu_custom_call.1} parent=1 // pred_region
      %s41 = ssub.s32 128, 128
      %42 = vsyncadd [#allocation6], %s41
      %s44 = sshll.u32 [#allocation5], 4
      %s45 = int_to_ptr.vmem [resolvable:$true] %s44
      %47 = dma.hbm_to_vmem [thread:$0]  %s6, 128, %s45, [#allocation6]
    $region29: #{tpu_custom_call.1} parent=1 // pred_fallthru
      _
    // Predicated region
    $region30: #{tpu_custom_call.1} parent=1 // pred_check
      _
    $region31: #{tpu_custom_call.1} parent=1 // pred_check_branch
      %49 = sbr.rel (0) target = $region33
    $region32: #{tpu_custom_call.1} parent=1 // pred_region
      %50 = dma.done [#allocation3], 128
    $region33: #{tpu_custom_call.1} parent=1 // pred_fallthru
      _
    // Predicated region
    $region34: #{tpu_custom_call.1} parent=1 // pred_check
      _
    $region35: #{tpu_custom_call.1} parent=1 // pred_check_branch
      %52 = sbr.rel (0) target = $region37
    $region36: #{tpu_custom_call.1} parent=1 // pred_region
      %53 = dma.done [#allocation6], 128
    $region37: #{tpu_custom_call.1} parent=1 // pred_fallthru
      _
    %v55 = vld [vmem:[%s0] sm:$0xff]
    %v56 = vld [vmem:[%s0 + $0x8] sm:$0xff]
    %v57 = vld [vmem:[%s0 + $0x10] sm:$0xff]
    %v58 = vld [vmem:[%s0 + $0x18] sm:$0xff]
    %v59 = vld [vmem:[#allocation5] sm:$0xff]
    %v60 = vpack.c.bf16 %v56, %v55
    %v61 = vpack.c.bf16 %v58, %v57
    %v62 = vld [vmem:[%s2] sm:$0xf]
    %v63 = vld [vmem:[%s2 + $0x4] sm:$0xf]
    %v64 = vld [vmem:[%s2 + $0x8] sm:$0xf]
    %v65 = vld [vmem:[%s2 + $0xc] sm:$0xf]
    %v66 = vlaneseq
    %v67 = vshrl.u32 %v66, 7
    %v68 = vsub.s32 0, %v67
    %v69 = vrot.slane %v59, %v68
    %v74 = vunpack.c.l.b16 %v62
    %v75 = vunpack.c.l.b16 %v63
    %v76 = vunpack.c.l.b16 %v64
    %v77 = vunpack.c.l.b16 %v65
    %v78 = vpack.c.b16 %v75, %v74
    %v79 = vpack.c.b16 %v77, %v76
    %vm82 = vcmask 261120
    %v84 = vsel %vm82, %v60, 0
    %v87 = vsel %vm82, %v61, 0
    %89 = vmatprep.subr.bf16.mxu0 0
    %90 = vmatpush1.bf16.msra.mxu0 %v78
    %91 = vmatprep.subr.bf16.mxu0 0
    %92 = vmatpush1.bf16.msra.mxu0 %v79
    %93 = vmatprep.subr.bf16.mxu0 0
    %94 = vmatpush1.bf16.msra.mxu0 0
    %95 = vmatprep.subr.bf16.mxu0 0
    %96 = vmatpush1.bf16.msra.mxu0 0
    %97 = vmatprep.subr.bf16.mxu0 0
    %98 = vmatpush1.bf16.msra.mxu0 0
    %99 = vmatprep.subr.bf16.mxu0 0
    %100 = vmatpush1.bf16.msra.mxu0 0
    %101 = vmatprep.subr.bf16.mxu0 0
    %102 = vmatpush1.bf16.msra.mxu0 0
    %103 = vmatprep.subr.bf16.mxu0 0
    %104 = vmatpush1.bf16.msra.mxu0 0
    %105 = vmatprep.subr.bf16.mxu0 0
    %106 = vmatpush1.bf16.msra.mxu0 0
    %107 = vmatprep.subr.bf16.mxu0 0
    %108 = vmatpush1.bf16.msra.mxu0 0
    %109 = vmatprep.subr.bf16.mxu0 0
    %110 = vmatpush1.bf16.msra.mxu0 0
    %111 = vmatprep.subr.bf16.mxu0 0
    %112 = vmatpush1.bf16.msra.mxu0 0
    %113 = vmatprep.subr.bf16.mxu0 0
    %114 = vmatpush1.bf16.msra.mxu0 0
    %115 = vmatprep.subr.bf16.mxu0 0
    %116 = vmatpush1.bf16.msra.mxu0 0
    %117 = vmatprep.subr.bf16.mxu0 0
    %118 = vmatpush1.bf16.msra.mxu0 0
    %119 = vmatprep.subr.bf16.mxu0 0
    %120 = vmatpush1.bf16.msra.mxu0 0
    %121 = vmatprep.mubr.bf16.mxu0 0
    %122 = vmatmul.mubr.bf16.gmra.mrb[0].mxu0 %v84
    %v123 = vpop.f32.mrb[0].mxu0
    %v124 = vadd.f32 %v69, %v123
    %v125 = vpop.f32.mrb[0].mxu0
    %v126 = vpop.f32.mrb[0].mxu0
    %v127 = vadd.f32 %v69, %v126
    %v128 = vpop.f32.mrb[0].mxu0
    %129 = vmatprep.mubr.bf16.mxu0 0
    %130 = vmatmul.mubr.bf16.gmra.mrb[0].mxu0 %v87
    %v131 = vpop.f32.mrb[0].mxu0
    %v132 = vadd.f32 %v69, %v131
    %v133 = vpop.f32.mrb[0].mxu0
    %v134 = vpop.f32.mrb[0].mxu0
    %v135 = vadd.f32 %v69, %v134
    %v136 = vpop.f32.mrb[0].mxu0
    %137 = vdwg.mxu0
    %v138 = vmul.f32 %v124, 0.35355338
    %v139 = vmul.f32 %v127, 0.35355338
    %v140 = vmul.f32 %v132, 0.35355338
    %v141 = vmul.f32 %v135, 0.35355338
    %v142 = vpack.c.bf16 %v138, %v138
    %v143 = vpack.c.bf16 %v139, %v139
    %v144 = vpack.c.bf16 %v140, %v140
    %v145 = vpack.c.bf16 %v141, %v141
    %v146 = vpack.c.bf16 %v124, %v124
    %v147 = vpack.c.bf16 %v127, %v127
    %v148 = vpack.c.bf16 %v132, %v132
    %v149 = vpack.c.bf16 %v135, %v135
    %151 = vrot.lane.b32.xlu0 %v146, 96
    %v152 = vpop.permute.xlu0 %151
    %vm153 = vcmask 64512
    %v155 = vsel %vm153, %v142, 0
    %v158 = vsel %vm153, %v152, 0
    %160 = vmatprep.subr.bf16.mxu0 0
    %161 = vmatpush1.bf16.xpose.msra.mxu0 %v158
    %162 = vmatprep.subr.bf16.mxu0 0
    %163 = vmatpush1.bf16.xpose.msra.mxu0 0
    %164 = vmatprep.subr.bf16.mxu0 0
    %165 = vmatpush1.bf16.xpose.msra.mxu0 0
    %166 = vmatprep.subr.bf16.mxu0 0
    %167 = vmatpush1.bf16.xpose.msra.mxu0 0
    %168 = vmatprep.subr.bf16.mxu0 0
    %169 = vmatpush1.bf16.xpose.msra.mxu0 0
    %170 = vmatprep.subr.bf16.mxu0 0
    %171 = vmatpush1.bf16.xpose.msra.mxu0 0
    %172 = vmatprep.subr.bf16.mxu0 0
    %173 = vmatpush1.bf16.xpose.msra.mxu0 0
    %174 = vmatprep.subr.bf16.mxu0 0
    %175 = vmatpush1.bf16.xpose.msra.mxu0 0
    %176 = vmatprep.subr.bf16.mxu0 0
    %177 = vmatpush1.bf16.xpose.msra.mxu0 0
    %178 = vmatprep.subr.bf16.mxu0 0
    %179 = vmatpush1.bf16.xpose.msra.mxu0 0
    %180 = vmatprep.subr.bf16.mxu0 0
    %181 = vmatpush1.bf16.xpose.msra.mxu0 0
    %182 = vmatprep.subr.bf16.mxu0 0
    %183 = vmatpush1.bf16.xpose.msra.mxu0 0
    %184 = vmatprep.subr.bf16.mxu0 0
    %185 = vmatpush1.bf16.xpose.msra.mxu0 0
    %186 = vmatprep.subr.bf16.mxu0 0
    %187 = vmatpush1.bf16.xpose.msra.mxu0 0
    %188 = vmatprep.subr.bf16.mxu0 0
    %189 = vmatpush1.bf16.xpose.msra.mxu0 0
    %190 = vmatprep.subr.bf16.mxu0 0
    %191 = vmatpush1.bf16.xpose.msra.mxu0 0
    %192 = vmatprep.mubr.bf16.mxu0 0
    %193 = vmatmul.mubr.bf16.gmra.mrb[0].mxu0 %v155
    %v194 = vpop.f32.mrb[0].mxu0
    %v195 = vadd.f32 0.0, %v194
    %v196 = vpop.f32.mrb[0].mxu0
    %v197 = vpop.f32.mrb[0].mxu0
    %v198 = vpop.f32.mrb[0].mxu0
    %199 = vdwg.mxu0
    %201 = vrot.lane.b32.xlu0 %v147, 96
    %v202 = vpop.permute.xlu0 %201
    %v204 = vsel %vm153, %v143, 0
    %v207 = vsel %vm153, %v202, 0
    %209 = vmatprep.subr.bf16.mxu0 0
    %210 = vmatpush1.bf16.xpose.msra.mxu0 %v207
    %211 = vmatprep.subr.bf16.mxu0 0
    %212 = vmatpush1.bf16.xpose.msra.mxu0 0
    %213 = vmatprep.subr.bf16.mxu0 0
    %214 = vmatpush1.bf16.xpose.msra.mxu0 0
    %215 = vmatprep.subr.bf16.mxu0 0
    %216 = vmatpush1.bf16.xpose.msra.mxu0 0
    %217 = vmatprep.subr.bf16.mxu0 0
    %218 = vmatpush1.bf16.xpose.msra.mxu0 0
    %219 = vmatprep.subr.bf16.mxu0 0
    %220 = vmatpush1.bf16.xpose.msra.mxu0 0
    %221 = vmatprep.subr.bf16.mxu0 0
    %222 = vmatpush1.bf16.xpose.msra.mxu0 0
    %223 = vmatprep.subr.bf16.mxu0 0
    %224 = vmatpush1.bf16.xpose.msra.mxu0 0
    %225 = vmatprep.subr.bf16.mxu0 0
    %226 = vmatpush1.bf16.xpose.msra.mxu0 0
    %227 = vmatprep.subr.bf16.mxu0 0
    %228 = vmatpush1.bf16.xpose.msra.mxu0 0
    %229 = vmatprep.subr.bf16.mxu0 0
    %230 = vmatpush1.bf16.xpose.msra.mxu0 0
    %231 = vmatprep.subr.bf16.mxu0 0
    %232 = vmatpush1.bf16.xpose.msra.mxu0 0
    %233 = vmatprep.subr.bf16.mxu0 0
    %234 = vmatpush1.bf16.xpose.msra.mxu0 0
    %235 = vmatprep.subr.bf16.mxu0 0
    %236 = vmatpush1.bf16.xpose.msra.mxu0 0
    %237 = vmatprep.subr.bf16.mxu0 0
    %238 = vmatpush1.bf16.xpose.msra.mxu0 0
    %239 = vmatprep.subr.bf16.mxu0 0
    %240 = vmatpush1.bf16.xpose.msra.mxu0 0
    %241 = vmatprep.mubr.bf16.mxu0 0
    %242 = vmatmul.mubr.bf16.gmra.mrb[0].mxu0 %v204
    %v243 = vpop.f32.mrb[0].mxu0
    %v244 = vadd.f32 0.0, %v243
    %v245 = vpop.f32.mrb[0].mxu0
    %v246 = vpop.f32.mrb[0].mxu0
    %v247 = vpop.f32.mrb[0].mxu0
    %248 = vdwg.mxu0
    %250 = vrot.lane.b32.xlu0 %v148, 96
    %v251 = vpop.permute.xlu0 %250
    %v253 = vsel %vm153, %v144, 0
    %v256 = vsel %vm153, %v251, 0
    %258 = vmatprep.subr.bf16.mxu0 0
    %259 = vmatpush1.bf16.xpose.msra.mxu0 %v256
    %260 = vmatprep.subr.bf16.mxu0 0
    %261 = vmatpush1.bf16.xpose.msra.mxu0 0
    %262 = vmatprep.subr.bf16.mxu0 0
    %263 = vmatpush1.bf16.xpose.msra.mxu0 0
    %264 = vmatprep.subr.bf16.mxu0 0
    %265 = vmatpush1.bf16.xpose.msra.mxu0 0
    %266 = vmatprep.subr.bf16.mxu0 0
    %267 = vmatpush1.bf16.xpose.msra.mxu0 0
    %268 = vmatprep.subr.bf16.mxu0 0
    %269 = vmatpush1.bf16.xpose.msra.mxu0 0
    %270 = vmatprep.subr.bf16.mxu0 0
    %271 = vmatpush1.bf16.xpose.msra.mxu0 0
    %272 = vmatprep.subr.bf16.mxu0 0
    %273 = vmatpush1.bf16.xpose.msra.mxu0 0
    %274 = vmatprep.subr.bf16.mxu0 0
    %275 = vmatpush1.bf16.xpose.msra.mxu0 0
    %276 = vmatprep.subr.bf16.mxu0 0
    %277 = vmatpush1.bf16.xpose.msra.mxu0 0
    %278 = vmatprep.subr.bf16.mxu0 0
    %279 = vmatpush1.bf16.xpose.msra.mxu0 0
    %280 = vmatprep.subr.bf16.mxu0 0
    %281 = vmatpush1.bf16.xpose.msra.mxu0 0
    %282 = vmatprep.subr.bf16.mxu0 0
    %283 = vmatpush1.bf16.xpose.msra.mxu0 0
    %284 = vmatprep.subr.bf16.mxu0 0
    %285 = vmatpush1.bf16.xpose.msra.mxu0 0
    %286 = vmatprep.subr.bf16.mxu0 0
    %287 = vmatpush1.bf16.xpose.msra.mxu0 0
    %288 = vmatprep.subr.bf16.mxu0 0
    %289 = vmatpush1.bf16.xpose.msra.mxu0 0
    %290 = vmatprep.mubr.bf16.mxu0 0
    %291 = vmatmul.mubr.bf16.gmra.mrb[0].mxu0 %v253
    %v292 = vpop.f32.mrb[0].mxu0
    %v293 = vadd.f32 0.0, %v292
    %v294 = vpop.f32.mrb[0].mxu0
    %v295 = vpop.f32.mrb[0].mxu0
    %v296 = vpop.f32.mrb[0].mxu0
    %297 = vdwg.mxu0
    %299 = vrot.lane.b32.xlu0 %v149, 96
    %v300 = vpop.permute.xlu0 %299
    %v302 = vsel %vm153, %v145, 0
    %v305 = vsel %vm153, %v300, 0
    %307 = vmatprep.subr.bf16.mxu0 0
    %308 = vmatpush1.bf16.xpose.msra.mxu0 %v305
    %309 = vmatprep.subr.bf16.mxu0 0
    %310 = vmatpush1.bf16.xpose.msra.mxu0 0
    %311 = vmatprep.subr.bf16.mxu0 0
    %312 = vmatpush1.bf16.xpose.msra.mxu0 0
    %313 = vmatprep.subr.bf16.mxu0 0
    %314 = vmatpush1.bf16.xpose.msra.mxu0 0
    %315 = vmatprep.subr.bf16.mxu0 0
    %316 = vmatpush1.bf16.xpose.msra.mxu0 0
    %317 = vmatprep.subr.bf16.mxu0 0
    %318 = vmatpush1.bf16.xpose.msra.mxu0 0
    %319 = vmatprep.subr.bf16.mxu0 0
    %320 = vmatpush1.bf16.xpose.msra.mxu0 0
    %321 = vmatprep.subr.bf16.mxu0 0
    %322 = vmatpush1.bf16.xpose.msra.mxu0 0
    %323 = vmatprep.subr.bf16.mxu0 0
    %324 = vmatpush1.bf16.xpose.msra.mxu0 0
    %325 = vmatprep.subr.bf16.mxu0 0
    %326 = vmatpush1.bf16.xpose.msra.mxu0 0
    %327 = vmatprep.subr.bf16.mxu0 0
    %328 = vmatpush1.bf16.xpose.msra.mxu0 0
    %329 = vmatprep.subr.bf16.mxu0 0
    %330 = vmatpush1.bf16.xpose.msra.mxu0 0
    %331 = vmatprep.subr.bf16.mxu0 0
    %332 = vmatpush1.bf16.xpose.msra.mxu0 0
    %333 = vmatprep.subr.bf16.mxu0 0
    %334 = vmatpush1.bf16.xpose.msra.mxu0 0
    %335 = vmatprep.subr.bf16.mxu0 0
    %336 = vmatpush1.bf16.xpose.msra.mxu0 0
    %337 = vmatprep.subr.bf16.mxu0 0
    %338 = vmatpush1.bf16.xpose.msra.mxu0 0
    %339 = vmatprep.mubr.bf16.mxu0 0
    %340 = vmatmul.mubr.bf16.gmra.mrb[0].mxu0 %v302
    %v341 = vpop.f32.mrb[0].mxu0
    %v342 = vadd.f32 0.0, %v341
    %v343 = vpop.f32.mrb[0].mxu0
    %v344 = vpop.f32.mrb[0].mxu0
    %v345 = vpop.f32.mrb[0].mxu0
    %346 = vdwg.mxu0
    %348 = vrot.lane.b32.xlu0 %v142, 120
    %v349 = vpop.permute.xlu0 %348
    %350 = vrot.lane.b32.xlu0 %v146, 88
    %v351 = vpop.permute.xlu0 %350
    %v353 = vsel %vm153, %v349, 0
    %v356 = vsel %vm153, %v351, 0
    %358 = vmatprep.subr.bf16.mxu0 0
    %359 = vmatpush1.bf16.xpose.msra.mxu0 %v356
    %360 = vmatprep.subr.bf16.mxu0 0
    %361 = vmatpush1.bf16.xpose.msra.mxu0 0
    %362 = vmatprep.subr.bf16.mxu0 0
    %363 = vmatpush1.bf16.xpose.msra.mxu0 0
    %364 = vmatprep.subr.bf16.mxu0 0
    %365 = vmatpush1.bf16.xpose.msra.mxu0 0
    %366 = vmatprep.subr.bf16.mxu0 0
    %367 = vmatpush1.bf16.xpose.msra.mxu0 0
    %368 = vmatprep.subr.bf16.mxu0 0
    %369 = vmatpush1.bf16.xpose.msra.mxu0 0
    %370 = vmatprep.subr.bf16.mxu0 0
    %371 = vmatpush1.bf16.xpose.msra.mxu0 0
    %372 = vmatprep.subr.bf16.mxu0 0
    %373 = vmatpush1.bf16.xpose.msra.mxu0 0
    %374 = vmatprep.subr.bf16.mxu0 0
    %375 = vmatpush1.bf16.xpose.msra.mxu0 0
    %376 = vmatprep.subr.bf16.mxu0 0
    %377 = vmatpush1.bf16.xpose.msra.mxu0 0
    %378 = vmatprep.subr.bf16.mxu0 0
    %379 = vmatpush1.bf16.xpose.msra.mxu0 0
    %380 = vmatprep.subr.bf16.mxu0 0
    %381 = vmatpush1.bf16.xpose.msra.mxu0 0
    %382 = vmatprep.subr.bf16.mxu0 0
    %383 = vmatpush1.bf16.xpose.msra.mxu0 0
    %384 = vmatprep.subr.bf16.mxu0 0
    %385 = vmatpush1.bf16.xpose.msra.mxu0 0
    %386 = vmatprep.subr.bf16.mxu0 0
    %387 = vmatpush1.bf16.xpose.msra.mxu0 0
    %388 = vmatprep.subr.bf16.mxu0 0
    %389 = vmatpush1.bf16.xpose.msra.mxu0 0
    %390 = vmatprep.mubr.bf16.mxu0 0
    %391 = vmatmul.mubr.bf16.gmra.mrb[0].mxu0 %v353
    %v392 = vpop.f32.mrb[0].mxu0
    %v393 = vadd.f32 0.0, %v392
    %v394 = vpop.f32.mrb[0].mxu0
    %v395 = vpop.f32.mrb[0].mxu0
    %v396 = vpop.f32.mrb[0].mxu0
    %397 = vdwg.mxu0
    %399 = vrot.lane.b32.xlu0 %v143, 120
    %v400 = vpop.permute.xlu0 %399
    %401 = vrot.lane.b32.xlu0 %v147, 88
    %v402 = vpop.permute.xlu0 %401
    %v404 = vsel %vm153, %v400, 0
    %v407 = vsel %vm153, %v402, 0
    %409 = vmatprep.subr.bf16.mxu0 0
    %410 = vmatpush1.bf16.xpose.msra.mxu0 %v407
    %411 = vmatprep.subr.bf16.mxu0 0
    %412 = vmatpush1.bf16.xpose.msra.mxu0 0
    %413 = vmatprep.subr.bf16.mxu0 0
    %414 = vmatpush1.bf16.xpose.msra.mxu0 0
    %415 = vmatprep.subr.bf16.mxu0 0
    %416 = vmatpush1.bf16.xpose.msra.mxu0 0
    %417 = vmatprep.subr.bf16.mxu0 0
    %418 = vmatpush1.bf16.xpose.msra.mxu0 0
    %419 = vmatprep.subr.bf16.mxu0 0
    %420 = vmatpush1.bf16.xpose.msra.mxu0 0
    %421 = vmatprep.subr.bf16.mxu0 0
    %422 = vmatpush1.bf16.xpose.msra.mxu0 0
    %423 = vmatprep.subr.bf16.mxu0 0
    %424 = vmatpush1.bf16.xpose.msra.mxu0 0
    %425 = vmatprep.subr.bf16.mxu0 0
    %426 = vmatpush1.bf16.xpose.msra.mxu0 0
    %427 = vmatprep.subr.bf16.mxu0 0
    %428 = vmatpush1.bf16.xpose.msra.mxu0 0
    %429 = vmatprep.subr.bf16.mxu0 0
    %430 = vmatpush1.bf16.xpose.msra.mxu0 0
    %431 = vmatprep.subr.bf16.mxu0 0
    %432 = vmatpush1.bf16.xpose.msra.mxu0 0
    %433 = vmatprep.subr.bf16.mxu0 0
    %434 = vmatpush1.bf16.xpose.msra.mxu0 0
    %435 = vmatprep.subr.bf16.mxu0 0
    %436 = vmatpush1.bf16.xpose.msra.mxu0 0
    %437 = vmatprep.subr.bf16.mxu0 0
    %438 = vmatpush1.bf16.xpose.msra.mxu0 0
    %439 = vmatprep.subr.bf16.mxu0 0
    %440 = vmatpush1.bf16.xpose.msra.mxu0 0
    %441 = vmatprep.mubr.bf16.mxu0 0
    %442 = vmatmul.mubr.bf16.gmra.mrb[0].mxu0 %v404
    %v443 = vpop.f32.mrb[0].mxu0
    %v444 = vadd.f32 0.0, %v443
    %v445 = vpop.f32.mrb[0].mxu0
    %v446 = vpop.f32.mrb[0].mxu0
    %v447 = vpop.f32.mrb[0].mxu0
    %448 = vdwg.mxu0
    %450 = vrot.lane.b32.xlu0 %v144, 120
    %v451 = vpop.permute.xlu0 %450
    %452 = vrot.lane.b32.xlu0 %v148, 88
    %v453 = vpop.permute.xlu0 %452
    %v455 = vsel %vm153, %v451, 0
    %v458 = vsel %vm153, %v453, 0
    %460 = vmatprep.subr.bf16.mxu0 0
    %461 = vmatpush1.bf16.xpose.msra.mxu0 %v458
    %462 = vmatprep.subr.bf16.mxu0 0
    %463 = vmatpush1.bf16.xpose.msra.mxu0 0
    %464 = vmatprep.subr.bf16.mxu0 0
    %465 = vmatpush1.bf16.xpose.msra.mxu0 0
    %466 = vmatprep.subr.bf16.mxu0 0
    %467 = vmatpush1.bf16.xpose.msra.mxu0 0
    %468 = vmatprep.subr.bf16.mxu0 0
    %469 = vmatpush1.bf16.xpose.msra.mxu0 0
    %470 = vmatprep.subr.bf16.mxu0 0
    %471 = vmatpush1.bf16.xpose.msra.mxu0 0
    %472 = vmatprep.subr.bf16.mxu0 0
    %473 = vmatpush1.bf16.xpose.msra.mxu0 0
    %474 = vmatprep.subr.bf16.mxu0 0
    %475 = vmatpush1.bf16.xpose.msra.mxu0 0
    %476 = vmatprep.subr.bf16.mxu0 0
    %477 = vmatpush1.bf16.xpose.msra.mxu0 0
    %478 = vmatprep.subr.bf16.mxu0 0
    %479 = vmatpush1.bf16.xpose.msra.mxu0 0
    %480 = vmatprep.subr.bf16.mxu0 0
    %481 = vmatpush1.bf16.xpose.msra.mxu0 0
    %482 = vmatprep.subr.bf16.mxu0 0
    %483 = vmatpush1.bf16.xpose.msra.mxu0 0
    %484 = vmatprep.subr.bf16.mxu0 0
    %485 = vmatpush1.bf16.xpose.msra.mxu0 0
    %486 = vmatprep.subr.bf16.mxu0 0
    %487 = vmatpush1.bf16.xpose.msra.mxu0 0
    %488 = vmatprep.subr.bf16.mxu0 0
    %489 = vmatpush1.bf16.xpose.msra.mxu0 0
    %490 = vmatprep.subr.bf16.mxu0 0
    %491 = vmatpush1.bf16.xpose.msra.mxu0 0
    %492 = vmatprep.mubr.bf16.mxu0 0
    %493 = vmatmul.mubr.bf16.gmra.mrb[0].mxu0 %v455
    %v494 = vpop.f32.mrb[0].mxu0
    %v495 = vadd.f32 0.0, %v494
    %v496 = vpop.f32.mrb[0].mxu0
    %v497 = vpop.f32.mrb[0].mxu0
    %v498 = vpop.f32.mrb[0].mxu0
    %499 = vdwg.mxu0
    %501 = vrot.lane.b32.xlu0 %v145, 120
    %v502 = vpop.permute.xlu0 %501
    %503 = vrot.lane.b32.xlu0 %v149, 88
    %v504 = vpop.permute.xlu0 %503
    %v506 = vsel %vm153, %v502, 0
    %v509 = vsel %vm153, %v504, 0
    %511 = vmatprep.subr.bf16.mxu0 0
    %512 = vmatpush1.bf16.xpose.msra.mxu0 %v509
    %513 = vmatprep.subr.bf16.mxu0 0
    %514 = vmatpush1.bf16.xpose.msra.mxu0 0
    %515 = vmatprep.subr.bf16.mxu0 0
    %516 = vmatpush1.bf16.xpose.msra.mxu0 0
    %517 = vmatprep.subr.bf16.mxu0 0
    %518 = vmatpush1.bf16.xpose.msra.mxu0 0
    %519 = vmatprep.subr.bf16.mxu0 0
    %520 = vmatpush1.bf16.xpose.msra.mxu0 0
    %521 = vmatprep.subr.bf16.mxu0 0
    %522 = vmatpush1.bf16.xpose.msra.mxu0 0
    %523 = vmatprep.subr.bf16.mxu0 0
    %524 = vmatpush1.bf16.xpose.msra.mxu0 0
    %525 = vmatprep.subr.bf16.mxu0 0
    %526 = vmatpush1.bf16.xpose.msra.mxu0 0
    %527 = vmatprep.subr.bf16.mxu0 0
    %528 = vmatpush1.bf16.xpose.msra.mxu0 0
    %529 = vmatprep.subr.bf16.mxu0 0
    %530 = vmatpush1.bf16.xpose.msra.mxu0 0
    %531 = vmatprep.subr.bf16.mxu0 0
    %532 = vmatpush1.bf16.xpose.msra.mxu0 0
    %533 = vmatprep.subr.bf16.mxu0 0
    %534 = vmatpush1.bf16.xpose.msra.mxu0 0
    %535 = vmatprep.subr.bf16.mxu0 0
    %536 = vmatpush1.bf16.xpose.msra.mxu0 0
    %537 = vmatprep.subr.bf16.mxu0 0
    %538 = vmatpush1.bf16.xpose.msra.mxu0 0
    %539 = vmatprep.subr.bf16.mxu0 0
    %540 = vmatpush1.bf16.xpose.msra.mxu0 0
    %541 = vmatprep.subr.bf16.mxu0 0
    %542 = vmatpush1.bf16.xpose.msra.mxu0 0
    %543 = vmatprep.mubr.bf16.mxu0 0
    %544 = vmatmul.mubr.bf16.gmra.mrb[0].mxu0 %v506
    %v545 = vpop.f32.mrb[0].mxu0
    %v546 = vadd.f32 0.0, %v545
    %v547 = vpop.f32.mrb[0].mxu0
    %v548 = vpop.f32.mrb[0].mxu0
    %v549 = vpop.f32.mrb[0].mxu0
    %550 = vdwg.mxu0
    %551 = vrot.lane.b32.xlu0 %v142, 112
    %v552 = vpop.permute.xlu0 %551
    %553 = vrot.lane.b32.xlu0 %v146, 80
    %v554 = vpop.permute.xlu0 %553
    %v556 = vsel %vm153, %v552, 0
    %v559 = vsel %vm153, %v554, 0
    %561 = vmatprep.subr.bf16.mxu0 0
    %562 = vmatpush1.bf16.xpose.msra.mxu0 %v559
    %563 = vmatprep.subr.bf16.mxu0 0
    %564 = vmatpush1.bf16.xpose.msra.mxu0 0
    %565 = vmatprep.subr.bf16.mxu0 0
    %566 = vmatpush1.bf16.xpose.msra.mxu0 0
    %567 = vmatprep.subr.bf16.mxu0 0
    %568 = vmatpush1.bf16.xpose.msra.mxu0 0
    %569 = vmatprep.subr.bf16.mxu0 0
    %570 = vmatpush1.bf16.xpose.msra.mxu0 0
    %571 = vmatprep.subr.bf16.mxu0 0
    %572 = vmatpush1.bf16.xpose.msra.mxu0 0
    %573 = vmatprep.subr.bf16.mxu0 0
    %574 = vmatpush1.bf16.xpose.msra.mxu0 0
    %575 = vmatprep.subr.bf16.mxu0 0
    %576 = vmatpush1.bf16.xpose.msra.mxu0 0
    %577 = vmatprep.subr.bf16.mxu0 0
    %578 = vmatpush1.bf16.xpose.msra.mxu0 0
    %579 = vmatprep.subr.bf16.mxu0 0
    %580 = vmatpush1.bf16.xpose.msra.mxu0 0
    %581 = vmatprep.subr.bf16.mxu0 0
    %582 = vmatpush1.bf16.xpose.msra.mxu0 0
    %583 = vmatprep.subr.bf16.mxu0 0
    %584 = vmatpush1.bf16.xpose.msra.mxu0 0
    %585 = vmatprep.subr.bf16.mxu0 0
    %586 = vmatpush1.bf16.xpose.msra.mxu0 0
    %587 = vmatprep.subr.bf16.mxu0 0
    %588 = vmatpush1.bf16.xpose.msra.mxu0 0
    %589 = vmatprep.subr.bf16.mxu0 0
    %590 = vmatpush1.bf16.xpose.msra.mxu0 0
    %591 = vmatprep.subr.bf16.mxu0 0
    %592 = vmatpush1.bf16.xpose.msra.mxu0 0
    %593 = vmatprep.mubr.bf16.mxu0 0
    %594 = vmatmul.mubr.bf16.gmra.mrb[0].mxu0 %v556
    %v595 = vpop.f32.mrb[0].mxu0
    %v596 = vadd.f32 0.0, %v595
    %v597 = vpop.f32.mrb[0].mxu0
    %v598 = vpop.f32.mrb[0].mxu0
    %v599 = vpop.f32.mrb[0].mxu0
    %600 = vdwg.mxu0
    %601 = vrot.lane.b32.xlu0 %v143, 112
    %v602 = vpop.permute.xlu0 %601
    %603 = vrot.lane.b32.xlu0 %v147, 80
    %v604 = vpop.permute.xlu0 %603
    %v606 = vsel %vm153, %v602, 0
    %v609 = vsel %vm153, %v604, 0
    %611 = vmatprep.subr.bf16.mxu0 0
    %612 = vmatpush1.bf16.xpose.msra.mxu0 %v609
    %613 = vmatprep.subr.bf16.mxu0 0
    %614 = vmatpush1.bf16.xpose.msra.mxu0 0
    %615 = vmatprep.subr.bf16.mxu0 0
    %616 = vmatpush1.bf16.xpose.msra.mxu0 0
    %617 = vmatprep.subr.bf16.mxu0 0
    %618 = vmatpush1.bf16.xpose.msra.mxu0 0
    %619 = vmatprep.subr.bf16.mxu0 0
    %620 = vmatpush1.bf16.xpose.msra.mxu0 0
    %621 = vmatprep.subr.bf16.mxu0 0
    %622 = vmatpush1.bf16.xpose.msra.mxu0 0
    %623 = vmatprep.subr.bf16.mxu0 0
    %624 = vmatpush1.bf16.xpose.msra.mxu0 0
    %625 = vmatprep.subr.bf16.mxu0 0
    %626 = vmatpush1.bf16.xpose.msra.mxu0 0
    %627 = vmatprep.subr.bf16.mxu0 0
    %628 = vmatpush1.bf16.xpose.msra.mxu0 0
    %629 = vmatprep.subr.bf16.mxu0 0
    %630 = vmatpush1.bf16.xpose.msra.mxu0 0
    %631 = vmatprep.subr.bf16.mxu0 0
    %632 = vmatpush1.bf16.xpose.msra.mxu0 0
    %633 = vmatprep.subr.bf16.mxu0 0
    %634 = vmatpush1.bf16.xpose.msra.mxu0 0
    %635 = vmatprep.subr.bf16.mxu0 0
    %636 = vmatpush1.bf16.xpose.msra.mxu0 0
    %637 = vmatprep.subr.bf16.mxu0 0
    %638 = vmatpush1.bf16.xpose.msra.mxu0 0
    %639 = vmatprep.subr.bf16.mxu0 0
    %640 = vmatpush1.bf16.xpose.msra.mxu0 0
    %641 = vmatprep.subr.bf16.mxu0 0
    %642 = vmatpush1.bf16.xpose.msra.mxu0 0
    %643 = vmatprep.mubr.bf16.mxu0 0
    %644 = vmatmul.mubr.bf16.gmra.mrb[0].mxu0 %v606
    %v645 = vpop.f32.mrb[0].mxu0
    %v646 = vadd.f32 0.0, %v645
    %v647 = vpop.f32.mrb[0].mxu0
    %v648 = vpop.f32.mrb[0].mxu0
    %v649 = vpop.f32.mrb[0].mxu0
    %650 = vdwg.mxu0
    %651 = vrot.lane.b32.xlu0 %v144, 112
    %v652 = vpop.permute.xlu0 %651
    %653 = vrot.lane.b32.xlu0 %v148, 80
    %v654 = vpop.permute.xlu0 %653
    %v656 = vsel %vm153, %v652, 0
    %v659 = vsel %vm153, %v654, 0
    %661 = vmatprep.subr.bf16.mxu0 0
    %662 = vmatpush1.bf16.xpose.msra.mxu0 %v659
    %663 = vmatprep.subr.bf16.mxu0 0
    %664 = vmatpush1.bf16.xpose.msra.mxu0 0
    %665 = vmatprep.subr.bf16.mxu0 0
    %666 = vmatpush1.bf16.xpose.msra.mxu0 0
    %667 = vmatprep.subr.bf16.mxu0 0
    %668 = vmatpush1.bf16.xpose.msra.mxu0 0
    %669 = vmatprep.subr.bf16.mxu0 0
    %670 = vmatpush1.bf16.xpose.msra.mxu0 0
    %671 = vmatprep.subr.bf16.mxu0 0
    %672 = vmatpush1.bf16.xpose.msra.mxu0 0
    %673 = vmatprep.subr.bf16.mxu0 0
    %674 = vmatpush1.bf16.xpose.msra.mxu0 0
    %675 = vmatprep.subr.bf16.mxu0 0
    %676 = vmatpush1.bf16.xpose.msra.mxu0 0
    %677 = vmatprep.subr.bf16.mxu0 0
    %678 = vmatpush1.bf16.xpose.msra.mxu0 0
    %679 = vmatprep.subr.bf16.mxu0 0
    %680 = vmatpush1.bf16.xpose.msra.mxu0 0
    %681 = vmatprep.subr.bf16.mxu0 0
    %682 = vmatpush1.bf16.xpose.msra.mxu0 0
    %683 = vmatprep.subr.bf16.mxu0 0
    %684 = vmatpush1.bf16.xpose.msra.mxu0 0
    %685 = vmatprep.subr.bf16.mxu0 0
    %686 = vmatpush1.bf16.xpose.msra.mxu0 0
    %687 = vmatprep.subr.bf16.mxu0 0
    %688 = vmatpush1.bf16.xpose.msra.mxu0 0
    %689 = vmatprep.subr.bf16.mxu0 0
    %690 = vmatpush1.bf16.xpose.msra.mxu0 0
    %691 = vmatprep.subr.bf16.mxu0 0
    %692 = vmatpush1.bf16.xpose.msra.mxu0 0
    %693 = vmatprep.mubr.bf16.mxu0 0
    %694 = vmatmul.mubr.bf16.gmra.mrb[0].mxu0 %v656
    %v695 = vpop.f32.mrb[0].mxu0
    %v696 = vadd.f32 0.0, %v695
    %v697 = vpop.f32.mrb[0].mxu0
    %v698 = vpop.f32.mrb[0].mxu0
    %v699 = vpop.f32.mrb[0].mxu0
    %700 = vdwg.mxu0
    %701 = vrot.lane.b32.xlu0 %v145, 112
    %v702 = vpop.permute.xlu0 %701
    %703 = vrot.lane.b32.xlu0 %v149, 80
    %v704 = vpop.permute.xlu0 %703
    %v706 = vsel %vm153, %v702, 0
    %v709 = vsel %vm153, %v704, 0
    %711 = vmatprep.subr.bf16.mxu0 0
    %712 = vmatpush1.bf16.xpose.msra.mxu0 %v709
    %713 = vmatprep.subr.bf16.mxu0 0
    %714 = vmatpush1.bf16.xpose.msra.mxu0 0
    %715 = vmatprep.subr.bf16.mxu0 0
    %716 = vmatpush1.bf16.xpose.msra.mxu0 0
    %717 = vmatprep.subr.bf16.mxu0 0
    %718 = vmatpush1.bf16.xpose.msra.mxu0 0
    %719 = vmatprep.subr.bf16.mxu0 0
    %720 = vmatpush1.bf16.xpose.msra.mxu0 0
    %721 = vmatprep.subr.bf16.mxu0 0
    %722 = vmatpush1.bf16.xpose.msra.mxu0 0
    %723 = vmatprep.subr.bf16.mxu0 0
    %724 = vmatpush1.bf16.xpose.msra.mxu0 0
    %725 = vmatprep.subr.bf16.mxu0 0
    %726 = vmatpush1.bf16.xpose.msra.mxu0 0
    %727 = vmatprep.subr.bf16.mxu0 0
    %728 = vmatpush1.bf16.xpose.msra.mxu0 0
    %729 = vmatprep.subr.bf16.mxu0 0
    %730 = vmatpush1.bf16.xpose.msra.mxu0 0
    %731 = vmatprep.subr.bf16.mxu0 0
    %732 = vmatpush1.bf16.xpose.msra.mxu0 0
    %733 = vmatprep.subr.bf16.mxu0 0
    %734 = vmatpush1.bf16.xpose.msra.mxu0 0
    %735 = vmatprep.subr.bf16.mxu0 0
    %736 = vmatpush1.bf16.xpose.msra.mxu0 0
    %737 = vmatprep.subr.bf16.mxu0 0
    %738 = vmatpush1.bf16.xpose.msra.mxu0 0
    %739 = vmatprep.subr.bf16.mxu0 0
    %740 = vmatpush1.bf16.xpose.msra.mxu0 0
    %741 = vmatprep.subr.bf16.mxu0 0
    %742 = vmatpush1.bf16.xpose.msra.mxu0 0
    %743 = vmatprep.mubr.bf16.mxu0 0
    %744 = vmatmul.mubr.bf16.gmra.mrb[0].mxu0 %v706
    %v745 = vpop.f32.mrb[0].mxu0
    %v746 = vadd.f32 0.0, %v745
    %v747 = vpop.f32.mrb[0].mxu0
    %v748 = vpop.f32.mrb[0].mxu0
    %v749 = vpop.f32.mrb[0].mxu0
    %750 = vdwg.mxu0
    %751 = vrot.lane.b32.xlu0 %v142, 104
    %v752 = vpop.permute.xlu0 %751
    %753 = vrot.lane.b32.xlu0 %v146, 72
    %v754 = vpop.permute.xlu0 %753
    %v756 = vsel %vm153, %v752, 0
    %v759 = vsel %vm153, %v754, 0
    %761 = vmatprep.subr.bf16.mxu0 0
    %762 = vmatpush1.bf16.xpose.msra.mxu0 %v759
    %763 = vmatprep.subr.bf16.mxu0 0
    %764 = vmatpush1.bf16.xpose.msra.mxu0 0
    %765 = vmatprep.subr.bf16.mxu0 0
    %766 = vmatpush1.bf16.xpose.msra.mxu0 0
    %767 = vmatprep.subr.bf16.mxu0 0
    %768 = vmatpush1.bf16.xpose.msra.mxu0 0
    %769 = vmatprep.subr.bf16.mxu0 0
    %770 = vmatpush1.bf16.xpose.msra.mxu0 0
    %771 = vmatprep.subr.bf16.mxu0 0
    %772 = vmatpush1.bf16.xpose.msra.mxu0 0
    %773 = vmatprep.subr.bf16.mxu0 0
    %774 = vmatpush1.bf16.xpose.msra.mxu0 0
    %775 = vmatprep.subr.bf16.mxu0 0
    %776 = vmatpush1.bf16.xpose.msra.mxu0 0
    %777 = vmatprep.subr.bf16.mxu0 0
    %778 = vmatpush1.bf16.xpose.msra.mxu0 0
    %779 = vmatprep.subr.bf16.mxu0 0
    %780 = vmatpush1.bf16.xpose.msra.mxu0 0
    %781 = vmatprep.subr.bf16.mxu0 0
    %782 = vmatpush1.bf16.xpose.msra.mxu0 0
    %783 = vmatprep.subr.bf16.mxu0 0
    %784 = vmatpush1.bf16.xpose.msra.mxu0 0
    %785 = vmatprep.subr.bf16.mxu0 0
    %786 = vmatpush1.bf16.xpose.msra.mxu0 0
    %787 = vmatprep.subr.bf16.mxu0 0
    %788 = vmatpush1.bf16.xpose.msra.mxu0 0
    %789 = vmatprep.subr.bf16.mxu0 0
    %790 = vmatpush1.bf16.xpose.msra.mxu0 0
    %791 = vmatprep.subr.bf16.mxu0 0
    %792 = vmatpush1.bf16.xpose.msra.mxu0 0
    %793 = vmatprep.mubr.bf16.mxu0 0
    %794 = vmatmul.mubr.bf16.gmra.mrb[0].mxu0 %v756
    %v795 = vpop.f32.mrb[0].mxu0
    %v796 = vadd.f32 0.0, %v795
    %v797 = vpop.f32.mrb[0].mxu0
    %v798 = vpop.f32.mrb[0].mxu0
    %v799 = vpop.f32.mrb[0].mxu0
    %800 = vdwg.mxu0
    %801 = vrot.lane.b32.xlu0 %v143, 104
    %v802 = vpop.permute.xlu0 %801
    %803 = vrot.lane.b32.xlu0 %v147, 72
    %v804 = vpop.permute.xlu0 %803
    %v806 = vsel %vm153, %v802, 0
    %v809 = vsel %vm153, %v804, 0
    %811 = vmatprep.subr.bf16.mxu0 0
    %812 = vmatpush1.bf16.xpose.msra.mxu0 %v809
    %813 = vmatprep.subr.bf16.mxu0 0
    %814 = vmatpush1.bf16.xpose.msra.mxu0 0
    %815 = vmatprep.subr.bf16.mxu0 0
    %816 = vmatpush1.bf16.xpose.msra.mxu0 0
    %817 = vmatprep.subr.bf16.mxu0 0
    %818 = vmatpush1.bf16.xpose.msra.mxu0 0
    %819 = vmatprep.subr.bf16.mxu0 0
    %820 = vmatpush1.bf16.xpose.msra.mxu0 0
    %821 = vmatprep.subr.bf16.mxu0 0
    %822 = vmatpush1.bf16.xpose.msra.mxu0 0
    %823 = vmatprep.subr.bf16.mxu0 0
    %824 = vmatpush1.bf16.xpose.msra.mxu0 0
    %825 = vmatprep.subr.bf16.mxu0 0
    %826 = vmatpush1.bf16.xpose.msra.mxu0 0
    %827 = vmatprep.subr.bf16.mxu0 0
    %828 = vmatpush1.bf16.xpose.msra.mxu0 0
    %829 = vmatprep.subr.bf16.mxu0 0
    %830 = vmatpush1.bf16.xpose.msra.mxu0 0
    %831 = vmatprep.subr.bf16.mxu0 0
    %832 = vmatpush1.bf16.xpose.msra.mxu0 0
    %833 = vmatprep.subr.bf16.mxu0 0
    %834 = vmatpush1.bf16.xpose.msra.mxu0 0
    %835 = vmatprep.subr.bf16.mxu0 0
    %836 = vmatpush1.bf16.xpose.msra.mxu0 0
    %837 = vmatprep.subr.bf16.mxu0 0
    %838 = vmatpush1.bf16.xpose.msra.mxu0 0
    %839 = vmatprep.subr.bf16.mxu0 0
    %840 = vmatpush1.bf16.xpose.msra.mxu0 0
    %841 = vmatprep.subr.bf16.mxu0 0
    %842 = vmatpush1.bf16.xpose.msra.mxu0 0
    %843 = vmatprep.mubr.bf16.mxu0 0
    %844 = vmatmul.mubr.bf16.gmra.mrb[0].mxu0 %v806
    %v845 = vpop.f32.mrb[0].mxu0
    %v846 = vadd.f32 0.0, %v845
    %v847 = vpop.f32.mrb[0].mxu0
    %v848 = vpop.f32.mrb[0].mxu0
    %v849 = vpop.f32.mrb[0].mxu0
    %850 = vdwg.mxu0
    %851 = vrot.lane.b32.xlu0 %v144, 104
    %v852 = vpop.permute.xlu0 %851
    %853 = vrot.lane.b32.xlu0 %v148, 72
    %v854 = vpop.permute.xlu0 %853
    %v856 = vsel %vm153, %v852, 0
    %v859 = vsel %vm153, %v854, 0
    %861 = vmatprep.subr.bf16.mxu0 0
    %862 = vmatpush1.bf16.xpose.msra.mxu0 %v859
    %863 = vmatprep.subr.bf16.mxu0 0
    %864 = vmatpush1.bf16.xpose.msra.mxu0 0
    %865 = vmatprep.subr.bf16.mxu0 0
    %866 = vmatpush1.bf16.xpose.msra.mxu0 0
    %867 = vmatprep.subr.bf16.mxu0 0
    %868 = vmatpush1.bf16.xpose.msra.mxu0 0
    %869 = vmatprep.subr.bf16.mxu0 0
    %870 = vmatpush1.bf16.xpose.msra.mxu0 0
    %871 = vmatprep.subr.bf16.mxu0 0
    %872 = vmatpush1.bf16.xpose.msra.mxu0 0
    %873 = vmatprep.subr.bf16.mxu0 0
    %874 = vmatpush1.bf16.xpose.msra.mxu0 0
    %875 = vmatprep.subr.bf16.mxu0 0
    %876 = vmatpush1.bf16.xpose.msra.mxu0 0
    %877 = vmatprep.subr.bf16.mxu0 0
    %878 = vmatpush1.bf16.xpose.msra.mxu0 0
    %879 = vmatprep.subr.bf16.mxu0 0
    %880 = vmatpush1.bf16.xpose.msra.mxu0 0
    %881 = vmatprep.subr.bf16.mxu0 0
    %882 = vmatpush1.bf16.xpose.msra.mxu0 0
    %883 = vmatprep.subr.bf16.mxu0 0
    %884 = vmatpush1.bf16.xpose.msra.mxu0 0
    %885 = vmatprep.subr.bf16.mxu0 0
    %886 = vmatpush1.bf16.xpose.msra.mxu0 0
    %887 = vmatprep.subr.bf16.mxu0 0
    %888 = vmatpush1.bf16.xpose.msra.mxu0 0
    %889 = vmatprep.subr.bf16.mxu0 0
    %890 = vmatpush1.bf16.xpose.msra.mxu0 0
    %891 = vmatprep.subr.bf16.mxu0 0
    %892 = vmatpush1.bf16.xpose.msra.mxu0 0
    %893 = vmatprep.mubr.bf16.mxu0 0
    %894 = vmatmul.mubr.bf16.gmra.mrb[0].mxu0 %v856
    %v895 = vpop.f32.mrb[0].mxu0
    %v896 = vadd.f32 0.0, %v895
    %v897 = vpop.f32.mrb[0].mxu0
    %v898 = vpop.f32.mrb[0].mxu0
    %v899 = vpop.f32.mrb[0].mxu0
    %900 = vdwg.mxu0
    %901 = vrot.lane.b32.xlu0 %v145, 104
    %v902 = vpop.permute.xlu0 %901
    %903 = vrot.lane.b32.xlu0 %v149, 72
    %v904 = vpop.permute.xlu0 %903
    %v906 = vsel %vm153, %v902, 0
    %v909 = vsel %vm153, %v904, 0
    %911 = vmatprep.subr.bf16.mxu0 0
    %912 = vmatpush1.bf16.xpose.msra.mxu0 %v909
    %913 = vmatprep.subr.bf16.mxu0 0
    %914 = vmatpush1.bf16.xpose.msra.mxu0 0
    %915 = vmatprep.subr.bf16.mxu0 0
    %916 = vmatpush1.bf16.xpose.msra.mxu0 0
    %917 = vmatprep.subr.bf16.mxu0 0
    %918 = vmatpush1.bf16.xpose.msra.mxu0 0
    %919 = vmatprep.subr.bf16.mxu0 0
    %920 = vmatpush1.bf16.xpose.msra.mxu0 0
    %921 = vmatprep.subr.bf16.mxu0 0
    %922 = vmatpush1.bf16.xpose.msra.mxu0 0
    %923 = vmatprep.subr.bf16.mxu0 0
    %924 = vmatpush1.bf16.xpose.msra.mxu0 0
    %925 = vmatprep.subr.bf16.mxu0 0
    %926 = vmatpush1.bf16.xpose.msra.mxu0 0
    %927 = vmatprep.subr.bf16.mxu0 0
    %928 = vmatpush1.bf16.xpose.msra.mxu0 0
    %929 = vmatprep.subr.bf16.mxu0 0
    %930 = vmatpush1.bf16.xpose.msra.mxu0 0
    %931 = vmatprep.subr.bf16.mxu0 0
    %932 = vmatpush1.bf16.xpose.msra.mxu0 0
    %933 = vmatprep.subr.bf16.mxu0 0
    %934 = vmatpush1.bf16.xpose.msra.mxu0 0
    %935 = vmatprep.subr.bf16.mxu0 0
    %936 = vmatpush1.bf16.xpose.msra.mxu0 0
    %937 = vmatprep.subr.bf16.mxu0 0
    %938 = vmatpush1.bf16.xpose.msra.mxu0 0
    %939 = vmatprep.subr.bf16.mxu0 0
    %940 = vmatpush1.bf16.xpose.msra.mxu0 0
    %941 = vmatprep.subr.bf16.mxu0 0
    %942 = vmatpush1.bf16.xpose.msra.mxu0 0
    %943 = vmatprep.mubr.bf16.mxu0 0
    %944 = vmatmul.mubr.bf16.gmra.mrb[0].mxu0 %v906
    %v945 = vpop.f32.mrb[0].mxu0
    %v946 = vadd.f32 0.0, %v945
    %v947 = vpop.f32.mrb[0].mxu0
    %v948 = vpop.f32.mrb[0].mxu0
    %v949 = vpop.f32.mrb[0].mxu0
    %950 = vdwg.mxu0
    %v951 = vld [vmem:[#allocation2] sm:$0xff]
    %v952 = vadd.f32 %v195, %v951
    %v953 = vadd.f32 %v244, %v951
    %v954 = vadd.f32 %v293, %v951
    %v955 = vadd.f32 %v342, %v951
    %v956 = vadd.f32 %v393, %v951
    %v957 = vadd.f32 %v444, %v951
    %v958 = vadd.f32 %v495, %v951
    %v959 = vadd.f32 %v546, %v951
    %v960 = vadd.f32 %v596, %v951
    %v961 = vadd.f32 %v646, %v951
    %v962 = vadd.f32 %v696, %v951
    %v963 = vadd.f32 %v746, %v951
    %v964 = vadd.f32 %v796, %v951
    %v965 = vadd.f32 %v846, %v951
    %v966 = vadd.f32 %v896, %v951
    %v967 = vadd.f32 %v946, %v951
    %v968 = vsel %vm153, %v952, -inf
    %969 = vmax.xlane.f32.xlu0 %v968
    %v970 = vpop.xlane.xlu0 %969
    %v971 = vsel %vm153, %v953, -inf
    %972 = vmax.xlane.f32.xlu0 %v971
    %v973 = vpop.xlane.xlu0 %972
    %v974 = vsel %vm153, %v954, -inf
    %975 = vmax.xlane.f32.xlu0 %v974
    %v976 = vpop.xlane.xlu0 %975
    %v977 = vsel %vm153, %v955, -inf
    %978 = vmax.xlane.f32.xlu0 %v977
    %v979 = vpop.xlane.xlu0 %978
    %v980 = vsel %vm153, %v956, -inf
    %981 = vmax.xlane.f32.xlu0 %v980
    %v982 = vpop.xlane.xlu0 %981
    %v983 = vsel %vm153, %v957, -inf
    %984 = vmax.xlane.f32.xlu0 %v983
    %v985 = vpop.xlane.xlu0 %984
    %v986 = vsel %vm153, %v958, -inf
    %987 = vmax.xlane.f32.xlu0 %v986
    %v988 = vpop.xlane.xlu0 %987
    %v989 = vsel %vm153, %v959, -inf
    %990 = vmax.xlane.f32.xlu0 %v989
    %v991 = vpop.xlane.xlu0 %990
    %v992 = vsel %vm153, %v960, -inf
    %993 = vmax.xlane.f32.xlu0 %v992
    %v994 = vpop.xlane.xlu0 %993
    %v995 = vsel %vm153, %v961, -inf
    %996 = vmax.xlane.f32.xlu0 %v995
    %v997 = vpop.xlane.xlu0 %996
    %v998 = vsel %vm153, %v962, -inf
    %999 = vmax.xlane.f32.xlu0 %v998
    %v1000 = vpop.xlane.xlu0 %999
    %v1001 = vsel %vm153, %v963, -inf
    %1002 = vmax.xlane.f32.xlu0 %v1001
    %v1003 = vpop.xlane.xlu0 %1002
    %v1004 = vsel %vm153, %v964, -inf
    %1005 = vmax.xlane.f32.xlu0 %v1004
    %v1006 = vpop.xlane.xlu0 %1005
    %v1007 = vsel %vm153, %v965, -inf
    %1008 = vmax.xlane.f32.xlu0 %v1007
    %v1009 = vpop.xlane.xlu0 %1008
    %v1010 = vsel %vm153, %v966, -inf
    %1011 = vmax.xlane.f32.xlu0 %v1010
    %v1012 = vpop.xlane.xlu0 %1011
    %v1013 = vsel %vm153, %v967, -inf
    %1014 = vmax.xlane.f32.xlu0 %v1013
    %v1015 = vpop.xlane.xlu0 %1014
    %v1016 = vsub.f32 %v952, %v970
    %v1017 = vsub.f32 %v953, %v973
    %v1018 = vsub.f32 %v954, %v976
    %v1019 = vsub.f32 %v955, %v979
    %v1020 = vsub.f32 %v956, %v982
    %v1021 = vsub.f32 %v957, %v985
    %v1022 = vsub.f32 %v958, %v988
    %v1023 = vsub.f32 %v959, %v991
    %v1024 = vsub.f32 %v960, %v994
    %v1025 = vsub.f32 %v961, %v997
    %v1026 = vsub.f32 %v962, %v1000
    %v1027 = vsub.f32 %v963, %v1003
    %v1028 = vsub.f32 %v964, %v1006
    %v1029 = vsub.f32 %v965, %v1009
    %v1030 = vsub.f32 %v966, %v1012
    %v1031 = vsub.f32 %v967, %v1015
    %v1032 = vmul.f32 %v1016, 1.442695
    %v1033 = vpow.pop %v1032
    %v1034 = vmul.f32 %v1017, 1.442695
    %v1035 = vpow.pop %v1034
    %v1036 = vmul.f32 %v1018, 1.442695
    %v1037 = vpow.pop %v1036
    %v1038 = vmul.f32 %v1019, 1.442695
    %v1039 = vpow.pop %v1038
    %v1040 = vmul.f32 %v1020, 1.442695
    %v1041 = vpow.pop %v1040
    %v1042 = vmul.f32 %v1021, 1.442695
    %v1043 = vpow.pop %v1042
    %v1044 = vmul.f32 %v1022, 1.442695
    %v1045 = vpow.pop %v1044
    %v1046 = vmul.f32 %v1023, 1.442695
    %v1047 = vpow.pop %v1046
    %v1048 = vmul.f32 %v1024, 1.442695
    %v1049 = vpow.pop %v1048
    %v1050 = vmul.f32 %v1025, 1.442695
    %v1051 = vpow.pop %v1050
    %v1052 = vmul.f32 %v1026, 1.442695
    %v1053 = vpow.pop %v1052
    %v1054 = vmul.f32 %v1027, 1.442695
    %v1055 = vpow.pop %v1054
    %v1056 = vmul.f32 %v1028, 1.442695
    %v1057 = vpow.pop %v1056
    %v1058 = vmul.f32 %v1029, 1.442695
    %v1059 = vpow.pop %v1058
    %v1060 = vmul.f32 %v1030, 1.442695
    %v1061 = vpow.pop %v1060
    %v1062 = vmul.f32 %v1031, 1.442695
    %v1063 = vpow.pop %v1062
    %v1064 = vsel %vm153, %v1033, 0.0
    %1065 = vadd.xlane.f32.xlu0 %v1064
    %v1066 = vpop.xlane.xlu0 %1065
    %v1067 = vsel %vm153, %v1035, 0.0
    %1068 = vadd.xlane.f32.xlu0 %v1067
    %v1069 = vpop.xlane.xlu0 %1068
    %v1070 = vsel %vm153, %v1037, 0.0
    %1071 = vadd.xlane.f32.xlu0 %v1070
    %v1072 = vpop.xlane.xlu0 %1071
    %v1073 = vsel %vm153, %v1039, 0.0
    %1074 = vadd.xlane.f32.xlu0 %v1073
    %v1075 = vpop.xlane.xlu0 %1074
    %v1076 = vsel %vm153, %v1041, 0.0
    %1077 = vadd.xlane.f32.xlu0 %v1076
    %v1078 = vpop.xlane.xlu0 %1077
    %v1079 = vsel %vm153, %v1043, 0.0
    %1080 = vadd.xlane.f32.xlu0 %v1079
    %v1081 = vpop.xlane.xlu0 %1080
    %v1082 = vsel %vm153, %v1045, 0.0
    %1083 = vadd.xlane.f32.xlu0 %v1082
    %v1084 = vpop.xlane.xlu0 %1083
    %v1085 = vsel %vm153, %v1047, 0.0
    %1086 = vadd.xlane.f32.xlu0 %v1085
    %v1087 = vpop.xlane.xlu0 %1086
    %v1088 = vsel %vm153, %v1049, 0.0
    %1089 = vadd.xlane.f32.xlu0 %v1088
    %v1090 = vpop.xlane.xlu0 %1089
    %v1091 = vsel %vm153, %v1051, 0.0
    %1092 = vadd.xlane.f32.xlu0 %v1091
    %v1093 = vpop.xlane.xlu0 %1092
    %v1094 = vsel %vm153, %v1053, 0.0
    %1095 = vadd.xlane.f32.xlu0 %v1094
    %v1096 = vpop.xlane.xlu0 %1095
    %v1097 = vsel %vm153, %v1055, 0.0
    %1098 = vadd.xlane.f32.xlu0 %v1097
    %v1099 = vpop.xlane.xlu0 %1098
    %v1100 = vsel %vm153, %v1057, 0.0
    %1101 = vadd.xlane.f32.xlu0 %v1100
    %v1102 = vpop.xlane.xlu0 %1101
    %v1103 = vsel %vm153, %v1059, 0.0
    %1104 = vadd.xlane.f32.xlu0 %v1103
    %v1105 = vpop.xlane.xlu0 %1104
    %v1106 = vsel %vm153, %v1061, 0.0
    %1107 = vadd.xlane.f32.xlu0 %v1106
    %v1108 = vpop.xlane.xlu0 %1107
    %v1109 = vsel %vm153, %v1063, 0.0
    %1110 = vadd.xlane.f32.xlu0 %v1109
    %v1111 = vpop.xlane.xlu0 %1110
    %v1112 = vrcp.pop %v1066
    %v1113 = vrcp.pop %v1069
    %v1114 = vrcp.pop %v1072
    %v1115 = vrcp.pop %v1075
    %v1116 = vrcp.pop %v1078
    %v1117 = vrcp.pop %v1081
    %v1118 = vrcp.pop %v1084
    %v1119 = vrcp.pop %v1087
    %v1120 = vrcp.pop %v1090
    %v1121 = vrcp.pop %v1093
    %v1122 = vrcp.pop %v1096
    %v1123 = vrcp.pop %v1099
    %v1124 = vrcp.pop %v1102
    %v1125 = vrcp.pop %v1105
    %v1126 = vrcp.pop %v1108
    %v1127 = vrcp.pop %v1111
    %v1128 = vmul.f32 %v1033, %v1112
    %v1129 = vmul.f32 %v1035, %v1113
    %v1130 = vmul.f32 %v1037, %v1114
    %v1131 = vmul.f32 %v1039, %v1115
    %v1132 = vmul.f32 %v1041, %v1116
    %v1133 = vmul.f32 %v1043, %v1117
    %v1134 = vmul.f32 %v1045, %v1118
    %v1135 = vmul.f32 %v1047, %v1119
    %v1136 = vmul.f32 %v1049, %v1120
    %v1137 = vmul.f32 %v1051, %v1121
    %v1138 = vmul.f32 %v1053, %v1122
    %v1139 = vmul.f32 %v1055, %v1123
    %v1140 = vmul.f32 %v1057, %v1124
    %v1141 = vmul.f32 %v1059, %v1125
    %v1142 = vmul.f32 %v1061, %v1126
    %v1143 = vmul.f32 %v1063, %v1127
    %v1144 = vadd.f32 %v1128, %v1132
    %v1145 = vadd.f32 %v1129, %v1133
    %v1146 = vadd.f32 %v1130, %v1134
    %v1147 = vadd.f32 %v1131, %v1135
    %v1148 = vadd.f32 %v1144, %v1136
    %v1149 = vadd.f32 %v1145, %v1137
    %v1150 = vadd.f32 %v1146, %v1138
    %v1151 = vadd.f32 %v1147, %v1139
    %v1152 = vadd.f32 %v1148, %v1140
    %v1153 = vadd.f32 %v1149, %v1141
    %v1154 = vadd.f32 %v1150, %v1142
    %v1155 = vadd.f32 %v1151, %v1143
    %v1156 = vmul.f32 %v1152, 0.25
    %v1157 = vmul.f32 %v1153, 0.25
    %v1158 = vmul.f32 %v1154, 0.25
    %v1159 = vmul.f32 %v1155, 0.25
    %vm1160 = vcmp.ne.f32.partialorder %v1156, %v1156
    %vm1161 = vcmp.ne.f32.partialorder %v1157, %v1157
    %vm1162 = vcmp.ne.f32.partialorder %v1158, %v1158
    %vm1163 = vcmp.ne.f32.partialorder %v1159, %v1159
    %v1164 = vsel %vm1160, 0.0, %v1156
    %v1165 = vsel %vm1161, 0.0, %v1157
    %v1166 = vsel %vm1162, 0.0, %v1158
    %v1167 = vsel %vm1163, 0.0, %v1159
    %vm1168 = vcmp.eq.f32.partialorder %v1164, inf
    %vm1169 = vcmp.eq.f32.partialorder %v1165, inf
    %vm1170 = vcmp.eq.f32.partialorder %v1166, inf
    %vm1171 = vcmp.eq.f32.partialorder %v1167, inf
    %v1172 = vsel %vm1168, 3.4028235e+38, %v1164
    %v1173 = vsel %vm1169, 3.4028235e+38, %v1165
    %v1174 = vsel %vm1170, 3.4028235e+38, %v1166
    %v1175 = vsel %vm1171, 3.4028235e+38, %v1167
    %vm1176 = vcmp.eq.f32.partialorder %v1172, -inf
    %vm1177 = vcmp.eq.f32.partialorder %v1173, -inf
    %vm1178 = vcmp.eq.f32.partialorder %v1174, -inf
    %vm1179 = vcmp.eq.f32.partialorder %v1175, -inf
    %v1180 = vsel %vm1176, -3.4028235e+38, %v1172
    %v1181 = vsel %vm1177, -3.4028235e+38, %v1173
    %v1182 = vsel %vm1178, -3.4028235e+38, %v1174
    %v1183 = vsel %vm1179, -3.4028235e+38, %v1175
    %v1184 = vpack.c.bf16 %v1128, %v1128
    %v1185 = vpack.c.bf16 %v1129, %v1129
    %v1186 = vpack.c.bf16 %v1130, %v1130
    %v1187 = vpack.c.bf16 %v1131, %v1131
    %1188 = vrot.lane.b32.xlu0 %v146, 64
    %v1189 = vpop.permute.xlu0 %1188
    %v1191 = vsel %vm153, %v1184, 0
    %vm1193 = vcmask 1043456
    %v1195 = vsel %vm1193, %v1189, 0
    %1197 = vmatprep.subr.bf16.mxu0 0
    %1198 = vmatpush1.bf16.msra.mxu0 %v1195
    %1199 = vmatprep.subr.bf16.mxu0 0
    %1200 = vmatpush1.bf16.msra.mxu0 0
    %1201 = vmatprep.subr.bf16.mxu0 0
    %1202 = vmatpush1.bf16.msra.mxu0 0
    %1203 = vmatprep.subr.bf16.mxu0 0
    %1204 = vmatpush1.bf16.msra.mxu0 0
    %1205 = vmatprep.subr.bf16.mxu0 0
    %1206 = vmatpush1.bf16.msra.mxu0 0
    %1207 = vmatprep.subr.bf16.mxu0 0
    %1208 = vmatpush1.bf16.msra.mxu0 0
    %1209 = vmatprep.subr.bf16.mxu0 0
    %1210 = vmatpush1.bf16.msra.mxu0 0
    %1211 = vmatprep.subr.bf16.mxu0 0
    %1212 = vmatpush1.bf16.msra.mxu0 0
    %1213 = vmatprep.subr.bf16.mxu0 0
    %1214 = vmatpush1.bf16.msra.mxu0 0
    %1215 = vmatprep.subr.bf16.mxu0 0
    %1216 = vmatpush1.bf16.msra.mxu0 0
    %1217 = vmatprep.subr.bf16.mxu0 0
    %1218 = vmatpush1.bf16.msra.mxu0 0
    %1219 = vmatprep.subr.bf16.mxu0 0
    %1220 = vmatpush1.bf16.msra.mxu0 0
    %1221 = vmatprep.subr.bf16.mxu0 0
    %1222 = vmatpush1.bf16.msra.mxu0 0
    %1223 = vmatprep.subr.bf16.mxu0 0
    %1224 = vmatpush1.bf16.msra.mxu0 0
    %1225 = vmatprep.subr.bf16.mxu0 0
    %1226 = vmatpush1.bf16.msra.mxu0 0
    %1227 = vmatprep.subr.bf16.mxu0 0
    %1228 = vmatpush1.bf16.msra.mxu0 0
    %1229 = vmatprep.mubr.bf16.mxu0 0
    %1230 = vmatmul.mubr.bf16.gmra.mrb[0].mxu0 %v1191
    %v1231 = vpop.f32.mrb[0].mxu0
    %v1232 = vadd.f32 0.0, %v1231
    %v1233 = vpop.f32.mrb[0].mxu0
    %v1234 = vpop.f32.mrb[0].mxu0
    %v1235 = vpop.f32.mrb[0].mxu0
    %1236 = vdwg.mxu0
    %1237 = vrot.lane.b32.xlu0 %v147, 64
    %v1238 = vpop.permute.xlu0 %1237
    %v1240 = vsel %vm153, %v1185, 0
    %v1243 = vsel %vm1193, %v1238, 0
    %1245 = vmatprep.subr.bf16.mxu0 0
    %1246 = vmatpush1.bf16.msra.mxu0 %v1243
    %1247 = vmatprep.subr.bf16.mxu0 0
    %1248 = vmatpush1.bf16.msra.mxu0 0
    %1249 = vmatprep.subr.bf16.mxu0 0
    %1250 = vmatpush1.bf16.msra.mxu0 0
    %1251 = vmatprep.subr.bf16.mxu0 0
    %1252 = vmatpush1.bf16.msra.mxu0 0
    %1253 = vmatprep.subr.bf16.mxu0 0
    %1254 = vmatpush1.bf16.msra.mxu0 0
    %1255 = vmatprep.subr.bf16.mxu0 0
    %1256 = vmatpush1.bf16.msra.mxu0 0
    %1257 = vmatprep.subr.bf16.mxu0 0
    %1258 = vmatpush1.bf16.msra.mxu0 0
    %1259 = vmatprep.subr.bf16.mxu0 0
    %1260 = vmatpush1.bf16.msra.mxu0 0
    %1261 = vmatprep.subr.bf16.mxu0 0
    %1262 = vmatpush1.bf16.msra.mxu0 0
    %1263 = vmatprep.subr.bf16.mxu0 0
    %1264 = vmatpush1.bf16.msra.mxu0 0
    %1265 = vmatprep.subr.bf16.mxu0 0
    %1266 = vmatpush1.bf16.msra.mxu0 0
    %1267 = vmatprep.subr.bf16.mxu0 0
    %1268 = vmatpush1.bf16.msra.mxu0 0
    %1269 = vmatprep.subr.bf16.mxu0 0
    %1270 = vmatpush1.bf16.msra.mxu0 0
    %1271 = vmatprep.subr.bf16.mxu0 0
    %1272 = vmatpush1.bf16.msra.mxu0 0
    %1273 = vmatprep.subr.bf16.mxu0 0
    %1274 = vmatpush1.bf16.msra.mxu0 0
    %1275 = vmatprep.subr.bf16.mxu0 0
    %1276 = vmatpush1.bf16.msra.mxu0 0
    %1277 = vmatprep.mubr.bf16.mxu0 0
    %1278 = vmatmul.mubr.bf16.gmra.mrb[0].mxu0 %v1240
    %v1279 = vpop.f32.mrb[0].mxu0
    %v1280 = vadd.f32 0.0, %v1279
    %v1281 = vpop.f32.mrb[0].mxu0
    %v1282 = vpop.f32.mrb[0].mxu0
    %v1283 = vpop.f32.mrb[0].mxu0
    %1284 = vdwg.mxu0
    %1285 = vrot.lane.b32.xlu0 %v148, 64
    %v1286 = vpop.permute.xlu0 %1285
    %v1288 = vsel %vm153, %v1186, 0
    %v1291 = vsel %vm1193, %v1286, 0
    %1293 = vmatprep.subr.bf16.mxu0 0
    %1294 = vmatpush1.bf16.msra.mxu0 %v1291
    %1295 = vmatprep.subr.bf16.mxu0 0
    %1296 = vmatpush1.bf16.msra.mxu0 0
    %1297 = vmatprep.subr.bf16.mxu0 0
    %1298 = vmatpush1.bf16.msra.mxu0 0
    %1299 = vmatprep.subr.bf16.mxu0 0
    %1300 = vmatpush1.bf16.msra.mxu0 0
    %1301 = vmatprep.subr.bf16.mxu0 0
    %1302 = vmatpush1.bf16.msra.mxu0 0
    %1303 = vmatprep.subr.bf16.mxu0 0
    %1304 = vmatpush1.bf16.msra.mxu0 0
    %1305 = vmatprep.subr.bf16.mxu0 0
    %1306 = vmatpush1.bf16.msra.mxu0 0
    %1307 = vmatprep.subr.bf16.mxu0 0
    %1308 = vmatpush1.bf16.msra.mxu0 0
    %1309 = vmatprep.subr.bf16.mxu0 0
    %1310 = vmatpush1.bf16.msra.mxu0 0
    %1311 = vmatprep.subr.bf16.mxu0 0
    %1312 = vmatpush1.bf16.msra.mxu0 0
    %1313 = vmatprep.subr.bf16.mxu0 0
    %1314 = vmatpush1.bf16.msra.mxu0 0
    %1315 = vmatprep.subr.bf16.mxu0 0
    %1316 = vmatpush1.bf16.msra.mxu0 0
    %1317 = vmatprep.subr.bf16.mxu0 0
    %1318 = vmatpush1.bf16.msra.mxu0 0
    %1319 = vmatprep.subr.bf16.mxu0 0
    %1320 = vmatpush1.bf16.msra.mxu0 0
    %1321 = vmatprep.subr.bf16.mxu0 0
    %1322 = vmatpush1.bf16.msra.mxu0 0
    %1323 = vmatprep.subr.bf16.mxu0 0
    %1324 = vmatpush1.bf16.msra.mxu0 0
    %1325 = vmatprep.mubr.bf16.mxu0 0
    %1326 = vmatmul.mubr.bf16.gmra.mrb[0].mxu0 %v1288
    %v1327 = vpop.f32.mrb[0].mxu0
    %v1328 = vadd.f32 0.0, %v1327
    %v1329 = vpop.f32.mrb[0].mxu0
    %v1330 = vpop.f32.mrb[0].mxu0
    %v1331 = vpop.f32.mrb[0].mxu0
    %1332 = vdwg.mxu0
    %1333 = vrot.lane.b32.xlu0 %v149, 64
    %v1334 = vpop.permute.xlu0 %1333
    %v1336 = vsel %vm153, %v1187, 0
    %v1339 = vsel %vm1193, %v1334, 0
    %1341 = vmatprep.subr.bf16.mxu0 0
    %1342 = vmatpush1.bf16.msra.mxu0 %v1339
    %1343 = vmatprep.subr.bf16.mxu0 0
    %1344 = vmatpush1.bf16.msra.mxu0 0
    %1345 = vmatprep.subr.bf16.mxu0 0
    %1346 = vmatpush1.bf16.msra.mxu0 0
    %1347 = vmatprep.subr.bf16.mxu0 0
    %1348 = vmatpush1.bf16.msra.mxu0 0
    %1349 = vmatprep.subr.bf16.mxu0 0
    %1350 = vmatpush1.bf16.msra.mxu0 0
    %1351 = vmatprep.subr.bf16.mxu0 0
    %1352 = vmatpush1.bf16.msra.mxu0 0
    %1353 = vmatprep.subr.bf16.mxu0 0
    %1354 = vmatpush1.bf16.msra.mxu0 0
    %1355 = vmatprep.subr.bf16.mxu0 0
    %1356 = vmatpush1.bf16.msra.mxu0 0
    %1357 = vmatprep.subr.bf16.mxu0 0
    %1358 = vmatpush1.bf16.msra.mxu0 0
    %1359 = vmatprep.subr.bf16.mxu0 0
    %1360 = vmatpush1.bf16.msra.mxu0 0
    %1361 = vmatprep.subr.bf16.mxu0 0
    %1362 = vmatpush1.bf16.msra.mxu0 0
    %1363 = vmatprep.subr.bf16.mxu0 0
    %1364 = vmatpush1.bf16.msra.mxu0 0
    %1365 = vmatprep.subr.bf16.mxu0 0
    %1366 = vmatpush1.bf16.msra.mxu0 0
    %1367 = vmatprep.subr.bf16.mxu0 0
    %1368 = vmatpush1.bf16.msra.mxu0 0
    %1369 = vmatprep.subr.bf16.mxu0 0
    %1370 = vmatpush1.bf16.msra.mxu0 0
    %1371 = vmatprep.subr.bf16.mxu0 0
    %1372 = vmatpush1.bf16.msra.mxu0 0
    %1373 = vmatprep.mubr.bf16.mxu0 0
    %1374 = vmatmul.mubr.bf16.gmra.mrb[0].mxu0 %v1336
    %v1375 = vpop.f32.mrb[0].mxu0
    %v1376 = vadd.f32 0.0, %v1375
    %v1377 = vpop.f32.mrb[0].mxu0
    %v1378 = vpop.f32.mrb[0].mxu0
    %v1379 = vpop.f32.mrb[0].mxu0
    %1380 = vdwg.mxu0
    %v1381 = vpack.c.bf16 %v1280, %v1232
    %v1382 = vpack.c.bf16 %v1376, %v1328
    %v1383 = vld [vmem:[%s3] sm:$0xf]
    %v1384 = vpack.c.bf16 %v1132, %v1132
    %v1385 = vpack.c.bf16 %v1133, %v1133
    %v1386 = vpack.c.bf16 %v1134, %v1134
    %v1387 = vpack.c.bf16 %v1135, %v1135
    %1388 = vrot.lane.b32.xlu0 %v146, 56
    %v1389 = vpop.permute.xlu0 %1388
    %v1391 = vsel %vm153, %v1384, 0
    %v1394 = vsel %vm1193, %v1389, 0
    %1396 = vmatprep.subr.bf16.mxu0 0
    %1397 = vmatpush1.bf16.msra.mxu0 %v1394
    %1398 = vmatprep.subr.bf16.mxu0 0
    %1399 = vmatpush1.bf16.msra.mxu0 0
    %1400 = vmatprep.subr.bf16.mxu0 0
    %1401 = vmatpush1.bf16.msra.mxu0 0
    %1402 = vmatprep.subr.bf16.mxu0 0
    %1403 = vmatpush1.bf16.msra.mxu0 0
    %1404 = vmatprep.subr.bf16.mxu0 0
    %1405 = vmatpush1.bf16.msra.mxu0 0
    %1406 = vmatprep.subr.bf16.mxu0 0
    %1407 = vmatpush1.bf16.msra.mxu0 0
    %1408 = vmatprep.subr.bf16.mxu0 0
    %1409 = vmatpush1.bf16.msra.mxu0 0
    %1410 = vmatprep.subr.bf16.mxu0 0
    %1411 = vmatpush1.bf16.msra.mxu0 0
    %1412 = vmatprep.subr.bf16.mxu0 0
    %1413 = vmatpush1.bf16.msra.mxu0 0
    %1414 = vmatprep.subr.bf16.mxu0 0
    %1415 = vmatpush1.bf16.msra.mxu0 0
    %1416 = vmatprep.subr.bf16.mxu0 0
    %1417 = vmatpush1.bf16.msra.mxu0 0
    %1418 = vmatprep.subr.bf16.mxu0 0
    %1419 = vmatpush1.bf16.msra.mxu0 0
    %1420 = vmatprep.subr.bf16.mxu0 0
    %1421 = vmatpush1.bf16.msra.mxu0 0
    %1422 = vmatprep.subr.bf16.mxu0 0
    %1423 = vmatpush1.bf16.msra.mxu0 0
    %1424 = vmatprep.subr.bf16.mxu0 0
    %1425 = vmatpush1.bf16.msra.mxu0 0
    %1426 = vmatprep.subr.bf16.mxu0 0
    %1427 = vmatpush1.bf16.msra.mxu0 0
    %1428 = vmatprep.mubr.bf16.mxu0 0
    %1429 = vmatmul.mubr.bf16.gmra.mrb[0].mxu0 %v1391
    %v1430 = vpop.f32.mrb[0].mxu0
    %v1431 = vadd.f32 0.0, %v1430
    %v1432 = vpop.f32.mrb[0].mxu0
    %v1433 = vpop.f32.mrb[0].mxu0
    %v1434 = vpop.f32.mrb[0].mxu0
    %1435 = vdwg.mxu0
    %1436 = vrot.lane.b32.xlu0 %v147, 56
    %v1437 = vpop.permute.xlu0 %1436
    %v1439 = vsel %vm153, %v1385, 0
    %v1442 = vsel %vm1193, %v1437, 0
    %1444 = vmatprep.subr.bf16.mxu0 0
    %1445 = vmatpush1.bf16.msra.mxu0 %v1442
    %1446 = vmatprep.subr.bf16.mxu0 0
    %1447 = vmatpush1.bf16.msra.mxu0 0
    %1448 = vmatprep.subr.bf16.mxu0 0
    %1449 = vmatpush1.bf16.msra.mxu0 0
    %1450 = vmatprep.subr.bf16.mxu0 0
    %1451 = vmatpush1.bf16.msra.mxu0 0
    %1452 = vmatprep.subr.bf16.mxu0 0
    %1453 = vmatpush1.bf16.msra.mxu0 0
    %1454 = vmatprep.subr.bf16.mxu0 0
    %1455 = vmatpush1.bf16.msra.mxu0 0
    %1456 = vmatprep.subr.bf16.mxu0 0
    %1457 = vmatpush1.bf16.msra.mxu0 0
    %1458 = vmatprep.subr.bf16.mxu0 0
    %1459 = vmatpush1.bf16.msra.mxu0 0
    %1460 = vmatprep.subr.bf16.mxu0 0
    %1461 = vmatpush1.bf16.msra.mxu0 0
    %1462 = vmatprep.subr.bf16.mxu0 0
    %1463 = vmatpush1.bf16.msra.mxu0 0
    %1464 = vmatprep.subr.bf16.mxu0 0
    %1465 = vmatpush1.bf16.msra.mxu0 0
    %1466 = vmatprep.subr.bf16.mxu0 0
    %1467 = vmatpush1.bf16.msra.mxu0 0
    %1468 = vmatprep.subr.bf16.mxu0 0
    %1469 = vmatpush1.bf16.msra.mxu0 0
    %1470 = vmatprep.subr.bf16.mxu0 0
    %1471 = vmatpush1.bf16.msra.mxu0 0
    %1472 = vmatprep.subr.bf16.mxu0 0
    %1473 = vmatpush1.bf16.msra.mxu0 0
    %1474 = vmatprep.subr.bf16.mxu0 0
    %1475 = vmatpush1.bf16.msra.mxu0 0
    %1476 = vmatprep.mubr.bf16.mxu0 0
    %1477 = vmatmul.mubr.bf16.gmra.mrb[0].mxu0 %v1439
    %v1478 = vpop.f32.mrb[0].mxu0
    %v1479 = vadd.f32 0.0, %v1478
    %v1480 = vpop.f32.mrb[0].mxu0
    %v1481 = vpop.f32.mrb[0].mxu0
    %v1482 = vpop.f32.mrb[0].mxu0
    %1483 = vdwg.mxu0
    %1484 = vrot.lane.b32.xlu0 %v148, 56
    %v1485 = vpop.permute.xlu0 %1484
    %v1487 = vsel %vm153, %v1386, 0
    %v1490 = vsel %vm1193, %v1485, 0
    %1492 = vmatprep.subr.bf16.mxu0 0
    %1493 = vmatpush1.bf16.msra.mxu0 %v1490
    %1494 = vmatprep.subr.bf16.mxu0 0
    %1495 = vmatpush1.bf16.msra.mxu0 0
    %1496 = vmatprep.subr.bf16.mxu0 0
    %1497 = vmatpush1.bf16.msra.mxu0 0
    %1498 = vmatprep.subr.bf16.mxu0 0
    %1499 = vmatpush1.bf16.msra.mxu0 0
    %1500 = vmatprep.subr.bf16.mxu0 0
    %1501 = vmatpush1.bf16.msra.mxu0 0
    %1502 = vmatprep.subr.bf16.mxu0 0
    %1503 = vmatpush1.bf16.msra.mxu0 0
    %1504 = vmatprep.subr.bf16.mxu0 0
    %1505 = vmatpush1.bf16.msra.mxu0 0
    %1506 = vmatprep.subr.bf16.mxu0 0
    %1507 = vmatpush1.bf16.msra.mxu0 0
    %1508 = vmatprep.subr.bf16.mxu0 0
    %1509 = vmatpush1.bf16.msra.mxu0 0
    %1510 = vmatprep.subr.bf16.mxu0 0
    %1511 = vmatpush1.bf16.msra.mxu0 0
    %1512 = vmatprep.subr.bf16.mxu0 0
    %1513 = vmatpush1.bf16.msra.mxu0 0
    %1514 = vmatprep.subr.bf16.mxu0 0
    %1515 = vmatpush1.bf16.msra.mxu0 0
    %1516 = vmatprep.subr.bf16.mxu0 0
    %1517 = vmatpush1.bf16.msra.mxu0 0
    %1518 = vmatprep.subr.bf16.mxu0 0
    %1519 = vmatpush1.bf16.msra.mxu0 0
    %1520 = vmatprep.subr.bf16.mxu0 0
    %1521 = vmatpush1.bf16.msra.mxu0 0
    %1522 = vmatprep.subr.bf16.mxu0 0
    %1523 = vmatpush1.bf16.msra.mxu0 0
    %1524 = vmatprep.mubr.bf16.mxu0 0
    %1525 = vmatmul.mubr.bf16.gmra.mrb[0].mxu0 %v1487
    %v1526 = vpop.f32.mrb[0].mxu0
    %v1527 = vadd.f32 0.0, %v1526
    %v1528 = vpop.f32.mrb[0].mxu0
    %v1529 = vpop.f32.mrb[0].mxu0
    %v1530 = vpop.f32.mrb[0].mxu0
    %1531 = vdwg.mxu0
    %1532 = vrot.lane.b32.xlu0 %v149, 56
    %v1533 = vpop.permute.xlu0 %1532
    %v1535 = vsel %vm153, %v1387, 0
    %v1538 = vsel %vm1193, %v1533, 0
    %1540 = vmatprep.subr.bf16.mxu0 0
    %1541 = vmatpush1.bf16.msra.mxu0 %v1538
    %1542 = vmatprep.subr.bf16.mxu0 0
    %1543 = vmatpush1.bf16.msra.mxu0 0
    %1544 = vmatprep.subr.bf16.mxu0 0
    %1545 = vmatpush1.bf16.msra.mxu0 0
    %1546 = vmatprep.subr.bf16.mxu0 0
    %1547 = vmatpush1.bf16.msra.mxu0 0
    %1548 = vmatprep.subr.bf16.mxu0 0
    %1549 = vmatpush1.bf16.msra.mxu0 0
    %1550 = vmatprep.subr.bf16.mxu0 0
    %1551 = vmatpush1.bf16.msra.mxu0 0
    %1552 = vmatprep.subr.bf16.mxu0 0
    %1553 = vmatpush1.bf16.msra.mxu0 0
    %1554 = vmatprep.subr.bf16.mxu0 0
    %1555 = vmatpush1.bf16.msra.mxu0 0
    %1556 = vmatprep.subr.bf16.mxu0 0
    %1557 = vmatpush1.bf16.msra.mxu0 0
    %1558 = vmatprep.subr.bf16.mxu0 0
    %1559 = vmatpush1.bf16.msra.mxu0 0
    %1560 = vmatprep.subr.bf16.mxu0 0
    %1561 = vmatpush1.bf16.msra.mxu0 0
    %1562 = vmatprep.subr.bf16.mxu0 0
    %1563 = vmatpush1.bf16.msra.mxu0 0
    %1564 = vmatprep.subr.bf16.mxu0 0
    %1565 = vmatpush1.bf16.msra.mxu0 0
    %1566 = vmatprep.subr.bf16.mxu0 0
    %1567 = vmatpush1.bf16.msra.mxu0 0
    %1568 = vmatprep.subr.bf16.mxu0 0
    %1569 = vmatpush1.bf16.msra.mxu0 0
    %1570 = vmatprep.subr.bf16.mxu0 0
    %1571 = vmatpush1.bf16.msra.mxu0 0
    %1572 = vmatprep.mubr.bf16.mxu0 0
    %1573 = vmatmul.mubr.bf16.gmra.mrb[0].mxu0 %v1535
    %v1574 = vpop.f32.mrb[0].mxu0
    %v1575 = vadd.f32 0.0, %v1574
    %v1576 = vpop.f32.mrb[0].mxu0
    %v1577 = vpop.f32.mrb[0].mxu0
    %v1578 = vpop.f32.mrb[0].mxu0
    %1579 = vdwg.mxu0
    %v1580 = vpack.c.bf16 %v1479, %v1431
    %v1581 = vpack.c.bf16 %v1575, %v1527
    %s1582 = scalar_lea.vmem %s3, 4
    %v1583 = vld [vmem:[%s1582] sm:$0xf]
    %v1585 = vsel %vm153, %v1580, 0
    %v1588 = vsel %vm153, %v1581, 0
    %v1591 = vsel %vm1193, %v1583, 0
    %1593 = vmatprep.subr.bf16.mxu0 0
    %1594 = vmatpush1.bf16.msra.mxu0 %v1591
    %1595 = vmatprep.subr.bf16.mxu0 0
    %1596 = vmatpush1.bf16.msra.mxu0 0
    %1597 = vmatprep.subr.bf16.mxu0 0
    %1598 = vmatpush1.bf16.msra.mxu0 0
    %1599 = vmatprep.subr.bf16.mxu0 0
    %1600 = vmatpush1.bf16.msra.mxu0 0
    %1601 = vmatprep.subr.bf16.mxu0 0
    %1602 = vmatpush1.bf16.msra.mxu0 0
    %1603 = vmatprep.subr.bf16.mxu0 0
    %1604 = vmatpush1.bf16.msra.mxu0 0
    %1605 = vmatprep.subr.bf16.mxu0 0
    %1606 = vmatpush1.bf16.msra.mxu0 0
    %1607 = vmatprep.subr.bf16.mxu0 0
    %1608 = vmatpush1.bf16.msra.mxu0 0
    %1609 = vmatprep.subr.bf16.mxu0 0
    %1610 = vmatpush1.bf16.msra.mxu0 0
    %1611 = vmatprep.subr.bf16.mxu0 0
    %1612 = vmatpush1.bf16.msra.mxu0 0
    %1613 = vmatprep.subr.bf16.mxu0 0
    %1614 = vmatpush1.bf16.msra.mxu0 0
    %1615 = vmatprep.subr.bf16.mxu0 0
    %1616 = vmatpush1.bf16.msra.mxu0 0
    %1617 = vmatprep.subr.bf16.mxu0 0
    %1618 = vmatpush1.bf16.msra.mxu0 0
    %1619 = vmatprep.subr.bf16.mxu0 0
    %1620 = vmatpush1.bf16.msra.mxu0 0
    %1621 = vmatprep.subr.bf16.mxu0 0
    %1622 = vmatpush1.bf16.msra.mxu0 0
    %1623 = vmatprep.subr.bf16.mxu0 0
    %1624 = vmatpush1.bf16.msra.mxu0 0
    %1625 = vmatprep.mubr.bf16.mxu0 0
    %1626 = vmatmul.mubr.bf16.gmra.mrb[0].mxu0 %v1585
    %v1627 = vpop.f32.mrb[0].mxu0
    %v1628 = vadd.f32 0.0, %v1627
    %v1629 = vpop.f32.mrb[0].mxu0
    %v1630 = vpop.f32.mrb[0].mxu0
    %v1631 = vadd.f32 0.0, %v1630
    %v1632 = vpop.f32.mrb[0].mxu0
    %1633 = vmatprep.mubr.bf16.mxu0 0
    %1634 = vmatmul.mubr.bf16.gmra.mrb[0].mxu0 %v1588
    %v1635 = vpop.f32.mrb[0].mxu0
    %v1636 = vadd.f32 0.0, %v1635
    %v1637 = vpop.f32.mrb[0].mxu0
    %v1638 = vpop.f32.mrb[0].mxu0
    %v1639 = vadd.f32 0.0, %v1638
    %v1640 = vpop.f32.mrb[0].mxu0
    %1641 = vdwg.mxu0
    %v1643 = vsel %vm153, %v1381, 0
    %v1646 = vsel %vm153, %v1382, 0
    %v1649 = vsel %vm1193, %v1383, 0
    %1651 = vmatprep.subr.bf16.mxu0 0
    %1652 = vmatpush1.bf16.msra.mxu0 %v1649
    %1653 = vmatprep.subr.bf16.mxu0 0
    %1654 = vmatpush1.bf16.msra.mxu0 0
    %1655 = vmatprep.subr.bf16.mxu0 0
    %1656 = vmatpush1.bf16.msra.mxu0 0
    %1657 = vmatprep.subr.bf16.mxu0 0
    %1658 = vmatpush1.bf16.msra.mxu0 0
    %1659 = vmatprep.subr.bf16.mxu0 0
    %1660 = vmatpush1.bf16.msra.mxu0 0
    %1661 = vmatprep.subr.bf16.mxu0 0
    %1662 = vmatpush1.bf16.msra.mxu0 0
    %1663 = vmatprep.subr.bf16.mxu0 0
    %1664 = vmatpush1.bf16.msra.mxu0 0
    %1665 = vmatprep.subr.bf16.mxu0 0
    %1666 = vmatpush1.bf16.msra.mxu0 0
    %1667 = vmatprep.subr.bf16.mxu0 0
    %1668 = vmatpush1.bf16.msra.mxu0 0
    %1669 = vmatprep.subr.bf16.mxu0 0
    %1670 = vmatpush1.bf16.msra.mxu0 0
    %1671 = vmatprep.subr.bf16.mxu0 0
    %1672 = vmatpush1.bf16.msra.mxu0 0
    %1673 = vmatprep.subr.bf16.mxu0 0
    %1674 = vmatpush1.bf16.msra.mxu0 0
    %1675 = vmatprep.subr.bf16.mxu0 0
    %1676 = vmatpush1.bf16.msra.mxu0 0
    %1677 = vmatprep.subr.bf16.mxu0 0
    %1678 = vmatpush1.bf16.msra.mxu0 0
    %1679 = vmatprep.subr.bf16.mxu0 0
    %1680 = vmatpush1.bf16.msra.mxu0 0
    %1681 = vmatprep.subr.bf16.mxu0 0
    %1682 = vmatpush1.bf16.msra.mxu0 0
    %1683 = vmatprep.mubr.bf16.mxu0 0
    %1684 = vmatmul.mubr.bf16.gmra.mrb[0].mxu0 %v1643
    %v1685 = vpop.f32.mrb[0].mxu0
    %v1686 = vadd.f32 %v1628, %v1685
    %v1687 = vpop.f32.mrb[0].mxu0
    %v1688 = vpop.f32.mrb[0].mxu0
    %v1689 = vadd.f32 %v1631, %v1688
    %v1690 = vpop.f32.mrb[0].mxu0
    %1691 = vmatprep.mubr.bf16.mxu0 0
    %1692 = vmatmul.mubr.bf16.gmra.mrb[0].mxu0 %v1646
    %v1693 = vpop.f32.mrb[0].mxu0
    %v1694 = vadd.f32 %v1636, %v1693
    %v1695 = vpop.f32.mrb[0].mxu0
    %v1696 = vpop.f32.mrb[0].mxu0
    %v1697 = vadd.f32 %v1639, %v1696
    %v1698 = vpop.f32.mrb[0].mxu0
    %1699 = vdwg.mxu0
    %v1700 = vpack.c.bf16 %v1136, %v1136
    %v1701 = vpack.c.bf16 %v1137, %v1137
    %v1702 = vpack.c.bf16 %v1138, %v1138
    %v1703 = vpack.c.bf16 %v1139, %v1139
    %1704 = vrot.lane.b32.xlu0 %v146, 48
    %v1705 = vpop.permute.xlu0 %1704
    %v1707 = vsel %vm153, %v1700, 0
    %v1710 = vsel %vm1193, %v1705, 0
    %1712 = vmatprep.subr.bf16.mxu0 0
    %1713 = vmatpush1.bf16.msra.mxu0 %v1710
    %1714 = vmatprep.subr.bf16.mxu0 0
    %1715 = vmatpush1.bf16.msra.mxu0 0
    %1716 = vmatprep.subr.bf16.mxu0 0
    %1717 = vmatpush1.bf16.msra.mxu0 0
    %1718 = vmatprep.subr.bf16.mxu0 0
    %1719 = vmatpush1.bf16.msra.mxu0 0
    %1720 = vmatprep.subr.bf16.mxu0 0
    %1721 = vmatpush1.bf16.msra.mxu0 0
    %1722 = vmatprep.subr.bf16.mxu0 0
    %1723 = vmatpush1.bf16.msra.mxu0 0
    %1724 = vmatprep.subr.bf16.mxu0 0
    %1725 = vmatpush1.bf16.msra.mxu0 0
    %1726 = vmatprep.subr.bf16.mxu0 0
    %1727 = vmatpush1.bf16.msra.mxu0 0
    %1728 = vmatprep.subr.bf16.mxu0 0
    %1729 = vmatpush1.bf16.msra.mxu0 0
    %1730 = vmatprep.subr.bf16.mxu0 0
    %1731 = vmatpush1.bf16.msra.mxu0 0
    %1732 = vmatprep.subr.bf16.mxu0 0
    %1733 = vmatpush1.bf16.msra.mxu0 0
    %1734 = vmatprep.subr.bf16.mxu0 0
    %1735 = vmatpush1.bf16.msra.mxu0 0
    %1736 = vmatprep.subr.bf16.mxu0 0
    %1737 = vmatpush1.bf16.msra.mxu0 0
    %1738 = vmatprep.subr.bf16.mxu0 0
    %1739 = vmatpush1.bf16.msra.mxu0 0
    %1740 = vmatprep.subr.bf16.mxu0 0
    %1741 = vmatpush1.bf16.msra.mxu0 0
    %1742 = vmatprep.subr.bf16.mxu0 0
    %1743 = vmatpush1.bf16.msra.mxu0 0
    %1744 = vmatprep.mubr.bf16.mxu0 0
    %1745 = vmatmul.mubr.bf16.gmra.mrb[0].mxu0 %v1707
    %v1746 = vpop.f32.mrb[0].mxu0
    %v1747 = vadd.f32 0.0, %v1746
    %v1748 = vpop.f32.mrb[0].mxu0
    %v1749 = vpop.f32.mrb[0].mxu0
    %v1750 = vpop.f32.mrb[0].mxu0
    %1751 = vdwg.mxu0
    %1752 = vrot.lane.b32.xlu0 %v147, 48
    %v1753 = vpop.permute.xlu0 %1752
    %v1755 = vsel %vm153, %v1701, 0
    %v1758 = vsel %vm1193, %v1753, 0
    %1760 = vmatprep.subr.bf16.mxu0 0
    %1761 = vmatpush1.bf16.msra.mxu0 %v1758
    %1762 = vmatprep.subr.bf16.mxu0 0
    %1763 = vmatpush1.bf16.msra.mxu0 0
    %1764 = vmatprep.subr.bf16.mxu0 0
    %1765 = vmatpush1.bf16.msra.mxu0 0
    %1766 = vmatprep.subr.bf16.mxu0 0
    %1767 = vmatpush1.bf16.msra.mxu0 0
    %1768 = vmatprep.subr.bf16.mxu0 0
    %1769 = vmatpush1.bf16.msra.mxu0 0
    %1770 = vmatprep.subr.bf16.mxu0 0
    %1771 = vmatpush1.bf16.msra.mxu0 0
    %1772 = vmatprep.subr.bf16.mxu0 0
    %1773 = vmatpush1.bf16.msra.mxu0 0
    %1774 = vmatprep.subr.bf16.mxu0 0
    %1775 = vmatpush1.bf16.msra.mxu0 0
    %1776 = vmatprep.subr.bf16.mxu0 0
    %1777 = vmatpush1.bf16.msra.mxu0 0
    %1778 = vmatprep.subr.bf16.mxu0 0
    %1779 = vmatpush1.bf16.msra.mxu0 0
    %1780 = vmatprep.subr.bf16.mxu0 0
    %1781 = vmatpush1.bf16.msra.mxu0 0
    %1782 = vmatprep.subr.bf16.mxu0 0
    %1783 = vmatpush1.bf16.msra.mxu0 0
    %1784 = vmatprep.subr.bf16.mxu0 0
    %1785 = vmatpush1.bf16.msra.mxu0 0
    %1786 = vmatprep.subr.bf16.mxu0 0
    %1787 = vmatpush1.bf16.msra.mxu0 0
    %1788 = vmatprep.subr.bf16.mxu0 0
    %1789 = vmatpush1.bf16.msra.mxu0 0
    %1790 = vmatprep.subr.bf16.mxu0 0
    %1791 = vmatpush1.bf16.msra.mxu0 0
    %1792 = vmatprep.mubr.bf16.mxu0 0
    %1793 = vmatmul.mubr.bf16.gmra.mrb[0].mxu0 %v1755
    %v1794 = vpop.f32.mrb[0].mxu0
    %v1795 = vadd.f32 0.0, %v1794
    %v1796 = vpop.f32.mrb[0].mxu0
    %v1797 = vpop.f32.mrb[0].mxu0
    %v1798 = vpop.f32.mrb[0].mxu0
    %1799 = vdwg.mxu0
    %1800 = vrot.lane.b32.xlu0 %v148, 48
    %v1801 = vpop.permute.xlu0 %1800
    %v1803 = vsel %vm153, %v1702, 0
    %v1806 = vsel %vm1193, %v1801, 0
    %1808 = vmatprep.subr.bf16.mxu0 0
    %1809 = vmatpush1.bf16.msra.mxu0 %v1806
    %1810 = vmatprep.subr.bf16.mxu0 0
    %1811 = vmatpush1.bf16.msra.mxu0 0
    %1812 = vmatprep.subr.bf16.mxu0 0
    %1813 = vmatpush1.bf16.msra.mxu0 0
    %1814 = vmatprep.subr.bf16.mxu0 0
    %1815 = vmatpush1.bf16.msra.mxu0 0
    %1816 = vmatprep.subr.bf16.mxu0 0
    %1817 = vmatpush1.bf16.msra.mxu0 0
    %1818 = vmatprep.subr.bf16.mxu0 0
    %1819 = vmatpush1.bf16.msra.mxu0 0
    %1820 = vmatprep.subr.bf16.mxu0 0
    %1821 = vmatpush1.bf16.msra.mxu0 0
    %1822 = vmatprep.subr.bf16.mxu0 0
    %1823 = vmatpush1.bf16.msra.mxu0 0
    %1824 = vmatprep.subr.bf16.mxu0 0
    %1825 = vmatpush1.bf16.msra.mxu0 0
    %1826 = vmatprep.subr.bf16.mxu0 0
    %1827 = vmatpush1.bf16.msra.mxu0 0
    %1828 = vmatprep.subr.bf16.mxu0 0
    %1829 = vmatpush1.bf16.msra.mxu0 0
    %1830 = vmatprep.subr.bf16.mxu0 0
    %1831 = vmatpush1.bf16.msra.mxu0 0
    %1832 = vmatprep.subr.bf16.mxu0 0
    %1833 = vmatpush1.bf16.msra.mxu0 0
    %1834 = vmatprep.subr.bf16.mxu0 0
    %1835 = vmatpush1.bf16.msra.mxu0 0
    %1836 = vmatprep.subr.bf16.mxu0 0
    %1837 = vmatpush1.bf16.msra.mxu0 0
    %1838 = vmatprep.subr.bf16.mxu0 0
    %1839 = vmatpush1.bf16.msra.mxu0 0
    %1840 = vmatprep.mubr.bf16.mxu0 0
    %1841 = vmatmul.mubr.bf16.gmra.mrb[0].mxu0 %v1803
    %v1842 = vpop.f32.mrb[0].mxu0
    %v1843 = vadd.f32 0.0, %v1842
    %v1844 = vpop.f32.mrb[0].mxu0
    %v1845 = vpop.f32.mrb[0].mxu0
    %v1846 = vpop.f32.mrb[0].mxu0
    %1847 = vdwg.mxu0
    %1848 = vrot.lane.b32.xlu0 %v149, 48
    %v1849 = vpop.permute.xlu0 %1848
    %v1851 = vsel %vm153, %v1703, 0
    %v1854 = vsel %vm1193, %v1849, 0
    %1856 = vmatprep.subr.bf16.mxu0 0
    %1857 = vmatpush1.bf16.msra.mxu0 %v1854
    %1858 = vmatprep.subr.bf16.mxu0 0
    %1859 = vmatpush1.bf16.msra.mxu0 0
    %1860 = vmatprep.subr.bf16.mxu0 0
    %1861 = vmatpush1.bf16.msra.mxu0 0
    %1862 = vmatprep.subr.bf16.mxu0 0
    %1863 = vmatpush1.bf16.msra.mxu0 0
    %1864 = vmatprep.subr.bf16.mxu0 0
    %1865 = vmatpush1.bf16.msra.mxu0 0
    %1866 = vmatprep.subr.bf16.mxu0 0
    %1867 = vmatpush1.bf16.msra.mxu0 0
    %1868 = vmatprep.subr.bf16.mxu0 0
    %1869 = vmatpush1.bf16.msra.mxu0 0
    %1870 = vmatprep.subr.bf16.mxu0 0
    %1871 = vmatpush1.bf16.msra.mxu0 0
    %1872 = vmatprep.subr.bf16.mxu0 0
    %1873 = vmatpush1.bf16.msra.mxu0 0
    %1874 = vmatprep.subr.bf16.mxu0 0
    %1875 = vmatpush1.bf16.msra.mxu0 0
    %1876 = vmatprep.subr.bf16.mxu0 0
    %1877 = vmatpush1.bf16.msra.mxu0 0
    %1878 = vmatprep.subr.bf16.mxu0 0
    %1879 = vmatpush1.bf16.msra.mxu0 0
    %1880 = vmatprep.subr.bf16.mxu0 0
    %1881 = vmatpush1.bf16.msra.mxu0 0
    %1882 = vmatprep.subr.bf16.mxu0 0
    %1883 = vmatpush1.bf16.msra.mxu0 0
    %1884 = vmatprep.subr.bf16.mxu0 0
    %1885 = vmatpush1.bf16.msra.mxu0 0
    %1886 = vmatprep.subr.bf16.mxu0 0
    %1887 = vmatpush1.bf16.msra.mxu0 0
    %1888 = vmatprep.mubr.bf16.mxu0 0
    %1889 = vmatmul.mubr.bf16.gmra.mrb[0].mxu0 %v1851
    %v1890 = vpop.f32.mrb[0].mxu0
    %v1891 = vadd.f32 0.0, %v1890
    %v1892 = vpop.f32.mrb[0].mxu0
    %v1893 = vpop.f32.mrb[0].mxu0
    %v1894 = vpop.f32.mrb[0].mxu0
    %1895 = vdwg.mxu0
    %v1896 = vpack.c.bf16 %v1795, %v1747
    %v1897 = vpack.c.bf16 %v1891, %v1843
    %s1898 = scalar_lea.vmem %s3, 8
    %v1899 = vld [vmem:[%s1898] sm:$0xf]
    %v1901 = vsel %vm153, %v1896, 0
    %v1904 = vsel %vm153, %v1897, 0
    %v1907 = vsel %vm1193, %v1899, 0
    %1909 = vmatprep.subr.bf16.mxu0 0
    %1910 = vmatpush1.bf16.msra.mxu0 %v1907
    %1911 = vmatprep.subr.bf16.mxu0 0
    %1912 = vmatpush1.bf16.msra.mxu0 0
    %1913 = vmatprep.subr.bf16.mxu0 0
    %1914 = vmatpush1.bf16.msra.mxu0 0
    %1915 = vmatprep.subr.bf16.mxu0 0
    %1916 = vmatpush1.bf16.msra.mxu0 0
    %1917 = vmatprep.subr.bf16.mxu0 0
    %1918 = vmatpush1.bf16.msra.mxu0 0
    %1919 = vmatprep.subr.bf16.mxu0 0
    %1920 = vmatpush1.bf16.msra.mxu0 0
    %1921 = vmatprep.subr.bf16.mxu0 0
    %1922 = vmatpush1.bf16.msra.mxu0 0
    %1923 = vmatprep.subr.bf16.mxu0 0
    %1924 = vmatpush1.bf16.msra.mxu0 0
    %1925 = vmatprep.subr.bf16.mxu0 0
    %1926 = vmatpush1.bf16.msra.mxu0 0
    %1927 = vmatprep.subr.bf16.mxu0 0
    %1928 = vmatpush1.bf16.msra.mxu0 0
    %1929 = vmatprep.subr.bf16.mxu0 0
    %1930 = vmatpush1.bf16.msra.mxu0 0
    %1931 = vmatprep.subr.bf16.mxu0 0
    %1932 = vmatpush1.bf16.msra.mxu0 0
    %1933 = vmatprep.subr.bf16.mxu0 0
    %1934 = vmatpush1.bf16.msra.mxu0 0
    %1935 = vmatprep.subr.bf16.mxu0 0
    %1936 = vmatpush1.bf16.msra.mxu0 0
    %1937 = vmatprep.subr.bf16.mxu0 0
    %1938 = vmatpush1.bf16.msra.mxu0 0
    %1939 = vmatprep.subr.bf16.mxu0 0
    %1940 = vmatpush1.bf16.msra.mxu0 0
    %1941 = vmatprep.mubr.bf16.mxu0 0
    %1942 = vmatmul.mubr.bf16.gmra.mrb[0].mxu0 %v1901
    %v1943 = vpop.f32.mrb[0].mxu0
    %v1944 = vadd.f32 0.0, %v1943
    %v1945 = vpop.f32.mrb[0].mxu0
    %v1946 = vpop.f32.mrb[0].mxu0
    %v1947 = vadd.f32 0.0, %v1946
    %v1948 = vpop.f32.mrb[0].mxu0
    %1949 = vmatprep.mubr.bf16.mxu0 0
    %1950 = vmatmul.mubr.bf16.gmra.mrb[0].mxu0 %v1904
    %v1951 = vpop.f32.mrb[0].mxu0
    %v1952 = vadd.f32 0.0, %v1951
    %v1953 = vpop.f32.mrb[0].mxu0
    %v1954 = vpop.f32.mrb[0].mxu0
    %v1955 = vadd.f32 0.0, %v1954
    %v1956 = vpop.f32.mrb[0].mxu0
    %1957 = vdwg.mxu0
    %v1958 = vadd.f32 %v1686, %v1944
    %v1959 = vadd.f32 %v1689, %v1947
    %v1960 = vadd.f32 %v1694, %v1952
    %v1961 = vadd.f32 %v1697, %v1955
    %v1962 = vpack.c.bf16 %v1140, %v1140
    %v1963 = vpack.c.bf16 %v1141, %v1141
    %v1964 = vpack.c.bf16 %v1142, %v1142
    %v1965 = vpack.c.bf16 %v1143, %v1143
    %1966 = vrot.lane.b32.xlu0 %v146, 40
    %v1967 = vpop.permute.xlu0 %1966
    %v1969 = vsel %vm153, %v1962, 0
    %v1972 = vsel %vm1193, %v1967, 0
    %1974 = vmatprep.subr.bf16.mxu0 0
    %1975 = vmatpush1.bf16.msra.mxu0 %v1972
    %1976 = vmatprep.subr.bf16.mxu0 0
    %1977 = vmatpush1.bf16.msra.mxu0 0
    %1978 = vmatprep.subr.bf16.mxu0 0
    %1979 = vmatpush1.bf16.msra.mxu0 0
    %1980 = vmatprep.subr.bf16.mxu0 0
    %1981 = vmatpush1.bf16.msra.mxu0 0
    %1982 = vmatprep.subr.bf16.mxu0 0
    %1983 = vmatpush1.bf16.msra.mxu0 0
    %1984 = vmatprep.subr.bf16.mxu0 0
    %1985 = vmatpush1.bf16.msra.mxu0 0
    %1986 = vmatprep.subr.bf16.mxu0 0
    %1987 = vmatpush1.bf16.msra.mxu0 0
    %1988 = vmatprep.subr.bf16.mxu0 0
    %1989 = vmatpush1.bf16.msra.mxu0 0
    %1990 = vmatprep.subr.bf16.mxu0 0
    %1991 = vmatpush1.bf16.msra.mxu0 0
    %1992 = vmatprep.subr.bf16.mxu0 0
    %1993 = vmatpush1.bf16.msra.mxu0 0
    %1994 = vmatprep.subr.bf16.mxu0 0
    %1995 = vmatpush1.bf16.msra.mxu0 0
    %1996 = vmatprep.subr.bf16.mxu0 0
    %1997 = vmatpush1.bf16.msra.mxu0 0
    %1998 = vmatprep.subr.bf16.mxu0 0
    %1999 = vmatpush1.bf16.msra.mxu0 0
    %2000 = vmatprep.subr.bf16.mxu0 0
    %2001 = vmatpush1.bf16.msra.mxu0 0
    %2002 = vmatprep.subr.bf16.mxu0 0
    %2003 = vmatpush1.bf16.msra.mxu0 0
    %2004 = vmatprep.subr.bf16.mxu0 0
    %2005 = vmatpush1.bf16.msra.mxu0 0
    %2006 = vmatprep.mubr.bf16.mxu0 0
    %2007 = vmatmul.mubr.bf16.gmra.mrb[0].mxu0 %v1969
    %v2008 = vpop.f32.mrb[0].mxu0
    %v2009 = vadd.f32 0.0, %v2008
    %v2010 = vpop.f32.mrb[0].mxu0
    %v2011 = vpop.f32.mrb[0].mxu0
    %v2012 = vpop.f32.mrb[0].mxu0
    %2013 = vdwg.mxu0
    %2014 = vrot.lane.b32.xlu0 %v147, 40
    %v2015 = vpop.permute.xlu0 %2014
    %v2017 = vsel %vm153, %v1963, 0
    %v2020 = vsel %vm1193, %v2015, 0
    %2022 = vmatprep.subr.bf16.mxu0 0
    %2023 = vmatpush1.bf16.msra.mxu0 %v2020
    %2024 = vmatprep.subr.bf16.mxu0 0
    %2025 = vmatpush1.bf16.msra.mxu0 0
    %2026 = vmatprep.subr.bf16.mxu0 0
    %2027 = vmatpush1.bf16.msra.mxu0 0
    %2028 = vmatprep.subr.bf16.mxu0 0
    %2029 = vmatpush1.bf16.msra.mxu0 0
    %2030 = vmatprep.subr.bf16.mxu0 0
    %2031 = vmatpush1.bf16.msra.mxu0 0
    %2032 = vmatprep.subr.bf16.mxu0 0
    %2033 = vmatpush1.bf16.msra.mxu0 0
    %2034 = vmatprep.subr.bf16.mxu0 0
    %2035 = vmatpush1.bf16.msra.mxu0 0
    %2036 = vmatprep.subr.bf16.mxu0 0
    %2037 = vmatpush1.bf16.msra.mxu0 0
    %2038 = vmatprep.subr.bf16.mxu0 0
    %2039 = vmatpush1.bf16.msra.mxu0 0
    %2040 = vmatprep.subr.bf16.mxu0 0
    %2041 = vmatpush1.bf16.msra.mxu0 0
    %2042 = vmatprep.subr.bf16.mxu0 0
    %2043 = vmatpush1.bf16.msra.mxu0 0
    %2044 = vmatprep.subr.bf16.mxu0 0
    %2045 = vmatpush1.bf16.msra.mxu0 0
    %2046 = vmatprep.subr.bf16.mxu0 0
    %2047 = vmatpush1.bf16.msra.mxu0 0
    %2048 = vmatprep.subr.bf16.mxu0 0
    %2049 = vmatpush1.bf16.msra.mxu0 0
    %2050 = vmatprep.subr.bf16.mxu0 0
    %2051 = vmatpush1.bf16.msra.mxu0 0
    %2052 = vmatprep.subr.bf16.mxu0 0
    %2053 = vmatpush1.bf16.msra.mxu0 0
    %2054 = vmatprep.mubr.bf16.mxu0 0
    %2055 = vmatmul.mubr.bf16.gmra.mrb[0].mxu0 %v2017
    %v2056 = vpop.f32.mrb[0].mxu0
    %v2057 = vadd.f32 0.0, %v2056
    %v2058 = vpop.f32.mrb[0].mxu0
    %v2059 = vpop.f32.mrb[0].mxu0
    %v2060 = vpop.f32.mrb[0].mxu0
    %2061 = vdwg.mxu0
    %2062 = vrot.lane.b32.xlu0 %v148, 40
    %v2063 = vpop.permute.xlu0 %2062
    %v2065 = vsel %vm153, %v1964, 0
    %v2068 = vsel %vm1193, %v2063, 0
    %2070 = vmatprep.subr.bf16.mxu0 0
    %2071 = vmatpush1.bf16.msra.mxu0 %v2068
    %2072 = vmatprep.subr.bf16.mxu0 0
    %2073 = vmatpush1.bf16.msra.mxu0 0
    %2074 = vmatprep.subr.bf16.mxu0 0
    %2075 = vmatpush1.bf16.msra.mxu0 0
    %2076 = vmatprep.subr.bf16.mxu0 0
    %2077 = vmatpush1.bf16.msra.mxu0 0
    %2078 = vmatprep.subr.bf16.mxu0 0
    %2079 = vmatpush1.bf16.msra.mxu0 0
    %2080 = vmatprep.subr.bf16.mxu0 0
    %2081 = vmatpush1.bf16.msra.mxu0 0
    %2082 = vmatprep.subr.bf16.mxu0 0
    %2083 = vmatpush1.bf16.msra.mxu0 0
    %2084 = vmatprep.subr.bf16.mxu0 0
    %2085 = vmatpush1.bf16.msra.mxu0 0
    %2086 = vmatprep.subr.bf16.mxu0 0
    %2087 = vmatpush1.bf16.msra.mxu0 0
    %2088 = vmatprep.subr.bf16.mxu0 0
    %2089 = vmatpush1.bf16.msra.mxu0 0
    %2090 = vmatprep.subr.bf16.mxu0 0
    %2091 = vmatpush1.bf16.msra.mxu0 0
    %2092 = vmatprep.subr.bf16.mxu0 0
    %2093 = vmatpush1.bf16.msra.mxu0 0
    %2094 = vmatprep.subr.bf16.mxu0 0
    %2095 = vmatpush1.bf16.msra.mxu0 0
    %2096 = vmatprep.subr.bf16.mxu0 0
    %2097 = vmatpush1.bf16.msra.mxu0 0
    %2098 = vmatprep.subr.bf16.mxu0 0
    %2099 = vmatpush1.bf16.msra.mxu0 0
    %2100 = vmatprep.subr.bf16.mxu0 0
    %2101 = vmatpush1.bf16.msra.mxu0 0
    %2102 = vmatprep.mubr.bf16.mxu0 0
    %2103 = vmatmul.mubr.bf16.gmra.mrb[0].mxu0 %v2065
    %v2104 = vpop.f32.mrb[0].mxu0
    %v2105 = vadd.f32 0.0, %v2104
    %v2106 = vpop.f32.mrb[0].mxu0
    %v2107 = vpop.f32.mrb[0].mxu0
    %v2108 = vpop.f32.mrb[0].mxu0
    %2109 = vdwg.mxu0
    %2110 = vrot.lane.b32.xlu0 %v149, 40
    %v2111 = vpop.permute.xlu0 %2110
    %v2113 = vsel %vm153, %v1965, 0
    %v2116 = vsel %vm1193, %v2111, 0
    %2118 = vmatprep.subr.bf16.mxu0 0
    %2119 = vmatpush1.bf16.msra.mxu0 %v2116
    %2120 = vmatprep.subr.bf16.mxu0 0
    %2121 = vmatpush1.bf16.msra.mxu0 0
    %2122 = vmatprep.subr.bf16.mxu0 0
    %2123 = vmatpush1.bf16.msra.mxu0 0
    %2124 = vmatprep.subr.bf16.mxu0 0
    %2125 = vmatpush1.bf16.msra.mxu0 0
    %2126 = vmatprep.subr.bf16.mxu0 0
    %2127 = vmatpush1.bf16.msra.mxu0 0
    %2128 = vmatprep.subr.bf16.mxu0 0
    %2129 = vmatpush1.bf16.msra.mxu0 0
    %2130 = vmatprep.subr.bf16.mxu0 0
    %2131 = vmatpush1.bf16.msra.mxu0 0
    %2132 = vmatprep.subr.bf16.mxu0 0
    %2133 = vmatpush1.bf16.msra.mxu0 0
    %2134 = vmatprep.subr.bf16.mxu0 0
    %2135 = vmatpush1.bf16.msra.mxu0 0
    %2136 = vmatprep.subr.bf16.mxu0 0
    %2137 = vmatpush1.bf16.msra.mxu0 0
    %2138 = vmatprep.subr.bf16.mxu0 0
    %2139 = vmatpush1.bf16.msra.mxu0 0
    %2140 = vmatprep.subr.bf16.mxu0 0
    %2141 = vmatpush1.bf16.msra.mxu0 0
    %2142 = vmatprep.subr.bf16.mxu0 0
    %2143 = vmatpush1.bf16.msra.mxu0 0
    %2144 = vmatprep.subr.bf16.mxu0 0
    %2145 = vmatpush1.bf16.msra.mxu0 0
    %2146 = vmatprep.subr.bf16.mxu0 0
    %2147 = vmatpush1.bf16.msra.mxu0 0
    %2148 = vmatprep.subr.bf16.mxu0 0
    %2149 = vmatpush1.bf16.msra.mxu0 0
    %2150 = vmatprep.mubr.bf16.mxu0 0
    %2151 = vmatmul.mubr.bf16.gmra.mrb[0].mxu0 %v2113
    %v2152 = vpop.f32.mrb[0].mxu0
    %v2153 = vadd.f32 0.0, %v2152
    %v2154 = vpop.f32.mrb[0].mxu0
    %v2155 = vpop.f32.mrb[0].mxu0
    %v2156 = vpop.f32.mrb[0].mxu0
    %2157 = vdwg.mxu0
    %v2158 = vpack.c.bf16 %v2057, %v2009
    %v2159 = vpack.c.bf16 %v2153, %v2105
    %s2160 = scalar_lea.vmem %s3, 12
    %v2161 = vld [vmem:[%s2160] sm:$0xf]
    %v2163 = vsel %vm153, %v2158, 0
    %v2166 = vsel %vm153, %v2159, 0
    %v2169 = vsel %vm1193, %v2161, 0
    %2171 = vmatprep.subr.bf16.mxu0 0
    %2172 = vmatpush1.bf16.msra.mxu0 %v2169
    %2173 = vmatprep.subr.bf16.mxu0 0
    %2174 = vmatpush1.bf16.msra.mxu0 0
    %2175 = vmatprep.subr.bf16.mxu0 0
    %2176 = vmatpush1.bf16.msra.mxu0 0
    %2177 = vmatprep.subr.bf16.mxu0 0
    %2178 = vmatpush1.bf16.msra.mxu0 0
    %2179 = vmatprep.subr.bf16.mxu0 0
    %2180 = vmatpush1.bf16.msra.mxu0 0
    %2181 = vmatprep.subr.bf16.mxu0 0
    %2182 = vmatpush1.bf16.msra.mxu0 0
    %2183 = vmatprep.subr.bf16.mxu0 0
    %2184 = vmatpush1.bf16.msra.mxu0 0
    %2185 = vmatprep.subr.bf16.mxu0 0
    %2186 = vmatpush1.bf16.msra.mxu0 0
    %2187 = vmatprep.subr.bf16.mxu0 0
    %2188 = vmatpush1.bf16.msra.mxu0 0
    %2189 = vmatprep.subr.bf16.mxu0 0
    %2190 = vmatpush1.bf16.msra.mxu0 0
    %2191 = vmatprep.subr.bf16.mxu0 0
    %2192 = vmatpush1.bf16.msra.mxu0 0
    %2193 = vmatprep.subr.bf16.mxu0 0
    %2194 = vmatpush1.bf16.msra.mxu0 0
    %2195 = vmatprep.subr.bf16.mxu0 0
    %2196 = vmatpush1.bf16.msra.mxu0 0
    %2197 = vmatprep.subr.bf16.mxu0 0
    %2198 = vmatpush1.bf16.msra.mxu0 0
    %2199 = vmatprep.subr.bf16.mxu0 0
    %2200 = vmatpush1.bf16.msra.mxu0 0
    %2201 = vmatprep.subr.bf16.mxu0 0
    %2202 = vmatpush1.bf16.msra.mxu0 0
    %2203 = vmatprep.mubr.bf16.mxu0 0
    %2204 = vmatmul.mubr.bf16.gmra.mrb[0].mxu0 %v2163
    %v2205 = vpop.f32.mrb[0].mxu0
    %v2206 = vadd.f32 0.0, %v2205
    %v2207 = vpop.f32.mrb[0].mxu0
    %v2208 = vpop.f32.mrb[0].mxu0
    %v2209 = vadd.f32 0.0, %v2208
    %v2210 = vpop.f32.mrb[0].mxu0
    %2211 = vmatprep.mubr.bf16.mxu0 0
    %2212 = vmatmul.mubr.bf16.gmra.mrb[0].mxu0 %v2166
    %v2213 = vpop.f32.mrb[0].mxu0
    %v2214 = vadd.f32 0.0, %v2213
    %v2215 = vpop.f32.mrb[0].mxu0
    %v2216 = vpop.f32.mrb[0].mxu0
    %v2217 = vadd.f32 0.0, %v2216
    %v2218 = vpop.f32.mrb[0].mxu0
    %2219 = vdwg.mxu0
    %v2220 = vadd.f32 %v1958, %v2206
    %v2221 = vadd.f32 %v1959, %v2209
    %v2222 = vadd.f32 %v1960, %v2214
    %v2223 = vadd.f32 %v1961, %v2217
    %v2224 = vlaneseq
    %v2225 = vshrl.u32 %v2224, 7
    %v2226 = vsub.s32 1, %v2225
    %v2227 = vrot.slane %v59, %v2226
    %v2228 = vadd.f32 %v2220, %v2227
    %v2229 = vadd.f32 %v2221, %v2227
    %v2230 = vadd.f32 %v2222, %v2227
    %v2231 = vadd.f32 %v2223, %v2227
    %vm2232 = vcmp.ne.f32.partialorder %v2228, %v2228
    %vm2233 = vcmp.ne.f32.partialorder %v2229, %v2229
    %vm2234 = vcmp.ne.f32.partialorder %v2230, %v2230
    %vm2235 = vcmp.ne.f32.partialorder %v2231, %v2231
    %v2236 = vsel %vm2232, 0.0, %v2228
    %v2237 = vsel %vm2233, 0.0, %v2229
    %v2238 = vsel %vm2234, 0.0, %v2230
    %v2239 = vsel %vm2235, 0.0, %v2231
    %vm2240 = vcmp.eq.f32.partialorder %v2236, inf
    %vm2241 = vcmp.eq.f32.partialorder %v2237, inf
    %vm2242 = vcmp.eq.f32.partialorder %v2238, inf
    %vm2243 = vcmp.eq.f32.partialorder %v2239, inf
    %v2244 = vsel %vm2240, 3.4028235e+38, %v2236
    %v2245 = vsel %vm2241, 3.4028235e+38, %v2237
    %v2246 = vsel %vm2242, 3.4028235e+38, %v2238
    %v2247 = vsel %vm2243, 3.4028235e+38, %v2239
    %vm2248 = vcmp.eq.f32.partialorder %v2244, -inf
    %vm2249 = vcmp.eq.f32.partialorder %v2245, -inf
    %vm2250 = vcmp.eq.f32.partialorder %v2246, -inf
    %vm2251 = vcmp.eq.f32.partialorder %v2247, -inf
    %v2252 = vsel %vm2248, -3.4028235e+38, %v2244
    %v2253 = vsel %vm2249, -3.4028235e+38, %v2245
    %v2254 = vsel %vm2250, -3.4028235e+38, %v2246
    %v2255 = vsel %vm2251, -3.4028235e+38, %v2247
    %v2256 = vadd.f32 %v55, %v2252
    %v2257 = vadd.f32 %v56, %v2253
    %v2258 = vadd.f32 %v57, %v2254
    %v2259 = vadd.f32 %v58, %v2255
    %v2260 = vsel %vm82, %v2256, 0.0
    %2261 = vadd.xlane.f32.xlu0 %v2260
    %v2262 = vpop.xlane.xlu0 %2261
    %v2263 = vsel %vm82, %v2257, 0.0
    %2264 = vadd.xlane.f32.xlu0 %v2263
    %v2265 = vpop.xlane.xlu0 %2264
    %v2266 = vsel %vm82, %v2258, 0.0
    %2267 = vadd.xlane.f32.xlu0 %v2266
    %v2268 = vpop.xlane.xlu0 %2267
    %v2269 = vsel %vm82, %v2259, 0.0
    %2270 = vadd.xlane.f32.xlu0 %v2269
    %v2271 = vpop.xlane.xlu0 %2270
    %v2272 = vrcp.pop 32.0
    %v2273 = vmul.f32 %v2262, %v2272
    %v2274 = vmul.f32 %v2265, %v2272
    %v2275 = vmul.f32 %v2268, %v2272
    %v2276 = vmul.f32 %v2271, %v2272
    %v2277 = vsub.f32 %v2256, %v2273
    %v2278 = vsub.f32 %v2257, %v2274
    %v2279 = vsub.f32 %v2258, %v2275
    %v2280 = vsub.f32 %v2259, %v2276
    %v2281 = vmul.f32 %v2277, %v2277
    %v2282 = vmul.f32 %v2278, %v2278
    %v2283 = vmul.f32 %v2279, %v2279
    %v2284 = vmul.f32 %v2280, %v2280
    %v2285 = vsel %vm82, %v2281, 0.0
    %2286 = vadd.xlane.f32.xlu0 %v2285
    %v2287 = vpop.xlane.xlu0 %2286
    %v2288 = vsel %vm82, %v2282, 0.0
    %2289 = vadd.xlane.f32.xlu0 %v2288
    %v2290 = vpop.xlane.xlu0 %2289
    %v2291 = vsel %vm82, %v2283, 0.0
    %2292 = vadd.xlane.f32.xlu0 %v2291
    %v2293 = vpop.xlane.xlu0 %2292
    %v2294 = vsel %vm82, %v2284, 0.0
    %2295 = vadd.xlane.f32.xlu0 %v2294
    %v2296 = vpop.xlane.xlu0 %2295
    %v2297 = vmul.f32 %v2287, %v2272
    %v2298 = vmul.f32 %v2290, %v2272
    %v2299 = vmul.f32 %v2293, %v2272
    %v2300 = vmul.f32 %v2296, %v2272
    %v2301 = vadd.f32 %v2297, 1e-05
    %v2302 = vadd.f32 %v2298, 1e-05
    %v2303 = vadd.f32 %v2299, 1e-05
    %v2304 = vadd.f32 %v2300, 1e-05
    %v2305 = vrsqrt.pop %v2301
    %v2306 = vrsqrt.pop %v2302
    %v2307 = vrsqrt.pop %v2303
    %v2308 = vrsqrt.pop %v2304
    %v2309 = vmul.f32 %v2277, %v2305
    %v2310 = vmul.f32 %v2278, %v2306
    %v2311 = vmul.f32 %v2279, %v2307
    %v2312 = vmul.f32 %v2280, %v2308
    %v2313 = vlaneseq
    %v2314 = vshrl.u32 %v2313, 7
    %v2315 = vsub.s32 2, %v2314
    %v2316 = vrot.slane %v59, %v2315
    %v2317 = vmul.f32 %v2309, %v2316
    %v2318 = vmul.f32 %v2310, %v2316
    %v2319 = vmul.f32 %v2311, %v2316
    %v2320 = vmul.f32 %v2312, %v2316
    %v2321 = vlaneseq
    %v2322 = vshrl.u32 %v2321, 7
    %v2323 = vsub.s32 3, %v2322
    %v2324 = vrot.slane %v59, %v2323
    %v2325 = vadd.f32 %v2317, %v2324
    %v2326 = vadd.f32 %v2318, %v2324
    %v2327 = vadd.f32 %v2319, %v2324
    %v2328 = vadd.f32 %v2320, %v2324
    %v2329 = vpack.c.bf16 %v2326, %v2325
    %v2330 = vpack.c.bf16 %v2328, %v2327
    %v2331 = vld [vmem:[%s4] sm:$0xf]
    %v2332 = vld [vmem:[%s4 + $0x4] sm:$0xf]
    %v2333 = vld [vmem:[%s4 + $0x8] sm:$0xf]
    %v2334 = vld [vmem:[%s4 + $0xc] sm:$0xf]
    %v2335 = vlaneseq
    %v2336 = vshrl.u32 %v2335, 7
    %v2337 = vsub.s32 6, %v2336
    %v2338 = vrot.slane %v59, %v2337
    %v2343 = vunpack.c.l.b16 %v2331
    %v2344 = vunpack.c.l.b16 %v2332
    %v2345 = vunpack.c.l.b16 %v2333
    %v2346 = vunpack.c.l.b16 %v2334
    %v2347 = vpack.c.b16 %v2344, %v2343
    %v2348 = vpack.c.b16 %v2346, %v2345
    %v2352 = vsel %vm82, %v2329, 0
    %v2355 = vsel %vm82, %v2330, 0
    %2357 = vmatprep.subr.bf16.mxu0 0
    %2358 = vmatpush1.bf16.msra.mxu0 %v2347
    %2359 = vmatprep.subr.bf16.mxu0 0
    %2360 = vmatpush1.bf16.msra.mxu0 %v2348
    %2361 = vmatprep.subr.bf16.mxu0 0
    %2362 = vmatpush1.bf16.msra.mxu0 0
    %2363 = vmatprep.subr.bf16.mxu0 0
    %2364 = vmatpush1.bf16.msra.mxu0 0
    %2365 = vmatprep.subr.bf16.mxu0 0
    %2366 = vmatpush1.bf16.msra.mxu0 0
    %2367 = vmatprep.subr.bf16.mxu0 0
    %2368 = vmatpush1.bf16.msra.mxu0 0
    %2369 = vmatprep.subr.bf16.mxu0 0
    %2370 = vmatpush1.bf16.msra.mxu0 0
    %2371 = vmatprep.subr.bf16.mxu0 0
    %2372 = vmatpush1.bf16.msra.mxu0 0
    %2373 = vmatprep.subr.bf16.mxu0 0
    %2374 = vmatpush1.bf16.msra.mxu0 0
    %2375 = vmatprep.subr.bf16.mxu0 0
    %2376 = vmatpush1.bf16.msra.mxu0 0
    %2377 = vmatprep.subr.bf16.mxu0 0
    %2378 = vmatpush1.bf16.msra.mxu0 0
    %2379 = vmatprep.subr.bf16.mxu0 0
    %2380 = vmatpush1.bf16.msra.mxu0 0
    %2381 = vmatprep.subr.bf16.mxu0 0
    %2382 = vmatpush1.bf16.msra.mxu0 0
    %2383 = vmatprep.subr.bf16.mxu0 0
    %2384 = vmatpush1.bf16.msra.mxu0 0
    %2385 = vmatprep.subr.bf16.mxu0 0
    %2386 = vmatpush1.bf16.msra.mxu0 0
    %2387 = vmatprep.subr.bf16.mxu0 0
    %2388 = vmatpush1.bf16.msra.mxu0 0
    %2389 = vmatprep.mubr.bf16.mxu0 0
    %2390 = vmatmul.mubr.bf16.gmra.mrb[0].mxu0 %v2352
    %v2391 = vpop.f32.mrb[0].mxu0
    %v2392 = vadd.f32 %v2338, %v2391
    %v2393 = vpop.f32.mrb[0].mxu0
    %v2394 = vpop.f32.mrb[0].mxu0
    %v2395 = vadd.f32 %v2338, %v2394
    %v2396 = vpop.f32.mrb[0].mxu0
    %2397 = vmatprep.mubr.bf16.mxu0 0
    %2398 = vmatmul.mubr.bf16.gmra.mrb[0].mxu0 %v2355
    %v2399 = vpop.f32.mrb[0].mxu0
    %v2400 = vadd.f32 %v2338, %v2399
    %v2401 = vpop.f32.mrb[0].mxu0
    %v2402 = vpop.f32.mrb[0].mxu0
    %v2403 = vadd.f32 %v2338, %v2402
    %v2404 = vpop.f32.mrb[0].mxu0
    %2405 = vdwg.mxu0
    %v2406 = vmax.f32 %v2392, 0.0
    %v2407 = vmax.f32 %v2395, 0.0
    %v2408 = vmax.f32 %v2400, 0.0
    %v2409 = vmax.f32 %v2403, 0.0
    %v2410 = vpack.c.bf16 %v2407, %v2406
    %v2411 = vpack.c.bf16 %v2409, %v2408
    %v2412 = vld [vmem:[%s5] sm:$0xf]
    %v2413 = vld [vmem:[%s5 + $0x4] sm:$0xf]
    %v2414 = vld [vmem:[%s5 + $0x8] sm:$0xf]
    %v2415 = vld [vmem:[%s5 + $0xc] sm:$0xf]
    %v2416 = vld [vmem:[%s5 + $0x10] sm:$0xf]
    %v2417 = vld [vmem:[%s5 + $0x14] sm:$0xf]
    %v2418 = vld [vmem:[%s5 + $0x18] sm:$0xf]
    %v2419 = vld [vmem:[%s5 + $0x1c] sm:$0xf]
    %v2420 = vld [vmem:[%s5 + $0x20] sm:$0xf]
    %v2421 = vld [vmem:[%s5 + $0x24] sm:$0xf]
    %v2422 = vld [vmem:[%s5 + $0x28] sm:$0xf]
    %v2423 = vld [vmem:[%s5 + $0x2c] sm:$0xf]
    %v2424 = vld [vmem:[%s5 + $0x30] sm:$0xf]
    %v2425 = vld [vmem:[%s5 + $0x34] sm:$0xf]
    %v2426 = vld [vmem:[%s5 + $0x38] sm:$0xf]
    %v2427 = vld [vmem:[%s5 + $0x3c] sm:$0xf]
    %v2428 = vlaneseq
    %v2429 = vshrl.u32 %v2428, 7
    %v2430 = vsub.s32 7, %v2429
    %v2431 = vrot.slane %v59, %v2430
    %v2448 = vunpack.c.l.b16 %v2412
    %v2449 = vunpack.c.l.b16 %v2413
    %v2450 = vunpack.c.l.b16 %v2414
    %v2451 = vunpack.c.l.b16 %v2415
    %v2452 = vunpack.c.l.b16 %v2416
    %v2453 = vunpack.c.l.b16 %v2417
    %v2454 = vunpack.c.l.b16 %v2418
    %v2455 = vunpack.c.l.b16 %v2419
    %v2456 = vunpack.c.l.b16 %v2420
    %v2457 = vunpack.c.l.b16 %v2421
    %v2458 = vunpack.c.l.b16 %v2422
    %v2459 = vunpack.c.l.b16 %v2423
    %v2460 = vunpack.c.l.b16 %v2424
    %v2461 = vunpack.c.l.b16 %v2425
    %v2462 = vunpack.c.l.b16 %v2426
    %v2463 = vunpack.c.l.b16 %v2427
    %v2464 = vpack.c.b16 %v2449, %v2448
    %v2465 = vpack.c.b16 %v2451, %v2450
    %v2466 = vpack.c.b16 %v2453, %v2452
    %v2467 = vpack.c.b16 %v2455, %v2454
    %v2468 = vpack.c.b16 %v2457, %v2456
    %v2469 = vpack.c.b16 %v2459, %v2458
    %v2470 = vpack.c.b16 %v2461, %v2460
    %v2471 = vpack.c.b16 %v2463, %v2462
    %2480 = vmatprep.subr.bf16.mxu0 0
    %2481 = vmatpush1.bf16.msra.mxu0 %v2464
    %2482 = vmatprep.subr.bf16.mxu0 0
    %2483 = vmatpush1.bf16.msra.mxu0 %v2465
    %2484 = vmatprep.subr.bf16.mxu0 0
    %2485 = vmatpush1.bf16.msra.mxu0 %v2466
    %2486 = vmatprep.subr.bf16.mxu0 0
    %2487 = vmatpush1.bf16.msra.mxu0 %v2467
    %2488 = vmatprep.subr.bf16.mxu0 0
    %2489 = vmatpush1.bf16.msra.mxu0 %v2468
    %2490 = vmatprep.subr.bf16.mxu0 0
    %2491 = vmatpush1.bf16.msra.mxu0 %v2469
    %2492 = vmatprep.subr.bf16.mxu0 0
    %2493 = vmatpush1.bf16.msra.mxu0 %v2470
    %2494 = vmatprep.subr.bf16.mxu0 0
    %2495 = vmatpush1.bf16.msra.mxu0 %v2471
    %2496 = vmatprep.subr.bf16.mxu0 0
    %2497 = vmatpush1.bf16.msra.mxu0 0
    %2498 = vmatprep.subr.bf16.mxu0 0
    %2499 = vmatpush1.bf16.msra.mxu0 0
    %2500 = vmatprep.subr.bf16.mxu0 0
    %2501 = vmatpush1.bf16.msra.mxu0 0
    %2502 = vmatprep.subr.bf16.mxu0 0
    %2503 = vmatpush1.bf16.msra.mxu0 0
    %2504 = vmatprep.subr.bf16.mxu0 0
    %2505 = vmatpush1.bf16.msra.mxu0 0
    %2506 = vmatprep.subr.bf16.mxu0 0
    %2507 = vmatpush1.bf16.msra.mxu0 0
    %2508 = vmatprep.subr.bf16.mxu0 0
    %2509 = vmatpush1.bf16.msra.mxu0 0
    %2510 = vmatprep.subr.bf16.mxu0 0
    %2511 = vmatpush1.bf16.msra.mxu0 0
    %2512 = vmatprep.mubr.bf16.mxu0 0
    %2513 = vmatmul.mubr.bf16.gmra.mrb[0].mxu0 %v2410
    %v2514 = vpop.f32.mrb[0].mxu0
    %v2515 = vadd.f32 %v2431, %v2514
    %v2516 = vpop.f32.mrb[0].mxu0
    %v2517 = vpop.f32.mrb[0].mxu0
    %v2518 = vadd.f32 %v2431, %v2517
    %v2519 = vpop.f32.mrb[0].mxu0
    %2520 = vmatprep.mubr.bf16.mxu0 0
    %2521 = vmatmul.mubr.bf16.gmra.mrb[0].mxu0 %v2411
    %v2522 = vpop.f32.mrb[0].mxu0
    %v2523 = vadd.f32 %v2431, %v2522
    %v2524 = vpop.f32.mrb[0].mxu0
    %v2525 = vpop.f32.mrb[0].mxu0
    %v2526 = vadd.f32 %v2431, %v2525
    %v2527 = vpop.f32.mrb[0].mxu0
    %2528 = vdwg.mxu0
    %v2529 = vadd.f32 %v2256, %v2515
    %v2530 = vadd.f32 %v2257, %v2518
    %v2531 = vadd.f32 %v2258, %v2523
    %v2532 = vadd.f32 %v2259, %v2526
    %v2533 = vsel %vm82, %v2529, 0.0
    %2534 = vadd.xlane.f32.xlu0 %v2533
    %v2535 = vpop.xlane.xlu0 %2534
    %v2536 = vsel %vm82, %v2530, 0.0
    %2537 = vadd.xlane.f32.xlu0 %v2536
    %v2538 = vpop.xlane.xlu0 %2537
    %v2539 = vsel %vm82, %v2531, 0.0
    %2540 = vadd.xlane.f32.xlu0 %v2539
    %v2541 = vpop.xlane.xlu0 %2540
    %v2542 = vsel %vm82, %v2532, 0.0
    %2543 = vadd.xlane.f32.xlu0 %v2542
    %v2544 = vpop.xlane.xlu0 %2543
    %v2545 = vmul.f32 %v2535, %v2272
    %v2546 = vmul.f32 %v2538, %v2272
    %v2547 = vmul.f32 %v2541, %v2272
    %v2548 = vmul.f32 %v2544, %v2272
    %v2549 = vsub.f32 %v2529, %v2545
    %v2550 = vsub.f32 %v2530, %v2546
    %v2551 = vsub.f32 %v2531, %v2547
    %v2552 = vsub.f32 %v2532, %v2548
    %v2553 = vmul.f32 %v2549, %v2549
    %v2554 = vmul.f32 %v2550, %v2550
    %v2555 = vmul.f32 %v2551, %v2551
    %v2556 = vmul.f32 %v2552, %v2552
    %v2557 = vsel %vm82, %v2553, 0.0
    %2558 = vadd.xlane.f32.xlu0 %v2557
    %v2559 = vpop.xlane.xlu0 %2558
    %v2560 = vsel %vm82, %v2554, 0.0
    %2561 = vadd.xlane.f32.xlu0 %v2560
    %v2562 = vpop.xlane.xlu0 %2561
    %v2563 = vsel %vm82, %v2555, 0.0
    %2564 = vadd.xlane.f32.xlu0 %v2563
    %v2565 = vpop.xlane.xlu0 %2564
    %v2566 = vsel %vm82, %v2556, 0.0
    %2567 = vadd.xlane.f32.xlu0 %v2566
    %v2568 = vpop.xlane.xlu0 %2567
    %v2569 = vmul.f32 %v2559, %v2272
    %v2570 = vmul.f32 %v2562, %v2272
    %v2571 = vmul.f32 %v2565, %v2272
    %v2572 = vmul.f32 %v2568, %v2272
    %v2573 = vadd.f32 %v2569, 1e-05
    %v2574 = vadd.f32 %v2570, 1e-05
    %v2575 = vadd.f32 %v2571, 1e-05
    %v2576 = vadd.f32 %v2572, 1e-05
    %v2577 = vrsqrt.pop %v2573
    %v2578 = vrsqrt.pop %v2574
    %v2579 = vrsqrt.pop %v2575
    %v2580 = vrsqrt.pop %v2576
    %v2581 = vmul.f32 %v2549, %v2577
    %v2582 = vmul.f32 %v2550, %v2578
    %v2583 = vmul.f32 %v2551, %v2579
    %v2584 = vmul.f32 %v2552, %v2580
    %v2585 = vlaneseq
    %v2586 = vshrl.u32 %v2585, 7
    %v2587 = vsub.s32 4, %v2586
    %v2588 = vrot.slane %v59, %v2587
    %v2589 = vmul.f32 %v2581, %v2588
    %v2590 = vmul.f32 %v2582, %v2588
    %v2591 = vmul.f32 %v2583, %v2588
    %v2592 = vmul.f32 %v2584, %v2588
    %v2593 = vlaneseq
    %v2594 = vshrl.u32 %v2593, 7
    %v2595 = vsub.s32 5, %v2594
    %v2596 = vrot.slane %v59, %v2595
    %v2597 = vadd.f32 %v2589, %v2596
    %v2598 = vadd.f32 %v2590, %v2596
    %v2599 = vadd.f32 %v2591, %v2596
    %v2600 = vadd.f32 %v2592, %v2596
    %v2601 = vsel %vm82, %v2597, 0.0
    %2602 = vadd.xlane.f32.xlu0 %v2601
    %v2603 = vpop.xlane.xlu0 %2602
    %v2604 = vsel %vm82, %v2598, 0.0
    %2605 = vadd.xlane.f32.xlu0 %v2604
    %v2606 = vpop.xlane.xlu0 %2605
    %v2607 = vsel %vm82, %v2599, 0.0
    %2608 = vadd.xlane.f32.xlu0 %v2607
    %v2609 = vpop.xlane.xlu0 %2608
    %v2610 = vsel %vm82, %v2600, 0.0
    %2611 = vadd.xlane.f32.xlu0 %v2610
    %v2612 = vpop.xlane.xlu0 %2611
    %v2613 = vmul.f32 %v2603, %v2272
    %v2614 = vmul.f32 %v2606, %v2272
    %v2615 = vmul.f32 %v2609, %v2272
    %v2616 = vmul.f32 %v2612, %v2272
    %v2617 = vsub.f32 %v2597, %v2613
    %v2618 = vsub.f32 %v2598, %v2614
    %v2619 = vsub.f32 %v2599, %v2615
    %v2620 = vsub.f32 %v2600, %v2616
    %v2621 = vmul.f32 %v2617, %v2617
    %v2622 = vmul.f32 %v2618, %v2618
    %v2623 = vmul.f32 %v2619, %v2619
    %v2624 = vmul.f32 %v2620, %v2620
    %v2625 = vsel %vm82, %v2621, 0.0
    %2626 = vadd.xlane.f32.xlu0 %v2625
    %v2627 = vpop.xlane.xlu0 %2626
    %v2628 = vsel %vm82, %v2622, 0.0
    %2629 = vadd.xlane.f32.xlu0 %v2628
    %v2630 = vpop.xlane.xlu0 %2629
    %v2631 = vsel %vm82, %v2623, 0.0
    %2632 = vadd.xlane.f32.xlu0 %v2631
    %v2633 = vpop.xlane.xlu0 %2632
    %v2634 = vsel %vm82, %v2624, 0.0
    %2635 = vadd.xlane.f32.xlu0 %v2634
    %v2636 = vpop.xlane.xlu0 %2635
    %v2637 = vmul.f32 %v2627, %v2272
    %v2638 = vmul.f32 %v2630, %v2272
    %v2639 = vmul.f32 %v2633, %v2272
    %v2640 = vmul.f32 %v2636, %v2272
    %v2641 = vadd.f32 %v2637, 1e-05
    %v2642 = vadd.f32 %v2638, 1e-05
    %v2643 = vadd.f32 %v2639, 1e-05
    %v2644 = vadd.f32 %v2640, 1e-05
    %v2645 = vrsqrt.pop %v2641
    %v2646 = vrsqrt.pop %v2642
    %v2647 = vrsqrt.pop %v2643
    %v2648 = vrsqrt.pop %v2644
    %v2649 = vmul.f32 %v2617, %v2645
    %v2650 = vmul.f32 %v2618, %v2646
    %v2651 = vmul.f32 %v2619, %v2647
    %v2652 = vmul.f32 %v2620, %v2648
    %v2653 = vmul.f32 %v2649, %v2588
    %v2654 = vmul.f32 %v2650, %v2588
    %v2655 = vmul.f32 %v2651, %v2588
    %v2656 = vmul.f32 %v2652, %v2588
    %v2657 = vadd.f32 %v2653, %v2596
    %v2658 = vadd.f32 %v2654, %v2596
    %v2659 = vadd.f32 %v2655, %v2596
    %v2660 = vadd.f32 %v2656, %v2596
    %2661 = vst.msk [vmem:[#allocation7] sm:$0xff] %vm82, %v2657
    %2662 = vst.msk [vmem:[#allocation7 + $0x8] sm:$0xff] %vm82, %v2658
    %2663 = vst.msk [vmem:[#allocation7 + $0x10] sm:$0xff] %vm82, %v2659
    %2664 = vst.msk [vmem:[#allocation7 + $0x18] sm:$0xff] %vm82, %v2660
    %2665 = vst.msk [vmem:[#allocation8] sm:$0xff] %vm153, %v1180
    %2666 = vst.msk [vmem:[#allocation8 + $0x8] sm:$0xff] %vm153, %v1181
    %2667 = vst.msk [vmem:[#allocation8 + $0x10] sm:$0xff] %vm153, %v1182
    %2668 = vst.msk [vmem:[#allocation8 + $0x18] sm:$0xff] %vm153, %v1183
    // Predicated region
    $region38: #{tpu_custom_call.1} parent=1 // pred_check
      _
    $region39: #{tpu_custom_call.1} parent=1 // pred_check_branch
      %2670 = sbr.rel (0) target = $region41
    $region40: #{tpu_custom_call.1} parent=1 // pred_region
      %s2672 = ssub.s32 512, 512
      %2673 = vsyncadd [#allocation4], %s2672
      %s2674 = sshll.u32 [#allocation7], 4
      %s2675 = int_to_ptr.vmem [resolvable:$true] %s2674
      %2680 = dma.vmem_to_hbm [thread:$0]  %s2675, 512, %s7, [#allocation4], 128, 128, 8
    $region41: #{tpu_custom_call.1} parent=1 // pred_fallthru
      _
    // Predicated region
    $region42: #{tpu_custom_call.1} parent=1 // pred_check
      _
    $region43: #{tpu_custom_call.1} parent=1 // pred_check_branch
      %2682 = sbr.rel (0) target = $region45
    $region44: #{tpu_custom_call.1} parent=1 // pred_region
      %s2684 = ssub.s32 512, 512
      %2685 = vsyncadd [#allocation9], %s2684
      %s2686 = sshll.u32 [#allocation8], 4
      %s2687 = int_to_ptr.vmem [resolvable:$true] %s2686
      %2692 = dma.vmem_to_hbm [thread:$0]  %s2687, 512, %s8, [#allocation9], 128, 128, 8
    $region45: #{tpu_custom_call.1} parent=1 // pred_fallthru
      _
    // Predicated region
    $region46: #{tpu_custom_call.1} parent=1 // pred_check
      _
    $region47: #{tpu_custom_call.1} parent=1 // pred_check_branch
      %2694 = sbr.rel (0) target = $region49
    $region48: #{tpu_custom_call.1} parent=1 // pred_region
      %2695 = dma.done [#allocation4], 512
    $region49: #{tpu_custom_call.1} parent=1 // pred_fallthru
      _
    // Predicated region
    $region50: #{tpu_custom_call.1} parent=1 // pred_check
      _
    $region51: #{tpu_custom_call.1} parent=1 // pred_check_branch
      %2697 = sbr.rel (0) target = $region53
    $region52: #{tpu_custom_call.1} parent=1 // pred_region
      %2698 = dma.done [#allocation9], 512
    $region53: #{tpu_custom_call.1} parent=1 // pred_fallthru
      _
    %2699 = vsyncpa [#allocation3], 1
    %2700 = vsyncpa [#allocation6], 1
    %2701 = vsyncpa [#allocation4], 1
    %2702 = vsyncpa [#allocation9], 1

</llo_original>
